<compile_context>
chip_gen: v7x
topology: tpu7x:2x2x1
jax: 0.10.0
libtpu: 0.0.40
codegen_flags: <defaults>
</compile_context>

<pallas_src>
import functools

import numpy as np
import jax
import jax.numpy as jnp
from jax.experimental import pallas as pl
from jax.experimental.pallas import tpu as pltpu

NEG_SLOPE = 0.01  # nn.LeakyReLU default negative_slope


# --------------------------- fused Pallas kernel -----------------------------

def _gcn_attn_kernel(kids_ref, kcnt_ref, adj_ref, eproj_ref, p1_ref, p2_ref,
                     out_ref, acc_ref):
    # kids_ref:  (num_i, max_t) int32 SMEM  nonempty K-block ids per row tile
    # kcnt_ref:  (num_i,)       int32 SMEM  nonempty K-block count per row tile
    # adj_ref:   (C, TN, TK)    bf16  VMEM  adjacency tile (all criteria)
    # eproj_ref: (TK, C*D)      bf16  VMEM  lane-dense folded embeddings
    # p1_ref:    (D, C*A)       bf16  VMEM  packed attn_proj_1 (all queries)
    # p2_ref:    (C*A, C)       bf16  VMEM  block-diagonal attn_proj_2
    # out_ref:   (TN, C*D)      f32   VMEM  lane-dense output slab
    # acc_ref:   (TN, C*D)      f32   VMEM  K-block accumulator for A @ E_proj
    i = pl.program_id(0)
    t = pl.program_id(1)
    nt = pl.num_programs(1)
    C = adj_ref.shape[0]
    CD = eproj_ref.shape[1]
    D = CD // C

    @pl.when(t == 0)
    def _():
        acc_ref[...] = jnp.zeros_like(acc_ref)

    # Block-sparse skip: only accumulate the real (nonempty) K blocks.
    @pl.when(t < kcnt_ref[i])
    def _():
        parts = [
            jnp.dot(adj_ref[c], eproj_ref[:, c * D:(c + 1) * D],
                    preferred_element_type=jnp.float32)
            for c in range(C)
        ]
        acc_ref[...] += jnp.concatenate(parts, axis=1)

    @pl.when(t == nt - 1)
    def _():
        z = acc_ref[...]                                   # (TN, C*D) f32
        x = jnp.where(z >= 0, z, NEG_SLOPE * z)            # LeakyReLU (f32)
        xb = x.astype(jnp.bfloat16)                        # bf16 MXU epilogue

        # Attention scores: for each key-criterion, score against all queries.
        raws = []
        for kc in range(C):
            xk = xb[:, kc * D:(kc + 1) * D]                               # (TN, D)
            tk = jnp.tanh(jnp.dot(xk, p1_ref[...],
                                  preferred_element_type=jnp.float32))    # (TN, C*A)
            raws.append(jnp.dot(tk.astype(jnp.bfloat16), p2_ref[...],
                                preferred_element_type=jnp.float32))      # (TN, C)
        raw = jnp.stack(raws, axis=0)                      # (C_key, TN, C_query)

        # softmax over the key-criterion axis (f32)
        raw = raw - jnp.max(raw, axis=0, keepdims=True)
        e = jnp.exp(raw)
        w = e / jnp.sum(e, axis=0, keepdims=True)          # (C_key, TN, C_query)

        # Attention mix, written lane-dense: out[:, q*D:(q+1)*D] = sum_kc w*x_kc
        cols = []
        for q in range(C):
            mix = w[0, :, q:q + 1] * x[:, 0:D]
            for kc in range(1, C):
                mix = mix + w[kc, :, q:q + 1] * x[:, kc * D:(kc + 1) * D]
            cols.append(mix)
        out_ref[...] = jnp.concatenate(cols, axis=1)


# ------------------------- VMEM budget / tiling -------------------------------

def _vmem_budget(tile_n, tile_k, C, D, A):
    CD, CA = C * D, C * A
    return (
        2 * C * tile_n * tile_k * 2        # adjacency blocks (double-buffered, bf16)
        + 2 * tile_k * CD * 2              # eproj blocks (double-buffered, bf16)
        + 2 * tile_n * CD * 4              # output slab (double-buffered, f32)
        + tile_n * CD * 4                  # f32 accumulator scratch
        + D * CA * 2 + CA * C * 2          # packed attention weights (bf16)
        + 2 * tile_n * CA * 4              # epilogue: tanh activations
        + 3 * C * tile_n * C * 4           # epilogue: raw / exp / softmax weights
        + tile_n * CD * (4 + 2)            # epilogue: LeakyReLU copy + bf16 copy
    )


def _vmem_limit(needed_bytes):
    try:
        cap = int(pltpu.get_tpu_info().vmem_capacity_bytes)
    except Exception:
        cap = 64 * 1024 * 1024             # assume the smallest (v7x) if query fails
    cap = cap * 3 // 4                     # headroom: ~48 MiB v7x, ~96 MiB v5e/v6e
    return int(min(max(2 * needed_bytes, 32 * 1024 * 1024), cap))


def _round_up(x, m):
    return ((x + m - 1) // m) * m


def _pick_tiles(N, want_n=512, want_k=512):
    base = _round_up(N, 128)
    tile_n = min(want_n, base)
    # Keep >= 2 row tiles when possible so the parallel axis uses both v7x TCs.
    if base // tile_n < 2 and base >= 256:
        tile_n = max(128, _round_up(base // 2, 128))
    tile_k = min(want_k, base)
    return tile_n, tile_k


def _pad_axis(x, axis, target):
    pad = target - x.shape[axis]
    if pad <= 0:
        return x
    widths = [(0, 0)] * x.ndim
    widths[axis] = (0, pad)
    return jnp.pad(x, widths)


def build_block_meta(adjs_np, tile_n, tile_k, n_pad, k_pad):
    """Host-side block-sparse metadata: nonempty K-block ids/counts per row tile.

    TODO(synk): at real scale derive this directly from the scipy CSR structure
    instead of densifying on the host.
    """
    C, N, _ = adjs_np.shape
    num_i, num_k = n_pad // tile_n, k_pad // tile_k
    padded = np.zeros((C, n_pad, k_pad), dtype=np.float32)
    padded[:, :N, :N] = adjs_np
    blk = padded.reshape(C, num_i, tile_n, num_k, tile_k)
    nonempty = (np.abs(blk) > 0).any(axis=(0, 2, 4))          # (num_i, num_k)
    counts = nonempty.sum(axis=1).astype(np.int32)
    max_t = int(max(1, counts.max()))
    ids = np.zeros((num_i, max_t), dtype=np.int32)
    for i in range(num_i):
        nz = np.nonzero(nonempty[i])[0]
        if nz.size:
            ids[i, :nz.size] = nz
            ids[i, nz.size:] = nz[-1]                         # repeat last valid id
    return ids, counts


# ------------------------------ pallas_call wrapper ---------------------------

def fused_gcn_attention(kids, kcnt, adj, eproj, p1, p2, *, tile_n, tile_k,
                        vmem_limit):
    C, n_pad, k_pad = adj.shape
    CD = eproj.shape[1]
    D = CD // C
    CA = p1.shape[1]
    num_i = n_pad // tile_n
    max_t = kids.shape[1]

    # Advisory cost estimate (dense upper bound) so XLA overlaps neighbors.
    flops = (2 * C * n_pad * k_pad * D
             + 2 * n_pad * C * (D * CA + CA * C)
             + 2 * n_pad * C * CD)
    transc = n_pad * C * CA + n_pad * C * C
    bytes_accessed = (C * n_pad * k_pad * 2
                      + num_i * k_pad * CD * 2
                      + n_pad * CD * 4)
    cost = pl.CostEstimate(flops=int(flops), transcendentals=int(transc),
                           bytes_accessed=int(bytes_accessed))

    return pl.pallas_call(
        _gcn_attn_kernel,
        out_shape=jax.ShapeDtypeStruct((n_pad, CD), jnp.float32),
        grid_spec=pltpu.PrefetchScalarGridSpec(
            num_scalar_prefetch=2,
            grid=(num_i, max_t),
            in_specs=[
                pl.BlockSpec((C, tile_n, tile_k),
                             lambda i, t, ids, cnt: (0, i, ids[i, t])),
                pl.BlockSpec((tile_k, CD),
                             lambda i, t, ids, cnt: (ids[i, t], 0)),
                pl.BlockSpec((p1.shape[0], CA), lambda i, t, ids, cnt: (0, 0)),
                pl.BlockSpec((CA, p2.shape[1]), lambda i, t, ids, cnt: (0, 0)),
            ],
            out_specs=pl.BlockSpec((tile_n, CD), lambda i, t, ids, cnt: (i, 0)),
            scratch_shapes=[pltpu.VMEM((tile_n, CD), jnp.float32)],
        ),
        compiler_params=pltpu.CompilerParams(
            dimension_semantics=("parallel", "arbitrary"),
            vmem_limit_bytes=vmem_limit,
        ),
        cost_estimate=cost,
    )(kids, kcnt, adj, eproj, p1, p2)


# ------------------------------- forward glue ---------------------------------

def dmcr_forward(params, adjs, kblk_ids, kblk_cnt, *, n_users, n_items,
                 crit_names, tile_n, tile_k):
    C, D = params["crit_embed"].shape
    depth = len(params["gcn_layers"])
    A = params["attn_p1"].shape[2]
    N = n_users + n_items
    # The reference model implicitly requires layer dims == embed_dim.
    assert all(w.shape == (D, D) for w in params["gcn_layers"])

    n_pad = _round_up(N, tile_n)
    k_pad = _round_up(N, tile_k)
    assert kblk_ids.shape[0] == n_pad // tile_n

    # TODO(synk): torch.sparse SpMM has no Pallas TPU primitive; the adjacency
    #             tiles are dense bf16 fed to the MXU (empty tiles are skipped
    #             via the scalar-prefetched block metadata).
    adj_p = _pad_axis(_pad_axis(adjs, 1, n_pad), 2, k_pad).astype(jnp.bfloat16)

    # Packed attention weights (built once, reused every layer):
    #   p1_cat[d, q*A + a] = attn_p1[q, d, a]
    #   p2_blk[q*A + a, q'] = attn_p2[q, a, 0] if q' == q else 0
    p1_cat = jnp.transpose(params["attn_p1"], (1, 0, 2)).reshape(D, C * A)
    p1_cat = p1_cat.astype(jnp.bfloat16)
    p2_blk = (params["attn_p2"][:, :, 0][:, :, None]
              * jnp.eye(C, dtype=jnp.float32)[:, None, :]).reshape(C * A, C)
    p2_blk = p2_blk.astype(jnp.bfloat16)

    vmem_limit = _vmem_limit(_vmem_budget(tile_n, tile_k, C, D, A))

    ego = jnp.concatenate([params["user_embed"], params["item_embed"]], axis=0)
    feature_bank = ego
    crit_chain = [params["crit_embed"]]                       # list of (C, D)

    for l in range(depth):
        crit_l = crit_chain[l]
        # Fold W_gcn, criterion vector and W_layer into E_proj (they commute
        # with the left A@ multiply):  E_proj_c = ((E_c @ W_gcn) * crit_c) @ W_l
        h = jnp.einsum('ncd,de->nce', ego, params["gcn_weight"])
        h = h * crit_l[None, :, :]
        eproj = jnp.einsum('nce,ef->ncf', h, params["gcn_layers"][l])    # (N, C, D)
        eproj_flat = _pad_axis(eproj.reshape(N, C * D), 0, k_pad).astype(jnp.bfloat16)

        ego_flat = fused_gcn_attention(kblk_ids, kblk_cnt, adj_p, eproj_flat,
                                       p1_cat, p2_blk,
                                       tile_n=tile_n, tile_k=tile_k,
                                       vmem_limit=vmem_limit)            # (n_pad, C*D)
        ego = ego_flat[:N].reshape(N, C, D)

        # mess_dropout configured to 0.0 -> nn.Dropout is the identity here.
        feature_bank = feature_bank + ego

        # batched criterion-embedding projection: (C, D) @ (D, D)
        crit_chain.append(crit_chain[l] @ params["crit_layers"][l])

    feature_bank = feature_bank / (depth + 1)
    user_out = feature_bank[:n_users]
    item_out = jnp.concatenate(
        [feature_bank[n_users:], jnp.zeros((1, C, D), feature_bank.dtype)], axis=0)
    crit_mean = jnp.mean(jnp.stack(crit_chain, axis=0), axis=0)          # (C, D)
    crit_out = {name: crit_mean[i].reshape(1, D) for i, name in enumerate(crit_names)}
    return user_out, item_out, crit_out


# ---------------------- pure-JAX reference (for checking) ---------------------

def dmcr_reference(params, adjs, n_users, n_items, crit_names):
    C, D = params["crit_embed"].shape
    depth = len(params["gcn_layers"])
    ego = jnp.concatenate([params["user_embed"], params["item_embed"]], axis=0)
    fb = ego
    crit_lists = {name: [params["crit_embed"][i].reshape(1, D)]
                  for i, name in enumerate(crit_names)}
    for l in range(depth):
        feats = []
        for ci, name in enumerate(crit_names):
            g = adjs[ci] @ ego[:, ci, :]
            g = g @ params["gcn_weight"]
            comb = g * crit_lists[name][l]
            z = comb @ params["gcn_layers"][l]
            feats.append(jnp.where(z >= 0, z, NEG_SLOPE * z))
        stacked = jnp.stack(feats, axis=1)                              # (N, C, D)
        outs = []
        for ci in range(C):
            raw = (jnp.tanh(stacked @ params["attn_p1"][ci])
                   @ params["attn_p2"][ci])[..., 0]                     # (N, C)
            w = jax.nn.softmax(raw, axis=1)
            outs.append(jnp.einsum('nc,ncd->nd', w, stacked))
        ego = jnp.stack(outs, axis=1)
        fb = fb + ego
        for ci, name in enumerate(crit_names):
            crit_lists[name].append(crit_lists[name][l] @ params["crit_layers"][l])
    fb = fb / (depth + 1)
    user_out = fb[:n_users]
    item_out = jnp.concatenate([fb[n_users:], jnp.zeros((1, C, D), fb.dtype)], axis=0)
    crit_out = {name: jnp.mean(jnp.stack(crit_lists[name], axis=0), axis=0)
                for name in crit_names}
    return user_out, item_out, crit_out


# ------------------------------------ main ------------------------------------

def _xavier_uniform(key, shape):
    if len(shape) > 2:
        recep = 1
        for s in shape[2:]:
            recep *= s
        fan_in, fan_out = shape[1] * recep, shape[0] * recep
    else:
        fan_out, fan_in = shape[0], shape[1]
    bound = (6.0 / (fan_in + fan_out)) ** 0.5
    return jax.random.uniform(key, shape, jnp.float32, -bound, bound)


if __name__ == "__main__":
    n_users, n_items = 128, 128
    N = n_users + n_items
    C, D, A = 4, 32, 32           # criteria, embed_size, att_dim (C*D = C*A = 128)
    depth = 2                     # layer_size = [D, D]
    crit_names = [f"crit{c}" for c in range(C)]

    key = jax.random.PRNGKey(0)
    ks = jax.random.split(key, 7 + 2 * depth)

    params = {
        "user_embed": _xavier_uniform(ks[0], (n_users, C, D)),
        "item_embed": _xavier_uniform(ks[1], (n_items, C, D)),
        "crit_embed": _xavier_uniform(ks[2], (C, D)),
        "gcn_weight": _xavier_uniform(ks[3], (D, D)),
        "attn_p1":    _xavier_uniform(ks[4], (C, D, A)),
        "attn_p2":    _xavier_uniform(ks[5], (C, A, 1)),
        "gcn_layers":  [_xavier_uniform(ks[6 + l], (D, D)) for l in range(depth)],
        "crit_layers": [_xavier_uniform(ks[6 + depth + l], (D, D)) for l in range(depth)],
    }

    # Dense, row-normalized synthetic adjacency per criterion (replaces sparse adj).
    adj_raw = jax.random.uniform(ks[6 + 2 * depth], (C, N, N), jnp.float32)
    adjs = adj_raw / jnp.sum(adj_raw, axis=-1, keepdims=True)

    tile_n, tile_k = _pick_tiles(N)                   # 512 at realistic N; 128/256 here
    n_pad = _round_up(N, tile_n)
    k_pad = _round_up(N, tile_k)
    kids_np, kcnt_np = build_block_meta(np.asarray(adjs), tile_n, tile_k, n_pad, k_pad)
    kids = jnp.asarray(kids_np)
    kcnt = jnp.asarray(kcnt_np)

    fwd = jax.jit(functools.partial(
        dmcr_forward, n_users=n_users, n_items=n_items, crit_names=crit_names,
        tile_n=tile_n, tile_k=tile_k))

    user_out, item_out, crit_out = fwd(params, adjs, kids, kcnt)
    jax.block_until_ready(user_out)
    jax.block_until_ready(item_out)
    for name in crit_names:
        jax.block_until_ready(crit_out[name])

    assert user_out.shape == (n_users, C, D)
    assert item_out.shape == (n_items + 1, C, D)
    assert all(crit_out[name].shape == (1, D) for name in crit_names)

    # Correctness vs. a straightforward JAX port of the PyTorch forward
    # (tolerance covers bf16 adjacency/epilogue operands + blocked-K reassoc).
    ref_user, ref_item, ref_crit = dmcr_reference(params, adjs, n_users, n_items, crit_names)
    assert jnp.allclose(user_out, ref_user, atol=1e-2, rtol=1e-2)
    assert jnp.allclose(item_out, ref_item, atol=1e-2, rtol=1e-2)
    for name in crit_names:
        assert jnp.allclose(crit_out[name], ref_crit[name], atol=1e-2, rtol=1e-2)

    print("KERNEL_OK")
</pallas_src>

<mosaic_0001>
module attributes {stable_mosaic.version = 11 : i64} {
  func.func @_gcn_attn_kernel(%arg0: i32, %arg1: i32, %arg2: memref<2x1xi32, #tpu.memory_space<smem>>, %arg3: memref<2xi32, #tpu.memory_space<smem>>, %arg4: memref<4x128x256xbf16, #tpu.memory_space<vmem>>, %arg5: memref<256x128xbf16, #tpu.memory_space<vmem>>, %arg6: memref<32x128xbf16, #tpu.memory_space<vmem>>, %arg7: memref<128x4xbf16, #tpu.memory_space<vmem>>, %arg8: memref<128x128xf32, #tpu.memory_space<vmem>>, %arg9: memref<128x128xf32, #tpu.memory_space<vmem>>) attributes {dimension_semantics = [#tpu.dimension_semantics<parallel>, #tpu.dimension_semantics<arbitrary>], iteration_bounds = array<i64: 2, 1>, scalar_prefetch = 2 : i64, scratch_operands = 1 : i64, tpu.core_type = #tpu.core_type<tc>, window_params = [{transform_indices = @transform_0, window_bounds = array<i64: 4, 128, 256>}, {transform_indices = @transform_1, window_bounds = array<i64: 256, 128>}, {pipeline_mode = #tpu.pipeline_mode<synchronous>, transform_indices = @transform_2, window_bounds = array<i64: 32, 128>}, {pipeline_mode = #tpu.pipeline_mode<synchronous>, transform_indices = @transform_3, window_bounds = array<i64: 128, 4>}, {transform_indices = @transform_4, window_bounds = array<i64: 128, 128>}]} {
    %c0_i32 = arith.constant 0 : i32
    %0 = arith.cmpi eq, %arg1, %c0_i32 : i32
    %1 = arith.extui %0 : i1 to i32
    %c0_i32_0 = arith.constant 0 : i32
    %2 = arith.cmpi ne, %1, %c0_i32_0 : i32
    scf.if %2 {
      %cst = arith.constant 0.000000e+00 : f32
      %11 = vector.broadcast %cst : f32 to vector<128x128xf32>
      %c0 = arith.constant 0 : index
      %c0_4 = arith.constant 0 : index
      %12 = vector.load %arg9[%c0, %c0_4] : memref<128x128xf32, #tpu.memory_space<vmem>>, vector<128x128xf32>
      tpu.vector_store %arg9[%c0, %c0_4], %11 {strides = array<i32>} : memref<128x128xf32, #tpu.memory_space<vmem>>, vector<128x128xf32>,
    } else {
    }
    %3 = arith.index_cast %arg0 : i32 to index
    %4 = memref.load %arg3[%3] : memref<2xi32, #tpu.memory_space<smem>>
    %5 = arith.cmpi slt, %arg1, %4 : i32
    %6 = arith.extui %5 : i1 to i32
    %c0_i32_1 = arith.constant 0 : i32
    %7 = arith.cmpi ne, %6, %c0_i32_1 : i32
    scf.if %7 {
      %c0 = arith.constant 0 : index
      %c0_4 = arith.constant 0 : index
      %c0_5 = arith.constant 0 : index
      %11 = vector.load %arg4[%c0, %c0_4, %c0_5] : memref<4x128x256xbf16, #tpu.memory_space<vmem>>, vector<1x128x256xbf16>
      %12 = vector.shape_cast %11 : vector<1x128x256xbf16> to vector<128x256xbf16>
      %c0_6 = arith.constant 0 : index
      %c0_7 = arith.constant 0 : index
      %13 = vector.load %arg5[%c0_6, %c0_7] : memref<256x128xbf16, #tpu.memory_space<vmem>>, vector<256x32xbf16>
      %cst = arith.constant dense<0.000000e+00> : vector<128x32xf32>
      %14 = tpu.matmul %12, %13, %cst {dimension_numbers = #tpu.dot_dimension_numbers<[1], [0], [0], [1], [0, 0, 1, 1], [], []>} : vector<128x256xbf16>, vector<256x32xbf16>, vector<128x32xf32> -> vector<128x32xf32>
      %c1 = arith.constant 1 : index
      %c0_8 = arith.constant 0 : index
      %c0_9 = arith.constant 0 : index
      %15 = vector.load %arg4[%c1, %c0_8, %c0_9] : memref<4x128x256xbf16, #tpu.memory_space<vmem>>, vector<1x128x256xbf16>
      %16 = vector.shape_cast %15 : vector<1x128x256xbf16> to vector<128x256xbf16>
      %c0_10 = arith.constant 0 : index
      %c32 = arith.constant 32 : index
      %17 = vector.load %arg5[%c0_10, %c32] : memref<256x128xbf16, #tpu.memory_space<vmem>>, vector<256x32xbf16>
      %cst_11 = arith.constant dense<0.000000e+00> : vector<128x32xf32>
      %18 = tpu.matmul %16, %17, %cst_11 {dimension_numbers = #tpu.dot_dimension_numbers<[1], [0], [0], [1], [0, 0, 1, 1], [], []>} : vector<128x256xbf16>, vector<256x32xbf16>, vector<128x32xf32> -> vector<128x32xf32>
      %c2 = arith.constant 2 : index
      %c0_12 = arith.constant 0 : index
      %c0_13 = arith.constant 0 : index
      %19 = vector.load %arg4[%c2, %c0_12, %c0_13] : memref<4x128x256xbf16, #tpu.memory_space<vmem>>, vector<1x128x256xbf16>
      %20 = vector.shape_cast %19 : vector<1x128x256xbf16> to vector<128x256xbf16>
      %c0_14 = arith.constant 0 : index
      %c64 = arith.constant 64 : index
      %21 = vector.load %arg5[%c0_14, %c64] : memref<256x128xbf16, #tpu.memory_space<vmem>>, vector<256x32xbf16>
      %cst_15 = arith.constant dense<0.000000e+00> : vector<128x32xf32>
      %22 = tpu.matmul %20, %21, %cst_15 {dimension_numbers = #tpu.dot_dimension_numbers<[1], [0], [0], [1], [0, 0, 1, 1], [], []>} : vector<128x256xbf16>, vector<256x32xbf16>, vector<128x32xf32> -> vector<128x32xf32>
      %c3 = arith.constant 3 : index
      %c0_16 = arith.constant 0 : index
      %c0_17 = arith.constant 0 : index
      %23 = vector.load %arg4[%c3, %c0_16, %c0_17] : memref<4x128x256xbf16, #tpu.memory_space<vmem>>, vector<1x128x256xbf16>
      %24 = vector.shape_cast %23 : vector<1x128x256xbf16> to vector<128x256xbf16>
      %c0_18 = arith.constant 0 : index
      %c96 = arith.constant 96 : index
      %25 = vector.load %arg5[%c0_18, %c96] : memref<256x128xbf16, #tpu.memory_space<vmem>>, vector<256x32xbf16>
      %cst_19 = arith.constant dense<0.000000e+00> : vector<128x32xf32>
      %26 = tpu.matmul %24, %25, %cst_19 {dimension_numbers = #tpu.dot_dimension_numbers<[1], [0], [0], [1], [0, 0, 1, 1], [], []>} : vector<128x256xbf16>, vector<256x32xbf16>, vector<128x32xf32> -> vector<128x32xf32>
      %c0_20 = arith.constant 0 : index
      %c0_21 = arith.constant 0 : index
      %27 = vector.load %arg9[%c0_20, %c0_21] : memref<128x128xf32, #tpu.memory_space<vmem>>, vector<128x128xf32>
      %28 = tpu.concatenate %14, %18, %22, %26 in 1 : vector<128x32xf32>, vector<128x32xf32>, vector<128x32xf32>, vector<128x32xf32> -> vector<128x128xf32>
      %29 = arith.addf %27, %28 : vector<128x128xf32>
      %c0_22 = arith.constant 0 : index
      %c0_23 = arith.constant 0 : index
      %30 = vector.load %arg9[%c0_22, %c0_23] : memref<128x128xf32, #tpu.memory_space<vmem>>, vector<128x128xf32>
      tpu.vector_store %arg9[%c0_22, %c0_23], %29 {strides = array<i32>} : memref<128x128xf32, #tpu.memory_space<vmem>>, vector<128x128xf32>,
    } else {
    }
    %c0_i32_2 = arith.constant 0 : i32
    %8 = arith.cmpi eq, %arg1, %c0_i32_2 : i32
    %9 = arith.extui %8 : i1 to i32
    %c0_i32_3 = arith.constant 0 : i32
    %10 = arith.cmpi ne, %9, %c0_i32_3 : i32
    scf.if %10 {
      %c0 = arith.constant 0 : index
      %c0_4 = arith.constant 0 : index
      %11 = vector.load %arg9[%c0, %c0_4] : memref<128x128xf32, #tpu.memory_space<vmem>>, vector<128x128xf32>
      %cst = arith.constant 0.000000e+00 : f32
      %12 = vector.broadcast %cst : f32 to vector<128x128xf32>
      %13 = arith.cmpf oge, %11, %12 : vector<128x128xf32>
      %cst_5 = arith.constant 0.00999999977 : f32
      %14 = vector.broadcast %cst_5 : f32 to vector<128x128xf32>
      %15 = arith.mulf %14, %11 : vector<128x128xf32>
      %16 = arith.select %13, %11, %15 : vector<128x128xi1>, vector<128x128xf32>
      %17 = arith.truncf %16 : vector<128x128xf32> to vector<128x128xbf16>
      %18 = vector.extract_strided_slice %17 {offsets = [0, 0], sizes = [128, 32], strides = [1, 1]} : vector<128x128xbf16> to vector<128x32xbf16>
      %c0_6 = arith.constant 0 : index
      %c0_7 = arith.constant 0 : index
      %19 = vector.load %arg6[%c0_6, %c0_7] : memref<32x128xbf16, #tpu.memory_space<vmem>>, vector<32x128xbf16>
      %cst_8 = arith.constant dense<0.000000e+00> : vector<128x128xf32>
      %20 = tpu.matmul %18, %19, %cst_8 {dimension_numbers = #tpu.dot_dimension_numbers<[1], [0], [0], [1], [0, 0, 1, 1], [], []>} : vector<128x32xbf16>, vector<32x128xbf16>, vector<128x128xf32> -> vector<128x128xf32>
      %21 = math.tanh %20 : vector<128x128xf32>
      %22 = arith.truncf %21 : vector<128x128xf32> to vector<128x128xbf16>
      %c0_9 = arith.constant 0 : index
      %c0_10 = arith.constant 0 : index
      %23 = vector.load %arg7[%c0_9, %c0_10] : memref<128x4xbf16, #tpu.memory_space<vmem>>, vector<128x4xbf16>
      %cst_11 = arith.constant dense<0.000000e+00> : vector<128x4xf32>
      %24 = tpu.matmul %22, %23, %cst_11 {dimension_numbers = #tpu.dot_dimension_numbers<[1], [0], [0], [1], [0, 0, 1, 1], [], []>} : vector<128x128xbf16>, vector<128x4xbf16>, vector<128x4xf32> -> vector<128x4xf32>
      %25 = vector.extract_strided_slice %17 {offsets = [0, 32], sizes = [128, 32], strides = [1, 1]} : vector<128x128xbf16> to vector<128x32xbf16>
      %c0_12 = arith.constant 0 : index
      %c0_13 = arith.constant 0 : index
      %26 = vector.load %arg6[%c0_12, %c0_13] : memref<32x128xbf16, #tpu.memory_space<vmem>>, vector<32x128xbf16>
      %cst_14 = arith.constant dense<0.000000e+00> : vector<128x128xf32>
      %27 = tpu.matmul %25, %26, %cst_14 {dimension_numbers = #tpu.dot_dimension_numbers<[1], [0], [0], [1], [0, 0, 1, 1], [], []>} : vector<128x32xbf16>, vector<32x128xbf16>, vector<128x128xf32> -> vector<128x128xf32>
      %28 = math.tanh %27 : vector<128x128xf32>
      %29 = arith.truncf %28 : vector<128x128xf32> to vector<128x128xbf16>
      %c0_15 = arith.constant 0 : index
      %c0_16 = arith.constant 0 : index
      %30 = vector.load %arg7[%c0_15, %c0_16] : memref<128x4xbf16, #tpu.memory_space<vmem>>, vector<128x4xbf16>
      %cst_17 = arith.constant dense<0.000000e+00> : vector<128x4xf32>
      %31 = tpu.matmul %29, %30, %cst_17 {dimension_numbers = #tpu.dot_dimension_numbers<[1], [0], [0], [1], [0, 0, 1, 1], [], []>} : vector<128x128xbf16>, vector<128x4xbf16>, vector<128x4xf32> -> vector<128x4xf32>
      %32 = vector.extract_strided_slice %17 {offsets = [0, 64], sizes = [128, 32], strides = [1, 1]} : vector<128x128xbf16> to vector<128x32xbf16>
      %c0_18 = arith.constant 0 : index
      %c0_19 = arith.constant 0 : index
      %33 = vector.load %arg6[%c0_18, %c0_19] : memref<32x128xbf16, #tpu.memory_space<vmem>>, vector<32x128xbf16>
      %cst_20 = arith.constant dense<0.000000e+00> : vector<128x128xf32>
      %34 = tpu.matmul %32, %33, %cst_20 {dimension_numbers = #tpu.dot_dimension_numbers<[1], [0], [0], [1], [0, 0, 1, 1], [], []>} : vector<128x32xbf16>, vector<32x128xbf16>, vector<128x128xf32> -> vector<128x128xf32>
      %35 = math.tanh %34 : vector<128x128xf32>
      %36 = arith.truncf %35 : vector<128x128xf32> to vector<128x128xbf16>
      %c0_21 = arith.constant 0 : index
      %c0_22 = arith.constant 0 : index
      %37 = vector.load %arg7[%c0_21, %c0_22] : memref<128x4xbf16, #tpu.memory_space<vmem>>, vector<128x4xbf16>
      %cst_23 = arith.constant dense<0.000000e+00> : vector<128x4xf32>
      %38 = tpu.matmul %36, %37, %cst_23 {dimension_numbers = #tpu.dot_dimension_numbers<[1], [0], [0], [1], [0, 0, 1, 1], [], []>} : vector<128x128xbf16>, vector<128x4xbf16>, vector<128x4xf32> -> vector<128x4xf32>
      %39 = vector.extract_strided_slice %17 {offsets = [0, 96], sizes = [128, 32], strides = [1, 1]} : vector<128x128xbf16> to vector<128x32xbf16>
      %c0_24 = arith.constant 0 : index
      %c0_25 = arith.constant 0 : index
      %40 = vector.load %arg6[%c0_24, %c0_25] : memref<32x128xbf16, #tpu.memory_space<vmem>>, vector<32x128xbf16>
      %cst_26 = arith.constant dense<0.000000e+00> : vector<128x128xf32>
      %41 = tpu.matmul %39, %40, %cst_26 {dimension_numbers = #tpu.dot_dimension_numbers<[1], [0], [0], [1], [0, 0, 1, 1], [], []>} : vector<128x32xbf16>, vector<32x128xbf16>, vector<128x128xf32> -> vector<128x128xf32>
      %42 = math.tanh %41 : vector<128x128xf32>
      %43 = arith.truncf %42 : vector<128x128xf32> to vector<128x128xbf16>
      %c0_27 = arith.constant 0 : index
      %c0_28 = arith.constant 0 : index
      %44 = vector.load %arg7[%c0_27, %c0_28] : memref<128x4xbf16, #tpu.memory_space<vmem>>, vector<128x4xbf16>
      %cst_29 = arith.constant dense<0.000000e+00> : vector<128x4xf32>
      %45 = tpu.matmul %43, %44, %cst_29 {dimension_numbers = #tpu.dot_dimension_numbers<[1], [0], [0], [1], [0, 0, 1, 1], [], []>} : vector<128x128xbf16>, vector<128x4xbf16>, vector<128x4xf32> -> vector<128x4xf32>
      %46 = vector.shape_cast %24 : vector<128x4xf32> to vector<1x128x4xf32>
      %47 = vector.shape_cast %31 : vector<128x4xf32> to vector<1x128x4xf32>
      %48 = vector.shape_cast %38 : vector<128x4xf32> to vector<1x128x4xf32>
      %49 = vector.shape_cast %45 : vector<128x4xf32> to vector<1x128x4xf32>
      %50 = tpu.concatenate %46, %47, %48, %49 in 0 : vector<1x128x4xf32>, vector<1x128x4xf32>, vector<1x128x4xf32>, vector<1x128x4xf32> -> vector<4x128x4xf32>
      %cst_30 = arith.constant dense<0xFF800000> : vector<128x4xf32>
      %51 = vector.multi_reduction <maximumf>, %50, %cst_30 [0] : vector<4x128x4xf32> to vector<128x4xf32>
      %52 = vector.shape_cast %51 : vector<128x4xf32> to vector<1x128x4xf32>
      %53 = vector.broadcast %52 : vector<1x128x4xf32> to vector<4x128x4xf32>
      %54 = arith.subf %50, %53 : vector<4x128x4xf32>
      %55 = math.exp %54 : vector<4x128x4xf32>
      %cst_31 = arith.constant dense<0.000000e+00> : vector<128x4xf32>
      %56 = vector.multi_reduction <add>, %55, %cst_31 [0] : vector<4x128x4xf32> to vector<128x4xf32>
      %57 = vector.shape_cast %56 : vector<128x4xf32> to vector<1x128x4xf32>
      %58 = vector.broadcast %57 : vector<1x128x4xf32> to vector<4x128x4xf32>
      %59 = arith.divf %55, %58 : vector<4x128x4xf32>
      %60 = vector.extract_strided_slice %59 {offsets = [0, 0, 0], sizes = [1, 128, 1], strides = [1, 1, 1]} : vector<4x128x4xf32> to vector<1x128x1xf32>
      %61 = vector.shape_cast %60 : vector<1x128x1xf32> to vector<128x1xf32>
      %62 = vector.extract_strided_slice %16 {offsets = [0, 0], sizes = [128, 32], strides = [1, 1]} : vector<128x128xf32> to vector<128x32xf32>
      %63 = vector.broadcast %61 : vector<128x1xf32> to vector<128x32xf32>
      %64 = arith.mulf %63, %62 : vector<128x32xf32>
      %65 = vector.extract_strided_slice %59 {offsets = [1, 0, 0], sizes = [1, 128, 1], strides = [1, 1, 1]} : vector<4x128x4xf32> to vector<1x128x1xf32>
      %66 = vector.shape_cast %65 : vector<1x128x1xf32> to vector<128x1xf32>
      %67 = vector.extract_strided_slice %16 {offsets = [0, 32], sizes = [128, 32], strides = [1, 1]} : vector<128x128xf32> to vector<128x32xf32>
      %68 = vector.broadcast %66 : vector<128x1xf32> to vector<128x32xf32>
      %69 = arith.mulf %68, %67 : vector<128x32xf32>
      %70 = arith.addf %64, %69 : vector<128x32xf32>
      %71 = vector.extract_strided_slice %59 {offsets = [2, 0, 0], sizes = [1, 128, 1], strides = [1, 1, 1]} : vector<4x128x4xf32> to vector<1x128x1xf32>
      %72 = vector.shape_cast %71 : vector<1x128x1xf32> to vector<128x1xf32>
      %73 = vector.extract_strided_slice %16 {offsets = [0, 64], sizes = [128, 32], strides = [1, 1]} : vector<128x128xf32> to vector<128x32xf32>
      %74 = vector.broadcast %72 : vector<128x1xf32> to vector<128x32xf32>
      %75 = arith.mulf %74, %73 : vector<128x32xf32>
      %76 = arith.addf %70, %75 : vector<128x32xf32>
      %77 = vector.extract_strided_slice %59 {offsets = [3, 0, 0], sizes = [1, 128, 1], strides = [1, 1, 1]} : vector<4x128x4xf32> to vector<1x128x1xf32>
      %78 = vector.shape_cast %77 : vector<1x128x1xf32> to vector<128x1xf32>
      %79 = vector.extract_strided_slice %16 {offsets = [0, 96], sizes = [128, 32], strides = [1, 1]} : vector<128x128xf32> to vector<128x32xf32>
      %80 = vector.broadcast %78 : vector<128x1xf32> to vector<128x32xf32>
      %81 = arith.mulf %80, %79 : vector<128x32xf32>
      %82 = arith.addf %76, %81 : vector<128x32xf32>
      %83 = vector.extract_strided_slice %59 {offsets = [0, 0, 1], sizes = [1, 128, 1], strides = [1, 1, 1]} : vector<4x128x4xf32> to vector<1x128x1xf32>
      %84 = vector.shape_cast %83 : vector<1x128x1xf32> to vector<128x1xf32>
      %85 = vector.extract_strided_slice %16 {offsets = [0, 0], sizes = [128, 32], strides = [1, 1]} : vector<128x128xf32> to vector<128x32xf32>
      %86 = vector.broadcast %84 : vector<128x1xf32> to vector<128x32xf32>
      %87 = arith.mulf %86, %85 : vector<128x32xf32>
      %88 = vector.extract_strided_slice %59 {offsets = [1, 0, 1], sizes = [1, 128, 1], strides = [1, 1, 1]} : vector<4x128x4xf32> to vector<1x128x1xf32>
      %89 = vector.shape_cast %88 : vector<1x128x1xf32> to vector<128x1xf32>
      %90 = vector.extract_strided_slice %16 {offsets = [0, 32], sizes = [128, 32], strides = [1, 1]} : vector<128x128xf32> to vector<128x32xf32>
      %91 = vector.broadcast %89 : vector<128x1xf32> to vector<128x32xf32>
      %92 = arith.mulf %91, %90 : vector<128x32xf32>
      %93 = arith.addf %87, %92 : vector<128x32xf32>
      %94 = vector.extract_strided_slice %59 {offsets = [2, 0, 1], sizes = [1, 128, 1], strides = [1, 1, 1]} : vector<4x128x4xf32> to vector<1x128x1xf32>
      %95 = vector.shape_cast %94 : vector<1x128x1xf32> to vector<128x1xf32>
      %96 = vector.extract_strided_slice %16 {offsets = [0, 64], sizes = [128, 32], strides = [1, 1]} : vector<128x128xf32> to vector<128x32xf32>
      %97 = vector.broadcast %95 : vector<128x1xf32> to vector<128x32xf32>
      %98 = arith.mulf %97, %96 : vector<128x32xf32>
      %99 = arith.addf %93, %98 : vector<128x32xf32>
      %100 = vector.extract_strided_slice %59 {offsets = [3, 0, 1], sizes = [1, 128, 1], strides = [1, 1, 1]} : vector<4x128x4xf32> to vector<1x128x1xf32>
      %101 = vector.shape_cast %100 : vector<1x128x1xf32> to vector<128x1xf32>
      %102 = vector.extract_strided_slice %16 {offsets = [0, 96], sizes = [128, 32], strides = [1, 1]} : vector<128x128xf32> to vector<128x32xf32>
      %103 = vector.broadcast %101 : vector<128x1xf32> to vector<128x32xf32>
      %104 = arith.mulf %103, %102 : vector<128x32xf32>
      %105 = arith.addf %99, %104 : vector<128x32xf32>
      %106 = vector.extract_strided_slice %59 {offsets = [0, 0, 2], sizes = [1, 128, 1], strides = [1, 1, 1]} : vector<4x128x4xf32> to vector<1x128x1xf32>
      %107 = vector.shape_cast %106 : vector<1x128x1xf32> to vector<128x1xf32>
      %108 = vector.extract_strided_slice %16 {offsets = [0, 0], sizes = [128, 32], strides = [1, 1]} : vector<128x128xf32> to vector<128x32xf32>
      %109 = vector.broadcast %107 : vector<128x1xf32> to vector<128x32xf32>
      %110 = arith.mulf %109, %108 : vector<128x32xf32>
      %111 = vector.extract_strided_slice %59 {offsets = [1, 0, 2], sizes = [1, 128, 1], strides = [1, 1, 1]} : vector<4x128x4xf32> to vector<1x128x1xf32>
      %112 = vector.shape_cast %111 : vector<1x128x1xf32> to vector<128x1xf32>
      %113 = vector.extract_strided_slice %16 {offsets = [0, 32], sizes = [128, 32], strides = [1, 1]} : vector<128x128xf32> to vector<128x32xf32>
      %114 = vector.broadcast %112 : vector<128x1xf32> to vector<128x32xf32>
      %115 = arith.mulf %114, %113 : vector<128x32xf32>
      %116 = arith.addf %110, %115 : vector<128x32xf32>
      %117 = vector.extract_strided_slice %59 {offsets = [2, 0, 2], sizes = [1, 128, 1], strides = [1, 1, 1]} : vector<4x128x4xf32> to vector<1x128x1xf32>
      %118 = vector.shape_cast %117 : vector<1x128x1xf32> to vector<128x1xf32>
      %119 = vector.extract_strided_slice %16 {offsets = [0, 64], sizes = [128, 32], strides = [1, 1]} : vector<128x128xf32> to vector<128x32xf32>
      %120 = vector.broadcast %118 : vector<128x1xf32> to vector<128x32xf32>
      %121 = arith.mulf %120, %119 : vector<128x32xf32>
      %122 = arith.addf %116, %121 : vector<128x32xf32>
      %123 = vector.extract_strided_slice %59 {offsets = [3, 0, 2], sizes = [1, 128, 1], strides = [1, 1, 1]} : vector<4x128x4xf32> to vector<1x128x1xf32>
      %124 = vector.shape_cast %123 : vector<1x128x1xf32> to vector<128x1xf32>
      %125 = vector.extract_strided_slice %16 {offsets = [0, 96], sizes = [128, 32], strides = [1, 1]} : vector<128x128xf32> to vector<128x32xf32>
      %126 = vector.broadcast %124 : vector<128x1xf32> to vector<128x32xf32>
      %127 = arith.mulf %126, %125 : vector<128x32xf32>
      %128 = arith.addf %122, %127 : vector<128x32xf32>
      %129 = vector.extract_strided_slice %59 {offsets = [0, 0, 3], sizes = [1, 128, 1], strides = [1, 1, 1]} : vector<4x128x4xf32> to vector<1x128x1xf32>
      %130 = vector.shape_cast %129 : vector<1x128x1xf32> to vector<128x1xf32>
      %131 = vector.extract_strided_slice %16 {offsets = [0, 0], sizes = [128, 32], strides = [1, 1]} : vector<128x128xf32> to vector<128x32xf32>
      %132 = vector.broadcast %130 : vector<128x1xf32> to vector<128x32xf32>
      %133 = arith.mulf %132, %131 : vector<128x32xf32>
      %134 = vector.extract_strided_slice %59 {offsets = [1, 0, 3], sizes = [1, 128, 1], strides = [1, 1, 1]} : vector<4x128x4xf32> to vector<1x128x1xf32>
      %135 = vector.shape_cast %134 : vector<1x128x1xf32> to vector<128x1xf32>
      %136 = vector.extract_strided_slice %16 {offsets = [0, 32], sizes = [128, 32], strides = [1, 1]} : vector<128x128xf32> to vector<128x32xf32>
      %137 = vector.broadcast %135 : vector<128x1xf32> to vector<128x32xf32>
      %138 = arith.mulf %137, %136 : vector<128x32xf32>
      %139 = arith.addf %133, %138 : vector<128x32xf32>
      %140 = vector.extract_strided_slice %59 {offsets = [2, 0, 3], sizes = [1, 128, 1], strides = [1, 1, 1]} : vector<4x128x4xf32> to vector<1x128x1xf32>
      %141 = vector.shape_cast %140 : vector<1x128x1xf32> to vector<128x1xf32>
      %142 = vector.extract_strided_slice %16 {offsets = [0, 64], sizes = [128, 32], strides = [1, 1]} : vector<128x128xf32> to vector<128x32xf32>
      %143 = vector.broadcast %141 : vector<128x1xf32> to vector<128x32xf32>
      %144 = arith.mulf %143, %142 : vector<128x32xf32>
      %145 = arith.addf %139, %144 : vector<128x32xf32>
      %146 = vector.extract_strided_slice %59 {offsets = [3, 0, 3], sizes = [1, 128, 1], strides = [1, 1, 1]} : vector<4x128x4xf32> to vector<1x128x1xf32>
      %147 = vector.shape_cast %146 : vector<1x128x1xf32> to vector<128x1xf32>
      %148 = vector.extract_strided_slice %16 {offsets = [0, 96], sizes = [128, 32], strides = [1, 1]} : vector<128x128xf32> to vector<128x32xf32>
      %149 = vector.broadcast %147 : vector<128x1xf32> to vector<128x32xf32>
      %150 = arith.mulf %149, %148 : vector<128x32xf32>
      %151 = arith.addf %145, %150 : vector<128x32xf32>
      %152 = tpu.concatenate %82, %105, %128, %151 in 1 : vector<128x32xf32>, vector<128x32xf32>, vector<128x32xf32>, vector<128x32xf32> -> vector<128x128xf32>
      %c0_32 = arith.constant 0 : index
      %c0_33 = arith.constant 0 : index
      %153 = vector.load %arg8[%c0_32, %c0_33] : memref<128x128xf32, #tpu.memory_space<vmem>>, vector<128x128xf32>
      tpu.vector_store %arg8[%c0_32, %c0_33], %152 {strides = array<i32>} : memref<128x128xf32, #tpu.memory_space<vmem>>, vector<128x128xf32>,
    } else {
    }
    return
  }
  func.func @transform_0(%arg0: i32, %arg1: i32, %arg2: memref<2x1xi32, #tpu.memory_space<smem>>, %arg3: memref<2xi32, #tpu.memory_space<smem>>) -> (i32, i32, i32) {
    %0 = arith.index_cast %arg0 : i32 to index
    %1 = arith.index_cast %arg1 : i32 to index
    %2 = memref.load %arg2[%0, %1] : memref<2x1xi32, #tpu.memory_space<smem>>
    %c0_i32 = arith.constant 0 : i32
    %c0_i32_0 = arith.constant 0 : i32
    return %c0_i32, %arg0, %2 : i32, i32, i32
  }
  func.func @transform_1(%arg0: i32, %arg1: i32, %arg2: memref<2x1xi32, #tpu.memory_space<smem>>, %arg3: memref<2xi32, #tpu.memory_space<smem>>) -> (i32, i32) {
    %0 = arith.index_cast %arg0 : i32 to index
    %1 = arith.index_cast %arg1 : i32 to index
    %2 = memref.load %arg2[%0, %1] : memref<2x1xi32, #tpu.memory_space<smem>>
    %c0_i32 = arith.constant 0 : i32
    %c0_i32_0 = arith.constant 0 : i32
    return %2, %c0_i32 : i32, i32
  }
  func.func @transform_2(%arg0: i32, %arg1: i32, %arg2: memref<2x1xi32, #tpu.memory_space<smem>>, %arg3: memref<2xi32, #tpu.memory_space<smem>>) -> (i32, i32) {
    %c0_i32 = arith.constant 0 : i32
    %c0_i32_0 = arith.constant 0 : i32
    %c0_i32_1 = arith.constant 0 : i32
    return %c0_i32, %c0_i32_0 : i32, i32
  }
  func.func @transform_3(%arg0: i32, %arg1: i32, %arg2: memref<2x1xi32, #tpu.memory_space<smem>>, %arg3: memref<2xi32, #tpu.memory_space<smem>>) -> (i32, i32) {
    %c0_i32 = arith.constant 0 : i32
    %c0_i32_0 = arith.constant 0 : i32
    %c0_i32_1 = arith.constant 0 : i32
    return %c0_i32, %c0_i32_0 : i32, i32
  }
  func.func @transform_4(%arg0: i32, %arg1: i32, %arg2: memref<2x1xi32, #tpu.memory_space<smem>>, %arg3: memref<2xi32, #tpu.memory_space<smem>>) -> (i32, i32) {
    %c0_i32 = arith.constant 0 : i32
    %c0_i32_0 = arith.constant 0 : i32
    return %arg0, %c0_i32 : i32, i32
  }
}

</mosaic_0001>

<llo_original>
// kernel: dmcr_forward.2
$region0: #{dmcr_forward.2}
  #allocation0 [shape = 'u32[]', space=smem, size = 0x4, offset = 0x4, fixed_abs, tag = 'smem constant byte address 0x4 - core index']
  #allocation1 [shape = 'u32[144,128]{1,0:T(1,128)}', space=vmem, size = 0x12000, scoped, tag = 'internal scratch']
  #allocation2 [shape = 'f32[128,128]{1,0:T(8,128)}', space=vmem, size = 0x10000, scoped, tag = 'scratch operand']
  #allocation3 [shape = 's32[1]{0}', space=sflag, size = 0x4, scoped, tag = 'scoped memory for dmcr_forward.2']
  #allocation4 [shape = 'u8[1024]{0}', space=smem, size = 0x400, scoped, tag = 'prefetched SMEM operand 0']
  #allocation5 [shape = 'u8[512]{0}', space=smem, size = 0x200, scoped, tag = 'prefetched SMEM operand 1']
  %s0 = inlined_call_operand.vmem [shape: s32[2,1], index: 0, kind: input, shape index: {}]
  %s1 = inlined_call_operand.vmem [shape: s32[2], index: 1, kind: input, shape index: {}]
  %s2 = inlined_call_operand.vmem [shape: bf16[4,256,256], index: 2, kind: input, shape index: {}]
  %s3 = inlined_call_operand.vmem [shape: bf16[256,128], index: 3, kind: input, shape index: {}]
  %s4 = inlined_call_operand.vmem [shape: bf16[32,128], index: 4, kind: input, shape index: {}]
  %s5 = inlined_call_operand.vmem [shape: bf16[128,4], index: 5, kind: input, shape index: {}]
  %s6 = inlined_call_operand.vmem [shape: f32[256,128], index: 6, kind: output, shape index: {}]
  %s7 = sld [smem:[#allocation0]]
  $region99: #{dmcr_forward.2} parent=0
    _
  %s9 = ssub.s32 1, %s7
  %s10 = scalar_select 0, %s9, %s7
  %s11 = sshll.u32 %s0, 4
  %s12 = int_to_ptr.vmem [resolvable:$true] %s11
  %14 = dma.vmem_to_smem %s12, 32, [#allocation4], [#allocation3]
  %s15 = sshll.u32 %s1, 4
  %s16 = int_to_ptr.vmem [resolvable:$true] %s15
  %18 = dma.vmem_to_smem %s16, 16, [#allocation5], [#allocation3]
  %19 = dma.done [#allocation3], 48
  %20 = sfence
  $region1: #{dmcr_forward.2} parent=0
    #allocation6 [shape = 'u8[524288]{0}', space=vmem, size = 0x80000, scoped, tag = 'input window, operand 2']
    loop: start=0, step=1, limit=4
    $region2: #{dmcr_forward.2} parent=1 // loop_pre_header
      _
    $region3: #{dmcr_forward.2} parent=1 // loop_header
      %s22 = sphi 0, %s26
      %p23 = scmp.ge.s32.totalorder %s22, 4
      %s29 = sphi 0, %s41
      %s30 = sphi 0, %s37
      %s31 = sphi 0, %s29
      %s32 = sphi 0, %s30
      %s33 = sphi 0, %s31
      %s34 = sphi 0, %s32
      %s62 = sphi 0, %s64
      %s65 = sphi 0, %s62
      %s66 = sphi 0, %s65
      %s82 = sphi 0, %s66
      %s104 = sphi 0, %s106
      %s107 = sphi 0, %s104
      %s108 = sphi 0, %s107
      %s124 = sphi 0, %s108
      %s128 = sphi 0, %s128
      %s130 = sphi 0, %s128
      %s131 = sphi 0, %s130
      %s145 = sphi 0, %s131
      %s149 = sphi 0, %s149
      %s151 = sphi 0, %s149
      %s152 = sphi 0, %s151
      %s166 = sphi 0, %s152
      %s172 = sphi 0, %s174
      %s175 = sphi 0, %s172
      %s176 = sphi 0, %s175
      %s192 = sphi 0, %s176
    $region4: #{dmcr_forward.2} parent=1 // loop_header_branch
      %25 = sbr.rel (%p23) target = $region8
    $region5: #{dmcr_forward.2} parent=1 // loop_body
      %s27 = ssub.s32 %s22, 1
      %s28 = ssub.s32 %s22, 2
      %s35 = sadd.s32 1, %s30
      %p36 = scmp.ge.s32.totalorder %s35, 1
      %s37 = scalar_select %p36, 0, %s35
      %s38 = sadd.s32 1, %s29
      %s39 = scalar_select %p36, %s38, %s29
      %p40 = scmp.ge.s32.totalorder %s39, 2
      %s41 = scalar_select %p40, 0, %s39
      %s42 = sshra.s32 %s30, 7
      %s43 = sand.u32 %s30, 127
      %s44 = sadd.s32 %s42, %s29
      %s45 = smul.u32 %s44, 128
      %s46 = sshra.s32 %s30, 7
      %s47 = sand.u32 %s30, 127
      %s48 = sadd.s32 %s45, %s47
      %s49 = sld [smem:[#allocation4 + %s48]]
      %s50 = sshra.s32 %s37, 7
      %s51 = sand.u32 %s37, 127
      %s52 = sadd.s32 %s50, %s41
      %s53 = smul.u32 %s52, 128
      %s54 = sshra.s32 %s37, 7
      %s55 = sand.u32 %s37, 127
      %s56 = sadd.s32 %s53, %s55
      %s57 = sld [smem:[#allocation4 + %s56]]
      %s58 = ssub.s32 %s29, %s41
      %s59 = ssub.s32 %s49, %s57
      %s60 = sor.u32 %s58, %s59
      %p61 = scmp.eq.s32.totalorder %s60, 0
      %s63 = sadd.s32 %s62, 1
      %s64 = scalar_select %p61, %s62, %s63
      %p67 = pneg %p61
      %p68 = scmp.eq.s32.totalorder %s22, 1
      %p69 = por %p67, %p68
      %p70 = scmp.ne.s32.totalorder %s62, %s65
      %p71 = scmp.eq.s32.totalorder %s22, 0
      %p72 = por %p70, %p71
      %p73 = scmp.ne.s32.totalorder %s62, %s65
      %p74 = scmp.eq.s32.totalorder %s27, 1
      %p75 = por %p73, %p74
      %p76 = scmp.ne.s32.totalorder %s65, %s66
      %p77 = scmp.eq.s32.totalorder %s27, 0
      %p78 = por %p76, %p77
      %p79 = scmp.ne.s32.totalorder %s65, %s66
      %p80 = scmp.eq.s32.totalorder %s28, 1
      %p81 = por %p79, %p80
      %p83 = scmp.ne.s32.totalorder %s66, %s82
      %p84 = scmp.eq.s32.totalorder %s28, 0
      %p85 = por %p83, %p84
      %s86 = sshra.s32 %s30, 7
      %s87 = sand.u32 %s30, 127
      %s88 = sadd.s32 %s86, %s29
      %s89 = smul.u32 %s88, 128
      %s90 = sshra.s32 %s30, 7
      %s91 = sand.u32 %s30, 127
      %s92 = sadd.s32 %s89, %s91
      %s93 = sld [smem:[#allocation4 + %s92]]
      %s94 = sshra.s32 %s37, 7
      %s95 = sand.u32 %s37, 127
      %s96 = sadd.s32 %s94, %s41
      %s97 = smul.u32 %s96, 128
      %s98 = sshra.s32 %s37, 7
      %s99 = sand.u32 %s37, 127
      %s100 = sadd.s32 %s97, %s99
      %s101 = sld [smem:[#allocation4 + %s100]]
      %s102 = ssub.s32 %s93, %s101
      %p103 = scmp.eq.s32.totalorder %s102, 0
      %s105 = sadd.s32 %s104, 1
      %s106 = scalar_select %p103, %s104, %s105
      %p109 = pneg %p103
      %p110 = scmp.eq.s32.totalorder %s22, 1
      %p111 = por %p109, %p110
      %p112 = scmp.ne.s32.totalorder %s104, %s107
      %p113 = scmp.eq.s32.totalorder %s22, 0
      %p114 = por %p112, %p113
      %p115 = scmp.ne.s32.totalorder %s104, %s107
      %p116 = scmp.eq.s32.totalorder %s27, 1
      %p117 = por %p115, %p116
      %p118 = scmp.ne.s32.totalorder %s107, %s108
      %p119 = scmp.eq.s32.totalorder %s27, 0
      %p120 = por %p118, %p119
      %p121 = scmp.ne.s32.totalorder %s107, %s108
      %p122 = scmp.eq.s32.totalorder %s28, 1
      %p123 = por %p121, %p122
      %p125 = scmp.ne.s32.totalorder %s108, %s124
      %p126 = scmp.eq.s32.totalorder %s28, 0
      %p127 = por %p125, %p126
      %s129 = sadd.s32 %s128, 1
      %p132 = scmp.eq.s32.totalorder %s22, 1
      %p133 = scmp.ne.s32.totalorder %s128, %s130
      %p134 = scmp.eq.s32.totalorder %s22, 0
      %p135 = por %p133, %p134
      %p136 = scmp.ne.s32.totalorder %s128, %s130
      %p137 = scmp.eq.s32.totalorder %s27, 1
      %p138 = por %p136, %p137
      %p139 = scmp.ne.s32.totalorder %s130, %s131
      %p140 = scmp.eq.s32.totalorder %s27, 0
      %p141 = por %p139, %p140
      %p142 = scmp.ne.s32.totalorder %s130, %s131
      %p143 = scmp.eq.s32.totalorder %s28, 1
      %p144 = por %p142, %p143
      %p146 = scmp.ne.s32.totalorder %s131, %s145
      %p147 = scmp.eq.s32.totalorder %s28, 0
      %p148 = por %p146, %p147
      %s150 = sadd.s32 %s149, 1
      %p153 = scmp.eq.s32.totalorder %s22, 1
      %p154 = scmp.ne.s32.totalorder %s149, %s151
      %p155 = scmp.eq.s32.totalorder %s22, 0
      %p156 = por %p154, %p155
      %p157 = scmp.ne.s32.totalorder %s149, %s151
      %p158 = scmp.eq.s32.totalorder %s27, 1
      %p159 = por %p157, %p158
      %p160 = scmp.ne.s32.totalorder %s151, %s152
      %p161 = scmp.eq.s32.totalorder %s27, 0
      %p162 = por %p160, %p161
      %p163 = scmp.ne.s32.totalorder %s151, %s152
      %p164 = scmp.eq.s32.totalorder %s28, 1
      %p165 = por %p163, %p164
      %p167 = scmp.ne.s32.totalorder %s152, %s166
      %p168 = scmp.eq.s32.totalorder %s28, 0
      %p169 = por %p167, %p168
      %s170 = ssub.s32 %s29, %s41
      %p171 = scmp.eq.s32.totalorder %s170, 0
      %s173 = sadd.s32 %s172, 1
      %s174 = scalar_select %p171, %s172, %s173
      %p177 = pneg %p171
      %p178 = scmp.eq.s32.totalorder %s22, 1
      %p179 = por %p177, %p178
      %p180 = scmp.ne.s32.totalorder %s172, %s175
      %p181 = scmp.eq.s32.totalorder %s22, 0
      %p182 = por %p180, %p181
      %p183 = scmp.ne.s32.totalorder %s172, %s175
      %p184 = scmp.eq.s32.totalorder %s27, 1
      %p185 = por %p183, %p184
      %p186 = scmp.ne.s32.totalorder %s175, %s176
      %p187 = scmp.eq.s32.totalorder %s27, 0
      %p188 = por %p186, %p187
      %p189 = scmp.ne.s32.totalorder %s175, %s176
      %p190 = scmp.eq.s32.totalorder %s28, 1
      %p191 = por %p189, %p190
      %p193 = scmp.ne.s32.totalorder %s176, %s192
      %p194 = scmp.eq.s32.totalorder %s28, 0
      %p195 = por %p193, %p194
      %p196 = scmp.le.s32.totalorder 1, %s22
      %p197 = scmp.lt.s32.totalorder %s22, 3
      %p198 = pnand %p196, %p197
      %p199 = pneg %p198
      // Predicated region
      $region9: #{dmcr_forward.2} parent=5 // pred_check
        _
      $region10: #{dmcr_forward.2} parent=5 // pred_check_branch
        %201 = sbr.rel (%p198) target = $region12
      $region11: #{dmcr_forward.2} parent=5 // pred_region
        %s202 = ssub.s32 %s22, 1
        // Predicated region
        $region13: #{dmcr_forward.2} parent=11 // pred_check
          %p203 = pneg %p141
        $region14: #{dmcr_forward.2} parent=11 // pred_check_branch
          %205 = sbr.rel (%p203) target = $region16
        $region15: #{dmcr_forward.2} parent=11 // pred_region
          _
        $region16: #{dmcr_forward.2} parent=11 // pred_fallthru
          _
        // Predicated region
        $region17: #{dmcr_forward.2} parent=11 // pred_check
          %p206 = pneg %p162
        $region18: #{dmcr_forward.2} parent=11 // pred_check_branch
          %208 = sbr.rel (%p206) target = $region20
        $region19: #{dmcr_forward.2} parent=11 // pred_region
          _
        $region20: #{dmcr_forward.2} parent=11 // pred_fallthru
          _
      $region12: #{dmcr_forward.2} parent=5 // pred_fallthru
        _
      %p209 = scmp.lt.s32.totalorder %s22, 2
      // Predicated region
      $region21: #{dmcr_forward.2} parent=5 // pred_check
        %p210 = pneg %p209
      $region22: #{dmcr_forward.2} parent=5 // pred_check_branch
        %212 = sbr.rel (%p210) target = $region24
      $region23: #{dmcr_forward.2} parent=5 // pred_region
        // Predicated region
        $region25: #{dmcr_forward.2} parent=23 // pred_check
          %p213 = pneg %p72
        $region26: #{dmcr_forward.2} parent=23 // pred_check_branch
          %215 = sbr.rel (%p213) target = $region28
        $region27: #{dmcr_forward.2} parent=23 // pred_region
          %s216 = sand.u32 %s62, 1
          %s217 = sand.u32 %s62, 1
          %s218 = smul.addr %s217, 512
          %s219 = scalar_lea.vmem [#allocation6], %s218
          %s220 = sshra.s32 %s30, 7
          %s221 = sand.u32 %s30, 127
          %s222 = sadd.s32 %s220, %s29
          %s223 = smul.u32 %s222, 128
          %s224 = sshra.s32 %s30, 7
          %s225 = sand.u32 %s30, 127
          %s226 = sadd.s32 %s223, %s225
          %s227 = sld [smem:[#allocation4 + %s226]]
          %s228 = smul.u32 16, %s29
          %s229 = smul.u32 2, %s227
          %s230 = smul.addr %s228, 2
          %s231 = sadd.s32 %s229, %s230
          %s232 = smul.addr %s231, 4
          %s233 = scalar_lea.vmem %s2, %s232
          // Predicated region
          $region29: #{dmcr_forward.2} parent=27 // pred_check
            _
          $region30: #{dmcr_forward.2} parent=27 // pred_check_branch
            %235 = sbr.rel (0) target = $region32
          $region31: #{dmcr_forward.2} parent=27 // pred_region
            // Predicated region
            $region33: #{dmcr_forward.2} parent=31 // pred_check
              _
            $region34: #{dmcr_forward.2} parent=31 // pred_check_branch
              %237 = sbr.rel (0) target = $region36
            $region35: #{dmcr_forward.2} parent=31 // pred_region
              // Predicated region
              $region48: #{dmcr_forward.2} parent=35 // pred_check
                _
              $region49: #{dmcr_forward.2} parent=35 // pred_check_branch
                %378 = sbr.rel (0) target = $region51
              $region50: #{dmcr_forward.2} parent=35 // pred_region
                loop: start=0, step=1, limit=1
                $region52: #{dmcr_forward.2} parent=50 // loop_pre_header
                  _
                $region53: #{dmcr_forward.2} parent=50 // loop_header
                  %s380 = sphi 0, %s384
                  %p381 = scmp.ge.s32.totalorder %s380, 1
                  %s385 = sphi %s233, %s233
                  %s386 = sphi %s219, %s219
                $region54: #{dmcr_forward.2} parent=50 // loop_header_branch
                  %383 = sbr.rel (%p381) target = $region58
                $region55: #{dmcr_forward.2} parent=50 // loop_body
                  %v387 = vld [vmem:[%s385] sm:$0xff]
                  %388 = vst [vmem:[%s386] sm:$0xff] %v387
                  %v389 = vld [vmem:[%s385 + $0x8] sm:$0xff]
                  %390 = vst [vmem:[%s386 + $0x8] sm:$0xff] %v389
                  %v391 = vld [vmem:[%s385 + $0x10] sm:$0xff]
                  %392 = vst [vmem:[%s386 + $0x10] sm:$0xff] %v391
                  %v393 = vld [vmem:[%s385 + $0x18] sm:$0xff]
                  %394 = vst [vmem:[%s386 + $0x18] sm:$0xff] %v393
                  %v395 = vld [vmem:[%s385 + $0x20] sm:$0xff]
                  %396 = vst [vmem:[%s386 + $0x20] sm:$0xff] %v395
                  %v397 = vld [vmem:[%s385 + $0x28] sm:$0xff]
                  %398 = vst [vmem:[%s386 + $0x28] sm:$0xff] %v397
                  %v399 = vld [vmem:[%s385 + $0x30] sm:$0xff]
                  %400 = vst [vmem:[%s386 + $0x30] sm:$0xff] %v399
                  %v401 = vld [vmem:[%s385 + $0x38] sm:$0xff]
                  %402 = vst [vmem:[%s386 + $0x38] sm:$0xff] %v401
                  %v403 = vld [vmem:[%s385 + $0x40] sm:$0xff]
                  %404 = vst [vmem:[%s386 + $0x40] sm:$0xff] %v403
                  %v405 = vld [vmem:[%s385 + $0x48] sm:$0xff]
                  %406 = vst [vmem:[%s386 + $0x48] sm:$0xff] %v405
                  %v407 = vld [vmem:[%s385 + $0x50] sm:$0xff]
                  %408 = vst [vmem:[%s386 + $0x50] sm:$0xff] %v407
                  %v409 = vld [vmem:[%s385 + $0x58] sm:$0xff]
                  %410 = vst [vmem:[%s386 + $0x58] sm:$0xff] %v409
                  %v411 = vld [vmem:[%s385 + $0x60] sm:$0xff]
                  %412 = vst [vmem:[%s386 + $0x60] sm:$0xff] %v411
                  %v413 = vld [vmem:[%s385 + $0x68] sm:$0xff]
                  %414 = vst [vmem:[%s386 + $0x68] sm:$0xff] %v413
                  %v415 = vld [vmem:[%s385 + $0x70] sm:$0xff]
                  %416 = vst [vmem:[%s386 + $0x70] sm:$0xff] %v415
                  %v417 = vld [vmem:[%s385 + $0x78] sm:$0xff]
                  %418 = vst [vmem:[%s386 + $0x78] sm:$0xff] %v417
                  %v419 = vld [vmem:[%s385 + $0x100] sm:$0xff]
                  %420 = vst [vmem:[%s386 + $0x80] sm:$0xff] %v419
                  %v421 = vld [vmem:[%s385 + $0x108] sm:$0xff]
                  %422 = vst [vmem:[%s386 + $0x88] sm:$0xff] %v421
                  %v423 = vld [vmem:[%s385 + $0x110] sm:$0xff]
                  %424 = vst [vmem:[%s386 + $0x90] sm:$0xff] %v423
                  %v425 = vld [vmem:[%s385 + $0x118] sm:$0xff]
                  %426 = vst [vmem:[%s386 + $0x98] sm:$0xff] %v425
                  %v427 = vld [vmem:[%s385 + $0x120] sm:$0xff]
                  %428 = vst [vmem:[%s386 + $0xa0] sm:$0xff] %v427
                  %v429 = vld [vmem:[%s385 + $0x128] sm:$0xff]
                  %430 = vst [vmem:[%s386 + $0xa8] sm:$0xff] %v429
                  %v431 = vld [vmem:[%s385 + $0x130] sm:$0xff]
                  %432 = vst [vmem:[%s386 + $0xb0] sm:$0xff] %v431
                  %v433 = vld [vmem:[%s385 + $0x138] sm:$0xff]
                  %434 = vst [vmem:[%s386 + $0xb8] sm:$0xff] %v433
                  %v435 = vld [vmem:[%s385 + $0x140] sm:$0xff]
                  %436 = vst [vmem:[%s386 + $0xc0] sm:$0xff] %v435
                  %v437 = vld [vmem:[%s385 + $0x148] sm:$0xff]
                  %438 = vst [vmem:[%s386 + $0xc8] sm:$0xff] %v437
                  %v439 = vld [vmem:[%s385 + $0x150] sm:$0xff]
                  %440 = vst [vmem:[%s386 + $0xd0] sm:$0xff] %v439
                  %v441 = vld [vmem:[%s385 + $0x158] sm:$0xff]
                  %442 = vst [vmem:[%s386 + $0xd8] sm:$0xff] %v441
                  %v443 = vld [vmem:[%s385 + $0x160] sm:$0xff]
                  %444 = vst [vmem:[%s386 + $0xe0] sm:$0xff] %v443
                  %v445 = vld [vmem:[%s385 + $0x168] sm:$0xff]
                  %446 = vst [vmem:[%s386 + $0xe8] sm:$0xff] %v445
                  %v447 = vld [vmem:[%s385 + $0x170] sm:$0xff]
                  %448 = vst [vmem:[%s386 + $0xf0] sm:$0xff] %v447
                  %v449 = vld [vmem:[%s385 + $0x178] sm:$0xff]
                  %450 = vst [vmem:[%s386 + $0xf8] sm:$0xff] %v449
                  %v451 = vld [vmem:[%s385 + $0x200] sm:$0xff]
                  %452 = vst [vmem:[%s386 + $0x100] sm:$0xff] %v451
                  %v453 = vld [vmem:[%s385 + $0x208] sm:$0xff]
                  %454 = vst [vmem:[%s386 + $0x108] sm:$0xff] %v453
                  %v455 = vld [vmem:[%s385 + $0x210] sm:$0xff]
                  %456 = vst [vmem:[%s386 + $0x110] sm:$0xff] %v455
                  %v457 = vld [vmem:[%s385 + $0x218] sm:$0xff]
                  %458 = vst [vmem:[%s386 + $0x118] sm:$0xff] %v457
                  %v459 = vld [vmem:[%s385 + $0x220] sm:$0xff]
                  %460 = vst [vmem:[%s386 + $0x120] sm:$0xff] %v459
                  %v461 = vld [vmem:[%s385 + $0x228] sm:$0xff]
                  %462 = vst [vmem:[%s386 + $0x128] sm:$0xff] %v461
                  %v463 = vld [vmem:[%s385 + $0x230] sm:$0xff]
                  %464 = vst [vmem:[%s386 + $0x130] sm:$0xff] %v463
                  %v465 = vld [vmem:[%s385 + $0x238] sm:$0xff]
                  %466 = vst [vmem:[%s386 + $0x138] sm:$0xff] %v465
                  %v467 = vld [vmem:[%s385 + $0x240] sm:$0xff]
                  %468 = vst [vmem:[%s386 + $0x140] sm:$0xff] %v467
                  %v469 = vld [vmem:[%s385 + $0x248] sm:$0xff]
                  %470 = vst [vmem:[%s386 + $0x148] sm:$0xff] %v469
                  %v471 = vld [vmem:[%s385 + $0x250] sm:$0xff]
                  %472 = vst [vmem:[%s386 + $0x150] sm:$0xff] %v471
                  %v473 = vld [vmem:[%s385 + $0x258] sm:$0xff]
                  %474 = vst [vmem:[%s386 + $0x158] sm:$0xff] %v473
                  %v475 = vld [vmem:[%s385 + $0x260] sm:$0xff]
                  %476 = vst [vmem:[%s386 + $0x160] sm:$0xff] %v475
                  %v477 = vld [vmem:[%s385 + $0x268] sm:$0xff]
                  %478 = vst [vmem:[%s386 + $0x168] sm:$0xff] %v477
                  %v479 = vld [vmem:[%s385 + $0x270] sm:$0xff]
                  %480 = vst [vmem:[%s386 + $0x170] sm:$0xff] %v479
                  %v481 = vld [vmem:[%s385 + $0x278] sm:$0xff]
                  %482 = vst [vmem:[%s386 + $0x178] sm:$0xff] %v481
                  %v483 = vld [vmem:[%s385 + $0x300] sm:$0xff]
                  %484 = vst [vmem:[%s386 + $0x180] sm:$0xff] %v483
                  %v485 = vld [vmem:[%s385 + $0x308] sm:$0xff]
                  %486 = vst [vmem:[%s386 + $0x188] sm:$0xff] %v485
                  %v487 = vld [vmem:[%s385 + $0x310] sm:$0xff]
                  %488 = vst [vmem:[%s386 + $0x190] sm:$0xff] %v487
                  %v489 = vld [vmem:[%s385 + $0x318] sm:$0xff]
                  %490 = vst [vmem:[%s386 + $0x198] sm:$0xff] %v489
                  %v491 = vld [vmem:[%s385 + $0x320] sm:$0xff]
                  %492 = vst [vmem:[%s386 + $0x1a0] sm:$0xff] %v491
                  %v493 = vld [vmem:[%s385 + $0x328] sm:$0xff]
                  %494 = vst [vmem:[%s386 + $0x1a8] sm:$0xff] %v493
                  %v495 = vld [vmem:[%s385 + $0x330] sm:$0xff]
                  %496 = vst [vmem:[%s386 + $0x1b0] sm:$0xff] %v495
                  %v497 = vld [vmem:[%s385 + $0x338] sm:$0xff]
                  %498 = vst [vmem:[%s386 + $0x1b8] sm:$0xff] %v497
                  %v499 = vld [vmem:[%s385 + $0x340] sm:$0xff]
                  %500 = vst [vmem:[%s386 + $0x1c0] sm:$0xff] %v499
                  %v501 = vld [vmem:[%s385 + $0x348] sm:$0xff]
                  %502 = vst [vmem:[%s386 + $0x1c8] sm:$0xff] %v501
                  %v503 = vld [vmem:[%s385 + $0x350] sm:$0xff]
                  %504 = vst [vmem:[%s386 + $0x1d0] sm:$0xff] %v503
                  %v505 = vld [vmem:[%s385 + $0x358] sm:$0xff]
                  %506 = vst [vmem:[%s386 + $0x1d8] sm:$0xff] %v505
                  %v507 = vld [vmem:[%s385 + $0x360] sm:$0xff]
                  %508 = vst [vmem:[%s386 + $0x1e0] sm:$0xff] %v507
                  %v509 = vld [vmem:[%s385 + $0x368] sm:$0xff]
                  %510 = vst [vmem:[%s386 + $0x1e8] sm:$0xff] %v509
                  %v511 = vld [vmem:[%s385 + $0x370] sm:$0xff]
                  %512 = vst [vmem:[%s386 + $0x1f0] sm:$0xff] %v511
                  %v513 = vld [vmem:[%s385 + $0x378] sm:$0xff]
                  %514 = vst [vmem:[%s386 + $0x1f8] sm:$0xff] %v513
                $region56: #{dmcr_forward.2} parent=50 // loop_footer
                  %s384 = sadd.s32 1, %s380
                $region57: #{dmcr_forward.2} parent=50 // loop_footer_branch
                  %379 = sbr.rel target = $region53
                $region58: #{dmcr_forward.2} parent=50 // loop_exit
                  _
              $region51: #{dmcr_forward.2} parent=35 // pred_fallthru
                _
              // Predicated region
              $region59: #{dmcr_forward.2} parent=35 // pred_check
                _
              $region60: #{dmcr_forward.2} parent=35 // pred_check_branch
                %516 = sbr.rel target = $region62
              $region61: #{dmcr_forward.2} parent=35 // pred_region
                _
              $region62: #{dmcr_forward.2} parent=35 // pred_fallthru
                _
            $region36: #{dmcr_forward.2} parent=31 // pred_fallthru
              _
            // Predicated region
            $region37: #{dmcr_forward.2} parent=31 // pred_check
              _
            $region38: #{dmcr_forward.2} parent=31 // pred_check_branch
              %239 = sbr.rel target = $region40
            $region39: #{dmcr_forward.2} parent=31 // pred_region
              loop: start=0, step=1, limit=1
              $region41: #{dmcr_forward.2} parent=39 // loop_pre_header
                _
              $region42: #{dmcr_forward.2} parent=39 // loop_header
                %s242 = sphi 0, %s246
                %p243 = scmp.ge.s32.totalorder %s242, 1
                %s247 = sphi %s233, %s233
                %s248 = sphi %s219, %s219
              $region43: #{dmcr_forward.2} parent=39 // loop_header_branch
                %245 = sbr.rel (%p243) target = $region47
              $region44: #{dmcr_forward.2} parent=39 // loop_body
                %v249 = vld [vmem:[%s247] sm:$0xff]
                %250 = vst [vmem:[%s248] sm:$0xff] %v249
                %v251 = vld [vmem:[%s247 + $0x8] sm:$0xff]
                %252 = vst [vmem:[%s248 + $0x8] sm:$0xff] %v251
                %v253 = vld [vmem:[%s247 + $0x10] sm:$0xff]
                %254 = vst [vmem:[%s248 + $0x10] sm:$0xff] %v253
                %v255 = vld [vmem:[%s247 + $0x18] sm:$0xff]
                %256 = vst [vmem:[%s248 + $0x18] sm:$0xff] %v255
                %v257 = vld [vmem:[%s247 + $0x20] sm:$0xff]
                %258 = vst [vmem:[%s248 + $0x20] sm:$0xff] %v257
                %v259 = vld [vmem:[%s247 + $0x28] sm:$0xff]
                %260 = vst [vmem:[%s248 + $0x28] sm:$0xff] %v259
                %v261 = vld [vmem:[%s247 + $0x30] sm:$0xff]
                %262 = vst [vmem:[%s248 + $0x30] sm:$0xff] %v261
                %v263 = vld [vmem:[%s247 + $0x38] sm:$0xff]
                %264 = vst [vmem:[%s248 + $0x38] sm:$0xff] %v263
                %v265 = vld [vmem:[%s247 + $0x40] sm:$0xff]
                %266 = vst [vmem:[%s248 + $0x40] sm:$0xff] %v265
                %v267 = vld [vmem:[%s247 + $0x48] sm:$0xff]
                %268 = vst [vmem:[%s248 + $0x48] sm:$0xff] %v267
                %v269 = vld [vmem:[%s247 + $0x50] sm:$0xff]
                %270 = vst [vmem:[%s248 + $0x50] sm:$0xff] %v269
                %v271 = vld [vmem:[%s247 + $0x58] sm:$0xff]
                %272 = vst [vmem:[%s248 + $0x58] sm:$0xff] %v271
                %v273 = vld [vmem:[%s247 + $0x60] sm:$0xff]
                %274 = vst [vmem:[%s248 + $0x60] sm:$0xff] %v273
                %v275 = vld [vmem:[%s247 + $0x68] sm:$0xff]
                %276 = vst [vmem:[%s248 + $0x68] sm:$0xff] %v275
                %v277 = vld [vmem:[%s247 + $0x70] sm:$0xff]
                %278 = vst [vmem:[%s248 + $0x70] sm:$0xff] %v277
                %v279 = vld [vmem:[%s247 + $0x78] sm:$0xff]
                %280 = vst [vmem:[%s248 + $0x78] sm:$0xff] %v279
                %v281 = vld [vmem:[%s247 + $0x100] sm:$0xff]
                %282 = vst [vmem:[%s248 + $0x80] sm:$0xff] %v281
                %v283 = vld [vmem:[%s247 + $0x108] sm:$0xff]
                %284 = vst [vmem:[%s248 + $0x88] sm:$0xff] %v283
                %v285 = vld [vmem:[%s247 + $0x110] sm:$0xff]
                %286 = vst [vmem:[%s248 + $0x90] sm:$0xff] %v285
                %v287 = vld [vmem:[%s247 + $0x118] sm:$0xff]
                %288 = vst [vmem:[%s248 + $0x98] sm:$0xff] %v287
                %v289 = vld [vmem:[%s247 + $0x120] sm:$0xff]
                %290 = vst [vmem:[%s248 + $0xa0] sm:$0xff] %v289
                %v291 = vld [vmem:[%s247 + $0x128] sm:$0xff]
                %292 = vst [vmem:[%s248 + $0xa8] sm:$0xff] %v291
                %v293 = vld [vmem:[%s247 + $0x130] sm:$0xff]
                %294 = vst [vmem:[%s248 + $0xb0] sm:$0xff] %v293
                %v295 = vld [vmem:[%s247 + $0x138] sm:$0xff]
                %296 = vst [vmem:[%s248 + $0xb8] sm:$0xff] %v295
                %v297 = vld [vmem:[%s247 + $0x140] sm:$0xff]
                %298 = vst [vmem:[%s248 + $0xc0] sm:$0xff] %v297
                %v299 = vld [vmem:[%s247 + $0x148] sm:$0xff]
                %300 = vst [vmem:[%s248 + $0xc8] sm:$0xff] %v299
                %v301 = vld [vmem:[%s247 + $0x150] sm:$0xff]
                %302 = vst [vmem:[%s248 + $0xd0] sm:$0xff] %v301
                %v303 = vld [vmem:[%s247 + $0x158] sm:$0xff]
                %304 = vst [vmem:[%s248 + $0xd8] sm:$0xff] %v303
                %v305 = vld [vmem:[%s247 + $0x160] sm:$0xff]
                %306 = vst [vmem:[%s248 + $0xe0] sm:$0xff] %v305
                %v307 = vld [vmem:[%s247 + $0x168] sm:$0xff]
                %308 = vst [vmem:[%s248 + $0xe8] sm:$0xff] %v307
                %v309 = vld [vmem:[%s247 + $0x170] sm:$0xff]
                %310 = vst [vmem:[%s248 + $0xf0] sm:$0xff] %v309
                %v311 = vld [vmem:[%s247 + $0x178] sm:$0xff]
                %312 = vst [vmem:[%s248 + $0xf8] sm:$0xff] %v311
                %v313 = vld [vmem:[%s247 + $0x200] sm:$0xff]
                %314 = vst [vmem:[%s248 + $0x100] sm:$0xff] %v313
                %v315 = vld [vmem:[%s247 + $0x208] sm:$0xff]
                %316 = vst [vmem:[%s248 + $0x108] sm:$0xff] %v315
                %v317 = vld [vmem:[%s247 + $0x210] sm:$0xff]
                %318 = vst [vmem:[%s248 + $0x110] sm:$0xff] %v317
                %v319 = vld [vmem:[%s247 + $0x218] sm:$0xff]
                %320 = vst [vmem:[%s248 + $0x118] sm:$0xff] %v319
                %v321 = vld [vmem:[%s247 + $0x220] sm:$0xff]
                %322 = vst [vmem:[%s248 + $0x120] sm:$0xff] %v321
                %v323 = vld [vmem:[%s247 + $0x228] sm:$0xff]
                %324 = vst [vmem:[%s248 + $0x128] sm:$0xff] %v323
                %v325 = vld [vmem:[%s247 + $0x230] sm:$0xff]
                %326 = vst [vmem:[%s248 + $0x130] sm:$0xff] %v325
                %v327 = vld [vmem:[%s247 + $0x238] sm:$0xff]
                %328 = vst [vmem:[%s248 + $0x138] sm:$0xff] %v327
                %v329 = vld [vmem:[%s247 + $0x240] sm:$0xff]
                %330 = vst [vmem:[%s248 + $0x140] sm:$0xff] %v329
                %v331 = vld [vmem:[%s247 + $0x248] sm:$0xff]
                %332 = vst [vmem:[%s248 + $0x148] sm:$0xff] %v331
                %v333 = vld [vmem:[%s247 + $0x250] sm:$0xff]
                %334 = vst [vmem:[%s248 + $0x150] sm:$0xff] %v333
                %v335 = vld [vmem:[%s247 + $0x258] sm:$0xff]
                %336 = vst [vmem:[%s248 + $0x158] sm:$0xff] %v335
                %v337 = vld [vmem:[%s247 + $0x260] sm:$0xff]
                %338 = vst [vmem:[%s248 + $0x160] sm:$0xff] %v337
                %v339 = vld [vmem:[%s247 + $0x268] sm:$0xff]
                %340 = vst [vmem:[%s248 + $0x168] sm:$0xff] %v339
                %v341 = vld [vmem:[%s247 + $0x270] sm:$0xff]
                %342 = vst [vmem:[%s248 + $0x170] sm:$0xff] %v341
                %v343 = vld [vmem:[%s247 + $0x278] sm:$0xff]
                %344 = vst [vmem:[%s248 + $0x178] sm:$0xff] %v343
                %v345 = vld [vmem:[%s247 + $0x300] sm:$0xff]
                %346 = vst [vmem:[%s248 + $0x180] sm:$0xff] %v345
                %v347 = vld [vmem:[%s247 + $0x308] sm:$0xff]
                %348 = vst [vmem:[%s248 + $0x188] sm:$0xff] %v347
                %v349 = vld [vmem:[%s247 + $0x310] sm:$0xff]
                %350 = vst [vmem:[%s248 + $0x190] sm:$0xff] %v349
                %v351 = vld [vmem:[%s247 + $0x318] sm:$0xff]
                %352 = vst [vmem:[%s248 + $0x198] sm:$0xff] %v351
                %v353 = vld [vmem:[%s247 + $0x320] sm:$0xff]
                %354 = vst [vmem:[%s248 + $0x1a0] sm:$0xff] %v353
                %v355 = vld [vmem:[%s247 + $0x328] sm:$0xff]
                %356 = vst [vmem:[%s248 + $0x1a8] sm:$0xff] %v355
                %v357 = vld [vmem:[%s247 + $0x330] sm:$0xff]
                %358 = vst [vmem:[%s248 + $0x1b0] sm:$0xff] %v357
                %v359 = vld [vmem:[%s247 + $0x338] sm:$0xff]
                %360 = vst [vmem:[%s248 + $0x1b8] sm:$0xff] %v359
                %v361 = vld [vmem:[%s247 + $0x340] sm:$0xff]
                %362 = vst [vmem:[%s248 + $0x1c0] sm:$0xff] %v361
                %v363 = vld [vmem:[%s247 + $0x348] sm:$0xff]
                %364 = vst [vmem:[%s248 + $0x1c8] sm:$0xff] %v363
                %v365 = vld [vmem:[%s247 + $0x350] sm:$0xff]
                %366 = vst [vmem:[%s248 + $0x1d0] sm:$0xff] %v365
                %v367 = vld [vmem:[%s247 + $0x358] sm:$0xff]
                %368 = vst [vmem:[%s248 + $0x1d8] sm:$0xff] %v367
                %v369 = vld [vmem:[%s247 + $0x360] sm:$0xff]
                %370 = vst [vmem:[%s248 + $0x1e0] sm:$0xff] %v369
                %v371 = vld [vmem:[%s247 + $0x368] sm:$0xff]
                %372 = vst [vmem:[%s248 + $0x1e8] sm:$0xff] %v371
                %v373 = vld [vmem:[%s247 + $0x370] sm:$0xff]
                %374 = vst [vmem:[%s248 + $0x1f0] sm:$0xff] %v373
                %v375 = vld [vmem:[%s247 + $0x378] sm:$0xff]
                %376 = vst [vmem:[%s248 + $0x1f8] sm:$0xff] %v375
              $region45: #{dmcr_forward.2} parent=39 // loop_footer
                %s246 = sadd.s32 1, %s242
              $region46: #{dmcr_forward.2} parent=39 // loop_footer_branch
                %241 = sbr.rel target = $region42
              $region47: #{dmcr_forward.2} parent=39 // loop_exit
                _
            $region40: #{dmcr_forward.2} parent=31 // pred_fallthru
              _
          $region32: #{dmcr_forward.2} parent=27 // pred_fallthru
            _
          %517 = vnop
        $region28: #{dmcr_forward.2} parent=23 // pred_fallthru
          _
        // Predicated region
        $region63: #{dmcr_forward.2} parent=23 // pred_check
          %p518 = pneg %p114
        $region64: #{dmcr_forward.2} parent=23 // pred_check_branch
          %520 = sbr.rel (%p518) target = $region66
        $region65: #{dmcr_forward.2} parent=23 // pred_region
          %s521 = sshra.s32 %s30, 7
          %s522 = sand.u32 %s30, 127
          %s523 = sadd.s32 %s521, %s29
          %s524 = smul.u32 %s523, 128
          %s525 = sshra.s32 %s30, 7
          %s526 = sand.u32 %s30, 127
          %s527 = sadd.s32 %s524, %s526
          %s528 = sld [smem:[#allocation4 + %s527]]
          %s529 = smul.u32 32, %s528
          %p530 = scmp.lt.s32.totalorder %s529, 31
          %s531 = scalar_select %p530, %s529, 31
          %s532 = smul.addr %s531, 4
          %s533 = scalar_lea.vmem %s3, %s532
          %s534 = sshra.s32 %s30, 7
          %s535 = sand.u32 %s30, 127
          %s536 = sadd.s32 %s534, %s29
          %s537 = smul.u32 %s536, 128
          %s538 = sshra.s32 %s30, 7
          %s539 = sand.u32 %s30, 127
          %s540 = sadd.s32 %s537, %s539
          %s541 = sld [smem:[#allocation4 + %s540]]
          %s542 = smul.u32 32, %s541
        $region66: #{dmcr_forward.2} parent=23 // pred_fallthru
          _
      $region24: #{dmcr_forward.2} parent=5 // pred_fallthru
        _
      %p543 = scmp.le.s32.totalorder 1, %s22
      %p544 = scmp.lt.s32.totalorder %s22, 3
      %p545 = pnand %p543, %p544
      %p546 = pneg %p545
      // Predicated region
      $region67: #{dmcr_forward.2} parent=5 // pred_check
        _
      $region68: #{dmcr_forward.2} parent=5 // pred_check_branch
        %548 = sbr.rel (%p545) target = $region70
      $region69: #{dmcr_forward.2} parent=5 // pred_region
        %s549 = ssub.s32 %s22, 1
        %s550 = sand.u32 %s65, 1
        %s551 = sand.u32 %s65, 1
        %s552 = smul.addr %s551, 512
        %s553 = scalar_lea.vmem [#allocation6], %s552
        // Predicated region
        $region71: #{dmcr_forward.2} parent=69 // pred_check
          %p554 = pneg %p78
        $region72: #{dmcr_forward.2} parent=69 // pred_check_branch
          %556 = sbr.rel (%p554) target = $region74
        $region73: #{dmcr_forward.2} parent=69 // pred_region
          _
        $region74: #{dmcr_forward.2} parent=69 // pred_fallthru
          _
        %s557 = sand.u32 %s65, 1
        %s558 = sand.u32 %s65, 1
        %s559 = smul.addr %s558, 512
        %s560 = scalar_lea.vmem [#allocation6], %s559
        %p561 = pneg %p78
        %p562 = pneg %p75
        %s563 = sshra.s32 %s32, 7
        %s564 = sand.u32 %s32, 127
        %s565 = sadd.s32 %s563, %s31
        %s566 = smul.u32 %s565, 128
        %s567 = sshra.s32 %s32, 7
        %s568 = sand.u32 %s32, 127
        %s569 = sadd.s32 %s566, %s568
        %s570 = sld [smem:[#allocation4 + %s569]]
        %s571 = smul.u32 32, %s570
        %p572 = scmp.lt.s32.totalorder %s571, 31
        %s573 = scalar_select %p572, %s571, 31
        %s574 = smul.addr %s573, 4
        %s575 = scalar_lea.vmem %s3, %s574
        %p576 = pneg %p120
        %p577 = pneg %p117
        %p578 = pneg %p141
        %p579 = pneg %p138
        %p580 = pneg %p162
        %p581 = pneg %p159
        %p582 = pneg %p188
        %p583 = pneg %p185
        %s584 = smul.u32 16, %s31
        %p585 = scmp.lt.s32.totalorder %s584, 31
        %s586 = scalar_select %p585, %s584, 31
        %s587 = smul.addr %s586, 8
        %s588 = scalar_lea.vmem %s6, %s587
        %s589 = sshra.s32 %s32, 7
        %s590 = sand.u32 %s32, 127
        %s591 = sadd.s32 %s589, %s31
        %s592 = smul.u32 %s591, 128
        %s593 = sshra.s32 %s32, 7
        %s594 = sand.u32 %s32, 127
        %s595 = sadd.s32 %s592, %s594
        %s596 = sld [smem:[#allocation4 + %s595]]
        %s597 = smul.u32 16, %s31
        %s598 = smul.u32 2, %s596
        %s599 = sshra.s32 %s32, 7
        %s600 = sand.u32 %s32, 127
        %s601 = sadd.s32 %s599, %s31
        %s602 = smul.u32 %s601, 128
        %s603 = sshra.s32 %s32, 7
        %s604 = sand.u32 %s32, 127
        %s605 = sadd.s32 %s602, %s604
        %s606 = sld [smem:[#allocation4 + %s605]]
        %s607 = smul.u32 32, %s606
        %p608 = scmp.lt.s32.totalorder %s607, 31
        %s609 = scalar_select %p608, %s607, 31
        %s610 = smul.addr %s609, 4
        %s611 = scalar_lea.vmem %s3, %s610
        %s612 = sshra.s32 %s32, 7
        %s613 = sand.u32 %s32, 127
        %s614 = sadd.s32 %s612, %s31
        %s615 = smul.u32 %s614, 128
        %s616 = sshra.s32 %s32, 7
        %s617 = sand.u32 %s32, 127
        %s618 = sadd.s32 %s615, %s617
        %s619 = sld [smem:[#allocation4 + %s618]]
        %s620 = smul.u32 32, %s619
        %s621 = smul.u32 16, %s31
        %p622 = scmp.lt.s32.totalorder %s621, 31
        %s623 = scalar_select %p622, %s621, 31
        %s624 = smul.addr %s623, 8
        %s625 = scalar_lea.vmem %s6, %s624
        %s626 = smul.u32 16, %s31
        %p628 = scmp.eq.s32.totalorder %s32, 0
        // Predicated region
        $region75: #{dmcr_forward.2} parent=69 // pred_check
          %p629 = pneg %p628
        $region76: #{dmcr_forward.2} parent=69 // pred_check_branch
          %631 = sbr.rel (%p629) target = $region78
        $region77: #{dmcr_forward.2} parent=69 // pred_region
          %632 = vst [vmem:[#allocation2] sm:$0xff] 0.0
          %633 = vst [vmem:[#allocation2 + $0x8] sm:$0xff] 0.0
          %634 = vst [vmem:[#allocation2 + $0x10] sm:$0xff] 0.0
          %635 = vst [vmem:[#allocation2 + $0x18] sm:$0xff] 0.0
          %636 = vst [vmem:[#allocation2 + $0x20] sm:$0xff] 0.0
          %637 = vst [vmem:[#allocation2 + $0x28] sm:$0xff] 0.0
          %638 = vst [vmem:[#allocation2 + $0x30] sm:$0xff] 0.0
          %639 = vst [vmem:[#allocation2 + $0x38] sm:$0xff] 0.0
          %640 = vst [vmem:[#allocation2 + $0x40] sm:$0xff] 0.0
          %641 = vst [vmem:[#allocation2 + $0x48] sm:$0xff] 0.0
          %642 = vst [vmem:[#allocation2 + $0x50] sm:$0xff] 0.0
          %643 = vst [vmem:[#allocation2 + $0x58] sm:$0xff] 0.0
          %644 = vst [vmem:[#allocation2 + $0x60] sm:$0xff] 0.0
          %645 = vst [vmem:[#allocation2 + $0x68] sm:$0xff] 0.0
          %646 = vst [vmem:[#allocation2 + $0x70] sm:$0xff] 0.0
          %647 = vst [vmem:[#allocation2 + $0x78] sm:$0xff] 0.0
        $region78: #{dmcr_forward.2} parent=69 // pred_fallthru
          _
        %s648 = sld [smem:[#allocation5 + %s31]]
        %p649 = scmp.lt.s32.totalorder %s32, %s648
        // Predicated region
        $region79: #{dmcr_forward.2} parent=69 // pred_check
          %p650 = pneg %p649
        $region80: #{dmcr_forward.2} parent=69 // pred_check_branch
          %652 = sbr.rel (%p650) target = $region82
        $region81: #{dmcr_forward.2} parent=69 // pred_region
          %v653 = vld [vmem:[%s553] sm:$0xff]
          %v654 = vld [vmem:[%s553 + $0x8] sm:$0xff]
          %v655 = vld [vmem:[%s553 + $0x10] sm:$0xff]
          %v656 = vld [vmem:[%s553 + $0x18] sm:$0xff]
          %v657 = vld [vmem:[%s553 + $0x20] sm:$0xff]
          %v658 = vld [vmem:[%s553 + $0x28] sm:$0xff]
          %v659 = vld [vmem:[%s553 + $0x30] sm:$0xff]
          %v660 = vld [vmem:[%s553 + $0x38] sm:$0xff]
          %v661 = vld [vmem:[%s553 + $0x40] sm:$0xff]
          %v662 = vld [vmem:[%s553 + $0x48] sm:$0xff]
          %v663 = vld [vmem:[%s553 + $0x50] sm:$0xff]
          %v664 = vld [vmem:[%s553 + $0x58] sm:$0xff]
          %v665 = vld [vmem:[%s553 + $0x60] sm:$0xff]
          %v666 = vld [vmem:[%s553 + $0x68] sm:$0xff]
          %v667 = vld [vmem:[%s553 + $0x70] sm:$0xff]
          %v668 = vld [vmem:[%s553 + $0x78] sm:$0xff]
          %v669 = vld [vmem:[%s611] sm:$0xf]
          %v670 = vld [vmem:[%s611 + $0x4] sm:$0xf]
          %v671 = vld [vmem:[%s611 + $0x8] sm:$0xf]
          %v672 = vld [vmem:[%s611 + $0xc] sm:$0xf]
          %v673 = vld [vmem:[%s611 + $0x10] sm:$0xf]
          %v674 = vld [vmem:[%s611 + $0x14] sm:$0xf]
          %v675 = vld [vmem:[%s611 + $0x18] sm:$0xf]
          %v676 = vld [vmem:[%s611 + $0x1c] sm:$0xf]
          %v677 = vld [vmem:[%s611 + $0x20] sm:$0xf]
          %v678 = vld [vmem:[%s611 + $0x24] sm:$0xf]
          %v679 = vld [vmem:[%s611 + $0x28] sm:$0xf]
          %v680 = vld [vmem:[%s611 + $0x2c] sm:$0xf]
          %v681 = vld [vmem:[%s611 + $0x30] sm:$0xf]
          %v682 = vld [vmem:[%s611 + $0x34] sm:$0xf]
          %v683 = vld [vmem:[%s611 + $0x38] sm:$0xf]
          %v684 = vld [vmem:[%s611 + $0x3c] sm:$0xf]
          %v685 = vld [vmem:[%s611 + $0x40] sm:$0xf]
          %v686 = vld [vmem:[%s611 + $0x44] sm:$0xf]
          %v687 = vld [vmem:[%s611 + $0x48] sm:$0xf]
          %v688 = vld [vmem:[%s611 + $0x4c] sm:$0xf]
          %v689 = vld [vmem:[%s611 + $0x50] sm:$0xf]
          %v690 = vld [vmem:[%s611 + $0x54] sm:$0xf]
          %v691 = vld [vmem:[%s611 + $0x58] sm:$0xf]
          %v692 = vld [vmem:[%s611 + $0x5c] sm:$0xf]
          %v693 = vld [vmem:[%s611 + $0x60] sm:$0xf]
          %v694 = vld [vmem:[%s611 + $0x64] sm:$0xf]
          %v695 = vld [vmem:[%s611 + $0x68] sm:$0xf]
          %v696 = vld [vmem:[%s611 + $0x6c] sm:$0xf]
          %v697 = vld [vmem:[%s611 + $0x70] sm:$0xf]
          %v698 = vld [vmem:[%s611 + $0x74] sm:$0xf]
          %v699 = vld [vmem:[%s611 + $0x78] sm:$0xf]
          %v700 = vld [vmem:[%s611 + $0x7c] sm:$0xf]
          %v717 = vunpack.c.l.b16 %v653
          %v718 = vunpack.c.h.b16 %v653
          %v719 = vunpack.c.l.b16 %v654
          %v720 = vunpack.c.h.b16 %v654
          %v721 = vunpack.c.l.b16 %v655
          %v722 = vunpack.c.h.b16 %v655
          %v723 = vunpack.c.l.b16 %v656
          %v724 = vunpack.c.h.b16 %v656
          %v725 = vunpack.c.l.b16 %v657
          %v726 = vunpack.c.h.b16 %v657
          %v727 = vunpack.c.l.b16 %v658
          %v728 = vunpack.c.h.b16 %v658
          %v729 = vunpack.c.l.b16 %v659
          %v730 = vunpack.c.h.b16 %v659
          %v731 = vunpack.c.l.b16 %v660
          %v732 = vunpack.c.h.b16 %v660
          %v733 = vunpack.c.l.b16 %v661
          %v734 = vunpack.c.h.b16 %v661
          %v735 = vunpack.c.l.b16 %v662
          %v736 = vunpack.c.h.b16 %v662
          %v737 = vunpack.c.l.b16 %v663
          %v738 = vunpack.c.h.b16 %v663
          %v739 = vunpack.c.l.b16 %v664
          %v740 = vunpack.c.h.b16 %v664
          %v741 = vunpack.c.l.b16 %v665
          %v742 = vunpack.c.h.b16 %v665
          %v743 = vunpack.c.l.b16 %v666
          %v744 = vunpack.c.h.b16 %v666
          %v745 = vunpack.c.l.b16 %v667
          %v746 = vunpack.c.h.b16 %v667
          %v747 = vunpack.c.l.b16 %v668
          %v748 = vunpack.c.h.b16 %v668
          %v749 = vpack.c.b16 %v719, %v717
          %v750 = vpack.c.b16 %v720, %v718
          %v751 = vpack.c.b16 %v723, %v721
          %v752 = vpack.c.b16 %v724, %v722
          %v753 = vpack.c.b16 %v727, %v725
          %v754 = vpack.c.b16 %v728, %v726
          %v755 = vpack.c.b16 %v731, %v729
          %v756 = vpack.c.b16 %v732, %v730
          %v757 = vpack.c.b16 %v735, %v733
          %v758 = vpack.c.b16 %v736, %v734
          %v759 = vpack.c.b16 %v739, %v737
          %v760 = vpack.c.b16 %v740, %v738
          %v761 = vpack.c.b16 %v743, %v741
          %v762 = vpack.c.b16 %v744, %v742
          %v763 = vpack.c.b16 %v747, %v745
          %v764 = vpack.c.b16 %v748, %v746
          %v813 = vunpack.c.l.b16 %v669
          %v814 = vunpack.c.l.b16 %v670
          %v815 = vunpack.c.l.b16 %v671
          %v816 = vunpack.c.l.b16 %v672
          %v817 = vunpack.c.l.b16 %v673
          %v818 = vunpack.c.l.b16 %v674
          %v819 = vunpack.c.l.b16 %v675
          %v820 = vunpack.c.l.b16 %v676
          %v821 = vunpack.c.l.b16 %v677
          %v822 = vunpack.c.l.b16 %v678
          %v823 = vunpack.c.l.b16 %v679
          %v824 = vunpack.c.l.b16 %v680
          %v825 = vunpack.c.l.b16 %v681
          %v826 = vunpack.c.l.b16 %v682
          %v827 = vunpack.c.l.b16 %v683
          %v828 = vunpack.c.l.b16 %v684
          %v829 = vunpack.c.l.b16 %v685
          %v830 = vunpack.c.l.b16 %v686
          %v831 = vunpack.c.l.b16 %v687
          %v832 = vunpack.c.l.b16 %v688
          %v833 = vunpack.c.l.b16 %v689
          %v834 = vunpack.c.l.b16 %v690
          %v835 = vunpack.c.l.b16 %v691
          %v836 = vunpack.c.l.b16 %v692
          %v837 = vunpack.c.l.b16 %v693
          %v838 = vunpack.c.l.b16 %v694
          %v839 = vunpack.c.l.b16 %v695
          %v840 = vunpack.c.l.b16 %v696
          %v841 = vunpack.c.l.b16 %v697
          %v842 = vunpack.c.l.b16 %v698
          %v843 = vunpack.c.l.b16 %v699
          %v844 = vunpack.c.l.b16 %v700
          %v845 = vpack.c.b16 %v814, %v813
          %v846 = vpack.c.b16 %v816, %v815
          %v847 = vpack.c.b16 %v818, %v817
          %v848 = vpack.c.b16 %v820, %v819
          %v849 = vpack.c.b16 %v822, %v821
          %v850 = vpack.c.b16 %v824, %v823
          %v851 = vpack.c.b16 %v826, %v825
          %v852 = vpack.c.b16 %v828, %v827
          %v853 = vpack.c.b16 %v830, %v829
          %v854 = vpack.c.b16 %v832, %v831
          %v855 = vpack.c.b16 %v834, %v833
          %v856 = vpack.c.b16 %v836, %v835
          %v857 = vpack.c.b16 %v838, %v837
          %v858 = vpack.c.b16 %v840, %v839
          %v859 = vpack.c.b16 %v842, %v841
          %v860 = vpack.c.b16 %v844, %v843
          %877 = vmatprep.subr.bf16.mxu0 0
          %878 = vmatpush1.bf16.msra.mxu0 %v845
          %879 = vmatprep.subr.bf16.mxu0 0
          %880 = vmatpush1.bf16.msra.mxu0 %v846
          %881 = vmatprep.subr.bf16.mxu0 0
          %882 = vmatpush1.bf16.msra.mxu0 %v847
          %883 = vmatprep.subr.bf16.mxu0 0
          %884 = vmatpush1.bf16.msra.mxu0 %v848
          %885 = vmatprep.subr.bf16.mxu0 0
          %886 = vmatpush1.bf16.msra.mxu0 %v849
          %887 = vmatprep.subr.bf16.mxu0 0
          %888 = vmatpush1.bf16.msra.mxu0 %v850
          %889 = vmatprep.subr.bf16.mxu0 0
          %890 = vmatpush1.bf16.msra.mxu0 %v851
          %891 = vmatprep.subr.bf16.mxu0 0
          %892 = vmatpush1.bf16.msra.mxu0 %v852
          %893 = vmatprep.subr.bf16.mxu0 0
          %894 = vmatpush1.bf16.msra.mxu0 %v853
          %895 = vmatprep.subr.bf16.mxu0 0
          %896 = vmatpush1.bf16.msra.mxu0 %v854
          %897 = vmatprep.subr.bf16.mxu0 0
          %898 = vmatpush1.bf16.msra.mxu0 %v855
          %899 = vmatprep.subr.bf16.mxu0 0
          %900 = vmatpush1.bf16.msra.mxu0 %v856
          %901 = vmatprep.subr.bf16.mxu0 0
          %902 = vmatpush1.bf16.msra.mxu0 %v857
          %903 = vmatprep.subr.bf16.mxu0 0
          %904 = vmatpush1.bf16.msra.mxu0 %v858
          %905 = vmatprep.subr.bf16.mxu0 0
          %906 = vmatpush1.bf16.msra.mxu0 %v859
          %907 = vmatprep.subr.bf16.mxu0 0
          %908 = vmatpush1.bf16.msra.mxu0 %v860
          %909 = vmatprep.mubr.bf16.mxu0 %v750
          %910 = vmatmul.mubr.bf16.gmra.mrb[0].mxu0 %v749
          %v911 = vpop.f32.mrb[0].mxu0
          %v912 = vadd.f32 0.0, %v911
          %v913 = vpop.f32.mrb[0].mxu0
          %v914 = vpop.f32.mrb[0].mxu0
          %v915 = vadd.f32 0.0, %v914
          %v916 = vpop.f32.mrb[0].mxu0
          %917 = vmatprep.mubr.bf16.mxu0 %v752
          %918 = vmatmul.mubr.bf16.gmra.mrb[0].mxu0 %v751
          %v919 = vpop.f32.mrb[0].mxu0
          %v920 = vadd.f32 0.0, %v919
          %v921 = vpop.f32.mrb[0].mxu0
          %v922 = vpop.f32.mrb[0].mxu0
          %v923 = vadd.f32 0.0, %v922
          %v924 = vpop.f32.mrb[0].mxu0
          %925 = vmatprep.mubr.bf16.mxu0 %v754
          %926 = vmatmul.mubr.bf16.gmra.mrb[0].mxu0 %v753
          %v927 = vpop.f32.mrb[0].mxu0
          %v928 = vadd.f32 0.0, %v927
          %v929 = vpop.f32.mrb[0].mxu0
          %v930 = vpop.f32.mrb[0].mxu0
          %v931 = vadd.f32 0.0, %v930
          %v932 = vpop.f32.mrb[0].mxu0
          %933 = vmatprep.mubr.bf16.mxu0 %v756
          %934 = vmatmul.mubr.bf16.gmra.mrb[0].mxu0 %v755
          %v935 = vpop.f32.mrb[0].mxu0
          %v936 = vadd.f32 0.0, %v935
          %v937 = vpop.f32.mrb[0].mxu0
          %v938 = vpop.f32.mrb[0].mxu0
          %v939 = vadd.f32 0.0, %v938
          %v940 = vpop.f32.mrb[0].mxu0
          %941 = vmatprep.mubr.bf16.mxu0 %v758
          %942 = vmatmul.mubr.bf16.gmra.mrb[0].mxu0 %v757
          %v943 = vpop.f32.mrb[0].mxu0
          %v944 = vadd.f32 0.0, %v943
          %v945 = vpop.f32.mrb[0].mxu0
          %v946 = vpop.f32.mrb[0].mxu0
          %v947 = vadd.f32 0.0, %v946
          %v948 = vpop.f32.mrb[0].mxu0
          %949 = vmatprep.mubr.bf16.mxu0 %v760
          %950 = vmatmul.mubr.bf16.gmra.mrb[0].mxu0 %v759
          %v951 = vpop.f32.mrb[0].mxu0
          %v952 = vadd.f32 0.0, %v951
          %v953 = vpop.f32.mrb[0].mxu0
          %v954 = vpop.f32.mrb[0].mxu0
          %v955 = vadd.f32 0.0, %v954
          %v956 = vpop.f32.mrb[0].mxu0
          %957 = vmatprep.mubr.bf16.mxu0 %v762
          %958 = vmatmul.mubr.bf16.gmra.mrb[0].mxu0 %v761
          %v959 = vpop.f32.mrb[0].mxu0
          %v960 = vadd.f32 0.0, %v959
          %v961 = vpop.f32.mrb[0].mxu0
          %v962 = vpop.f32.mrb[0].mxu0
          %v963 = vadd.f32 0.0, %v962
          %v964 = vpop.f32.mrb[0].mxu0
          %965 = vmatprep.mubr.bf16.mxu0 %v764
          %966 = vmatmul.mubr.bf16.gmra.mrb[0].mxu0 %v763
          %v967 = vpop.f32.mrb[0].mxu0
          %v968 = vadd.f32 0.0, %v967
          %v969 = vpop.f32.mrb[0].mxu0
          %v970 = vpop.f32.mrb[0].mxu0
          %v971 = vadd.f32 0.0, %v970
          %v972 = vpop.f32.mrb[0].mxu0
          %973 = vdwg.mxu0
          %s974 = scalar_lea.vmem %s553, 128 [#allocation6]
          %v975 = vld [vmem:[%s974] sm:$0xff]
          %v976 = vld [vmem:[%s974 + $0x8] sm:$0xff]
          %v977 = vld [vmem:[%s974 + $0x10] sm:$0xff]
          %v978 = vld [vmem:[%s974 + $0x18] sm:$0xff]
          %v979 = vld [vmem:[%s974 + $0x20] sm:$0xff]
          %v980 = vld [vmem:[%s974 + $0x28] sm:$0xff]
          %v981 = vld [vmem:[%s974 + $0x30] sm:$0xff]
          %v982 = vld [vmem:[%s974 + $0x38] sm:$0xff]
          %v983 = vld [vmem:[%s974 + $0x40] sm:$0xff]
          %v984 = vld [vmem:[%s974 + $0x48] sm:$0xff]
          %v985 = vld [vmem:[%s974 + $0x50] sm:$0xff]
          %v986 = vld [vmem:[%s974 + $0x58] sm:$0xff]
          %v987 = vld [vmem:[%s974 + $0x60] sm:$0xff]
          %v988 = vld [vmem:[%s974 + $0x68] sm:$0xff]
          %v989 = vld [vmem:[%s974 + $0x70] sm:$0xff]
          %v990 = vld [vmem:[%s974 + $0x78] sm:$0xff]
          %v1007 = vunpack.c.l.b16 %v975
          %v1008 = vunpack.c.h.b16 %v975
          %v1009 = vunpack.c.l.b16 %v976
          %v1010 = vunpack.c.h.b16 %v976
          %v1011 = vunpack.c.l.b16 %v977
          %v1012 = vunpack.c.h.b16 %v977
          %v1013 = vunpack.c.l.b16 %v978
          %v1014 = vunpack.c.h.b16 %v978
          %v1015 = vunpack.c.l.b16 %v979
          %v1016 = vunpack.c.h.b16 %v979
          %v1017 = vunpack.c.l.b16 %v980
          %v1018 = vunpack.c.h.b16 %v980
          %v1019 = vunpack.c.l.b16 %v981
          %v1020 = vunpack.c.h.b16 %v981
          %v1021 = vunpack.c.l.b16 %v982
          %v1022 = vunpack.c.h.b16 %v982
          %v1023 = vunpack.c.l.b16 %v983
          %v1024 = vunpack.c.h.b16 %v983
          %v1025 = vunpack.c.l.b16 %v984
          %v1026 = vunpack.c.h.b16 %v984
          %v1027 = vunpack.c.l.b16 %v985
          %v1028 = vunpack.c.h.b16 %v985
          %v1029 = vunpack.c.l.b16 %v986
          %v1030 = vunpack.c.h.b16 %v986
          %v1031 = vunpack.c.l.b16 %v987
          %v1032 = vunpack.c.h.b16 %v987
          %v1033 = vunpack.c.l.b16 %v988
          %v1034 = vunpack.c.h.b16 %v988
          %v1035 = vunpack.c.l.b16 %v989
          %v1036 = vunpack.c.h.b16 %v989
          %v1037 = vunpack.c.l.b16 %v990
          %v1038 = vunpack.c.h.b16 %v990
          %v1039 = vpack.c.b16 %v1009, %v1007
          %v1040 = vpack.c.b16 %v1010, %v1008
          %v1041 = vpack.c.b16 %v1013, %v1011
          %v1042 = vpack.c.b16 %v1014, %v1012
          %v1043 = vpack.c.b16 %v1017, %v1015
          %v1044 = vpack.c.b16 %v1018, %v1016
          %v1045 = vpack.c.b16 %v1021, %v1019
          %v1046 = vpack.c.b16 %v1022, %v1020
          %v1047 = vpack.c.b16 %v1025, %v1023
          %v1048 = vpack.c.b16 %v1026, %v1024
          %v1049 = vpack.c.b16 %v1029, %v1027
          %v1050 = vpack.c.b16 %v1030, %v1028
          %v1051 = vpack.c.b16 %v1033, %v1031
          %v1052 = vpack.c.b16 %v1034, %v1032
          %v1053 = vpack.c.b16 %v1037, %v1035
          %v1054 = vpack.c.b16 %v1038, %v1036
          %1071 = vrot.lane.b32.xlu0 %v845, 96
          %v1072 = vpop.permute.xlu0 %1071
          %1073 = vrot.lane.b32.xlu0 %v846, 96
          %v1074 = vpop.permute.xlu0 %1073
          %1075 = vrot.lane.b32.xlu0 %v847, 96
          %v1076 = vpop.permute.xlu0 %1075
          %1077 = vrot.lane.b32.xlu0 %v848, 96
          %v1078 = vpop.permute.xlu0 %1077
          %1079 = vrot.lane.b32.xlu0 %v849, 96
          %v1080 = vpop.permute.xlu0 %1079
          %1081 = vrot.lane.b32.xlu0 %v850, 96
          %v1082 = vpop.permute.xlu0 %1081
          %1083 = vrot.lane.b32.xlu0 %v851, 96
          %v1084 = vpop.permute.xlu0 %1083
          %1085 = vrot.lane.b32.xlu0 %v852, 96
          %v1086 = vpop.permute.xlu0 %1085
          %1087 = vrot.lane.b32.xlu0 %v853, 96
          %v1088 = vpop.permute.xlu0 %1087
          %1089 = vrot.lane.b32.xlu0 %v854, 96
          %v1090 = vpop.permute.xlu0 %1089
          %1091 = vrot.lane.b32.xlu0 %v855, 96
          %v1092 = vpop.permute.xlu0 %1091
          %1093 = vrot.lane.b32.xlu0 %v856, 96
          %v1094 = vpop.permute.xlu0 %1093
          %1095 = vrot.lane.b32.xlu0 %v857, 96
          %v1096 = vpop.permute.xlu0 %1095
          %1097 = vrot.lane.b32.xlu0 %v858, 96
          %v1098 = vpop.permute.xlu0 %1097
          %1099 = vrot.lane.b32.xlu0 %v859, 96
          %v1100 = vpop.permute.xlu0 %1099
          %1101 = vrot.lane.b32.xlu0 %v860, 96
          %v1102 = vpop.permute.xlu0 %1101
          %1119 = vmatprep.subr.bf16.mxu0 0
          %1120 = vmatpush1.bf16.msra.mxu0 %v1072
          %1121 = vmatprep.subr.bf16.mxu0 0
          %1122 = vmatpush1.bf16.msra.mxu0 %v1074
          %1123 = vmatprep.subr.bf16.mxu0 0
          %1124 = vmatpush1.bf16.msra.mxu0 %v1076
          %1125 = vmatprep.subr.bf16.mxu0 0
          %1126 = vmatpush1.bf16.msra.mxu0 %v1078
          %1127 = vmatprep.subr.bf16.mxu0 0
          %1128 = vmatpush1.bf16.msra.mxu0 %v1080
          %1129 = vmatprep.subr.bf16.mxu0 0
          %1130 = vmatpush1.bf16.msra.mxu0 %v1082
          %1131 = vmatprep.subr.bf16.mxu0 0
          %1132 = vmatpush1.bf16.msra.mxu0 %v1084
          %1133 = vmatprep.subr.bf16.mxu0 0
          %1134 = vmatpush1.bf16.msra.mxu0 %v1086
          %1135 = vmatprep.subr.bf16.mxu0 0
          %1136 = vmatpush1.bf16.msra.mxu0 %v1088
          %1137 = vmatprep.subr.bf16.mxu0 0
          %1138 = vmatpush1.bf16.msra.mxu0 %v1090
          %1139 = vmatprep.subr.bf16.mxu0 0
          %1140 = vmatpush1.bf16.msra.mxu0 %v1092
          %1141 = vmatprep.subr.bf16.mxu0 0
          %1142 = vmatpush1.bf16.msra.mxu0 %v1094
          %1143 = vmatprep.subr.bf16.mxu0 0
          %1144 = vmatpush1.bf16.msra.mxu0 %v1096
          %1145 = vmatprep.subr.bf16.mxu0 0
          %1146 = vmatpush1.bf16.msra.mxu0 %v1098
          %1147 = vmatprep.subr.bf16.mxu0 0
          %1148 = vmatpush1.bf16.msra.mxu0 %v1100
          %1149 = vmatprep.subr.bf16.mxu0 0
          %1150 = vmatpush1.bf16.msra.mxu0 %v1102
          %1151 = vmatprep.mubr.bf16.mxu0 %v1040
          %1152 = vmatmul.mubr.bf16.gmra.mrb[0].mxu0 %v1039
          %v1153 = vpop.f32.mrb[0].mxu0
          %v1154 = vadd.f32 0.0, %v1153
          %v1155 = vpop.f32.mrb[0].mxu0
          %v1156 = vpop.f32.mrb[0].mxu0
          %v1157 = vadd.f32 0.0, %v1156
          %v1158 = vpop.f32.mrb[0].mxu0
          %1159 = vmatprep.mubr.bf16.mxu0 %v1042
          %1160 = vmatmul.mubr.bf16.gmra.mrb[0].mxu0 %v1041
          %v1161 = vpop.f32.mrb[0].mxu0
          %v1162 = vadd.f32 0.0, %v1161
          %v1163 = vpop.f32.mrb[0].mxu0
          %v1164 = vpop.f32.mrb[0].mxu0
          %v1165 = vadd.f32 0.0, %v1164
          %v1166 = vpop.f32.mrb[0].mxu0
          %1167 = vmatprep.mubr.bf16.mxu0 %v1044
          %1168 = vmatmul.mubr.bf16.gmra.mrb[0].mxu0 %v1043
          %v1169 = vpop.f32.mrb[0].mxu0
          %v1170 = vadd.f32 0.0, %v1169
          %v1171 = vpop.f32.mrb[0].mxu0
          %v1172 = vpop.f32.mrb[0].mxu0
          %v1173 = vadd.f32 0.0, %v1172
          %v1174 = vpop.f32.mrb[0].mxu0
          %1175 = vmatprep.mubr.bf16.mxu0 %v1046
          %1176 = vmatmul.mubr.bf16.gmra.mrb[0].mxu0 %v1045
          %v1177 = vpop.f32.mrb[0].mxu0
          %v1178 = vadd.f32 0.0, %v1177
          %v1179 = vpop.f32.mrb[0].mxu0
          %v1180 = vpop.f32.mrb[0].mxu0
          %v1181 = vadd.f32 0.0, %v1180
          %v1182 = vpop.f32.mrb[0].mxu0
          %1183 = vmatprep.mubr.bf16.mxu0 %v1048
          %1184 = vmatmul.mubr.bf16.gmra.mrb[0].mxu0 %v1047
          %v1185 = vpop.f32.mrb[0].mxu0
          %v1186 = vadd.f32 0.0, %v1185
          %v1187 = vpop.f32.mrb[0].mxu0
          %v1188 = vpop.f32.mrb[0].mxu0
          %v1189 = vadd.f32 0.0, %v1188
          %v1190 = vpop.f32.mrb[0].mxu0
          %1191 = vmatprep.mubr.bf16.mxu0 %v1050
          %1192 = vmatmul.mubr.bf16.gmra.mrb[0].mxu0 %v1049
          %v1193 = vpop.f32.mrb[0].mxu0
          %v1194 = vadd.f32 0.0, %v1193
          %v1195 = vpop.f32.mrb[0].mxu0
          %v1196 = vpop.f32.mrb[0].mxu0
          %v1197 = vadd.f32 0.0, %v1196
          %v1198 = vpop.f32.mrb[0].mxu0
          %1199 = vmatprep.mubr.bf16.mxu0 %v1052
          %1200 = vmatmul.mubr.bf16.gmra.mrb[0].mxu0 %v1051
          %v1201 = vpop.f32.mrb[0].mxu0
          %v1202 = vadd.f32 0.0, %v1201
          %v1203 = vpop.f32.mrb[0].mxu0
          %v1204 = vpop.f32.mrb[0].mxu0
          %v1205 = vadd.f32 0.0, %v1204
          %v1206 = vpop.f32.mrb[0].mxu0
          %1207 = vmatprep.mubr.bf16.mxu0 %v1054
          %1208 = vmatmul.mubr.bf16.gmra.mrb[0].mxu0 %v1053
          %v1209 = vpop.f32.mrb[0].mxu0
          %v1210 = vadd.f32 0.0, %v1209
          %v1211 = vpop.f32.mrb[0].mxu0
          %v1212 = vpop.f32.mrb[0].mxu0
          %v1213 = vadd.f32 0.0, %v1212
          %v1214 = vpop.f32.mrb[0].mxu0
          %1215 = vdwg.mxu0
          %s1216 = scalar_lea.vmem %s553, 256 [#allocation6]
          %v1217 = vld [vmem:[%s1216] sm:$0xff]
          %v1218 = vld [vmem:[%s1216 + $0x8] sm:$0xff]
          %v1219 = vld [vmem:[%s1216 + $0x10] sm:$0xff]
          %v1220 = vld [vmem:[%s1216 + $0x18] sm:$0xff]
          %v1221 = vld [vmem:[%s1216 + $0x20] sm:$0xff]
          %v1222 = vld [vmem:[%s1216 + $0x28] sm:$0xff]
          %v1223 = vld [vmem:[%s1216 + $0x30] sm:$0xff]
          %v1224 = vld [vmem:[%s1216 + $0x38] sm:$0xff]
          %v1225 = vld [vmem:[%s1216 + $0x40] sm:$0xff]
          %v1226 = vld [vmem:[%s1216 + $0x48] sm:$0xff]
          %v1227 = vld [vmem:[%s1216 + $0x50] sm:$0xff]
          %v1228 = vld [vmem:[%s1216 + $0x58] sm:$0xff]
          %v1229 = vld [vmem:[%s1216 + $0x60] sm:$0xff]
          %v1230 = vld [vmem:[%s1216 + $0x68] sm:$0xff]
          %v1231 = vld [vmem:[%s1216 + $0x70] sm:$0xff]
          %v1232 = vld [vmem:[%s1216 + $0x78] sm:$0xff]
          %v1249 = vunpack.c.l.b16 %v1217
          %v1250 = vunpack.c.h.b16 %v1217
          %v1251 = vunpack.c.l.b16 %v1218
          %v1252 = vunpack.c.h.b16 %v1218
          %v1253 = vunpack.c.l.b16 %v1219
          %v1254 = vunpack.c.h.b16 %v1219
          %v1255 = vunpack.c.l.b16 %v1220
          %v1256 = vunpack.c.h.b16 %v1220
          %v1257 = vunpack.c.l.b16 %v1221
          %v1258 = vunpack.c.h.b16 %v1221
          %v1259 = vunpack.c.l.b16 %v1222
          %v1260 = vunpack.c.h.b16 %v1222
          %v1261 = vunpack.c.l.b16 %v1223
          %v1262 = vunpack.c.h.b16 %v1223
          %v1263 = vunpack.c.l.b16 %v1224
          %v1264 = vunpack.c.h.b16 %v1224
          %v1265 = vunpack.c.l.b16 %v1225
          %v1266 = vunpack.c.h.b16 %v1225
          %v1267 = vunpack.c.l.b16 %v1226
          %v1268 = vunpack.c.h.b16 %v1226
          %v1269 = vunpack.c.l.b16 %v1227
          %v1270 = vunpack.c.h.b16 %v1227
          %v1271 = vunpack.c.l.b16 %v1228
          %v1272 = vunpack.c.h.b16 %v1228
          %v1273 = vunpack.c.l.b16 %v1229
          %v1274 = vunpack.c.h.b16 %v1229
          %v1275 = vunpack.c.l.b16 %v1230
          %v1276 = vunpack.c.h.b16 %v1230
          %v1277 = vunpack.c.l.b16 %v1231
          %v1278 = vunpack.c.h.b16 %v1231
          %v1279 = vunpack.c.l.b16 %v1232
          %v1280 = vunpack.c.h.b16 %v1232
          %v1281 = vpack.c.b16 %v1251, %v1249
          %v1282 = vpack.c.b16 %v1252, %v1250
          %v1283 = vpack.c.b16 %v1255, %v1253
          %v1284 = vpack.c.b16 %v1256, %v1254
          %v1285 = vpack.c.b16 %v1259, %v1257
          %v1286 = vpack.c.b16 %v1260, %v1258
          %v1287 = vpack.c.b16 %v1263, %v1261
          %v1288 = vpack.c.b16 %v1264, %v1262
          %v1289 = vpack.c.b16 %v1267, %v1265
          %v1290 = vpack.c.b16 %v1268, %v1266
          %v1291 = vpack.c.b16 %v1271, %v1269
          %v1292 = vpack.c.b16 %v1272, %v1270
          %v1293 = vpack.c.b16 %v1275, %v1273
          %v1294 = vpack.c.b16 %v1276, %v1274
          %v1295 = vpack.c.b16 %v1279, %v1277
          %v1296 = vpack.c.b16 %v1280, %v1278
          %1313 = vrot.lane.b32.xlu0 %v845, 64
          %v1314 = vpop.permute.xlu0 %1313
          %1315 = vrot.lane.b32.xlu0 %v846, 64
          %v1316 = vpop.permute.xlu0 %1315
          %1317 = vrot.lane.b32.xlu0 %v847, 64
          %v1318 = vpop.permute.xlu0 %1317
          %1319 = vrot.lane.b32.xlu0 %v848, 64
          %v1320 = vpop.permute.xlu0 %1319
          %1321 = vrot.lane.b32.xlu0 %v849, 64
          %v1322 = vpop.permute.xlu0 %1321
          %1323 = vrot.lane.b32.xlu0 %v850, 64
          %v1324 = vpop.permute.xlu0 %1323
          %1325 = vrot.lane.b32.xlu0 %v851, 64
          %v1326 = vpop.permute.xlu0 %1325
          %1327 = vrot.lane.b32.xlu0 %v852, 64
          %v1328 = vpop.permute.xlu0 %1327
          %1329 = vrot.lane.b32.xlu0 %v853, 64
          %v1330 = vpop.permute.xlu0 %1329
          %1331 = vrot.lane.b32.xlu0 %v854, 64
          %v1332 = vpop.permute.xlu0 %1331
          %1333 = vrot.lane.b32.xlu0 %v855, 64
          %v1334 = vpop.permute.xlu0 %1333
          %1335 = vrot.lane.b32.xlu0 %v856, 64
          %v1336 = vpop.permute.xlu0 %1335
          %1337 = vrot.lane.b32.xlu0 %v857, 64
          %v1338 = vpop.permute.xlu0 %1337
          %1339 = vrot.lane.b32.xlu0 %v858, 64
          %v1340 = vpop.permute.xlu0 %1339
          %1341 = vrot.lane.b32.xlu0 %v859, 64
          %v1342 = vpop.permute.xlu0 %1341
          %1343 = vrot.lane.b32.xlu0 %v860, 64
          %v1344 = vpop.permute.xlu0 %1343
          %1361 = vmatprep.subr.bf16.mxu0 0
          %1362 = vmatpush1.bf16.msra.mxu0 %v1314
          %1363 = vmatprep.subr.bf16.mxu0 0
          %1364 = vmatpush1.bf16.msra.mxu0 %v1316
          %1365 = vmatprep.subr.bf16.mxu0 0
          %1366 = vmatpush1.bf16.msra.mxu0 %v1318
          %1367 = vmatprep.subr.bf16.mxu0 0
          %1368 = vmatpush1.bf16.msra.mxu0 %v1320
          %1369 = vmatprep.subr.bf16.mxu0 0
          %1370 = vmatpush1.bf16.msra.mxu0 %v1322
          %1371 = vmatprep.subr.bf16.mxu0 0
          %1372 = vmatpush1.bf16.msra.mxu0 %v1324
          %1373 = vmatprep.subr.bf16.mxu0 0
          %1374 = vmatpush1.bf16.msra.mxu0 %v1326
          %1375 = vmatprep.subr.bf16.mxu0 0
          %1376 = vmatpush1.bf16.msra.mxu0 %v1328
          %1377 = vmatprep.subr.bf16.mxu0 0
          %1378 = vmatpush1.bf16.msra.mxu0 %v1330
          %1379 = vmatprep.subr.bf16.mxu0 0
          %1380 = vmatpush1.bf16.msra.mxu0 %v1332
          %1381 = vmatprep.subr.bf16.mxu0 0
          %1382 = vmatpush1.bf16.msra.mxu0 %v1334
          %1383 = vmatprep.subr.bf16.mxu0 0
          %1384 = vmatpush1.bf16.msra.mxu0 %v1336
          %1385 = vmatprep.subr.bf16.mxu0 0
          %1386 = vmatpush1.bf16.msra.mxu0 %v1338
          %1387 = vmatprep.subr.bf16.mxu0 0
          %1388 = vmatpush1.bf16.msra.mxu0 %v1340
          %1389 = vmatprep.subr.bf16.mxu0 0
          %1390 = vmatpush1.bf16.msra.mxu0 %v1342
          %1391 = vmatprep.subr.bf16.mxu0 0
          %1392 = vmatpush1.bf16.msra.mxu0 %v1344
          %1393 = vmatprep.mubr.bf16.mxu0 %v1282
          %1394 = vmatmul.mubr.bf16.gmra.mrb[0].mxu0 %v1281
          %v1395 = vpop.f32.mrb[0].mxu0
          %v1396 = vadd.f32 0.0, %v1395
          %v1397 = vpop.f32.mrb[0].mxu0
          %v1398 = vpop.f32.mrb[0].mxu0
          %v1399 = vadd.f32 0.0, %v1398
          %v1400 = vpop.f32.mrb[0].mxu0
          %1401 = vmatprep.mubr.bf16.mxu0 %v1284
          %1402 = vmatmul.mubr.bf16.gmra.mrb[0].mxu0 %v1283
          %v1403 = vpop.f32.mrb[0].mxu0
          %v1404 = vadd.f32 0.0, %v1403
          %v1405 = vpop.f32.mrb[0].mxu0
          %v1406 = vpop.f32.mrb[0].mxu0
          %v1407 = vadd.f32 0.0, %v1406
          %v1408 = vpop.f32.mrb[0].mxu0
          %1409 = vmatprep.mubr.bf16.mxu0 %v1286
          %1410 = vmatmul.mubr.bf16.gmra.mrb[0].mxu0 %v1285
          %v1411 = vpop.f32.mrb[0].mxu0
          %v1412 = vadd.f32 0.0, %v1411
          %v1413 = vpop.f32.mrb[0].mxu0
          %v1414 = vpop.f32.mrb[0].mxu0
          %v1415 = vadd.f32 0.0, %v1414
          %v1416 = vpop.f32.mrb[0].mxu0
          %1417 = vmatprep.mubr.bf16.mxu0 %v1288
          %1418 = vmatmul.mubr.bf16.gmra.mrb[0].mxu0 %v1287
          %v1419 = vpop.f32.mrb[0].mxu0
          %v1420 = vadd.f32 0.0, %v1419
          %v1421 = vpop.f32.mrb[0].mxu0
          %v1422 = vpop.f32.mrb[0].mxu0
          %v1423 = vadd.f32 0.0, %v1422
          %v1424 = vpop.f32.mrb[0].mxu0
          %1425 = vmatprep.mubr.bf16.mxu0 %v1290
          %1426 = vmatmul.mubr.bf16.gmra.mrb[0].mxu0 %v1289
          %v1427 = vpop.f32.mrb[0].mxu0
          %v1428 = vadd.f32 0.0, %v1427
          %v1429 = vpop.f32.mrb[0].mxu0
          %v1430 = vpop.f32.mrb[0].mxu0
          %v1431 = vadd.f32 0.0, %v1430
          %v1432 = vpop.f32.mrb[0].mxu0
          %1433 = vmatprep.mubr.bf16.mxu0 %v1292
          %1434 = vmatmul.mubr.bf16.gmra.mrb[0].mxu0 %v1291
          %v1435 = vpop.f32.mrb[0].mxu0
          %v1436 = vadd.f32 0.0, %v1435
          %v1437 = vpop.f32.mrb[0].mxu0
          %v1438 = vpop.f32.mrb[0].mxu0
          %v1439 = vadd.f32 0.0, %v1438
          %v1440 = vpop.f32.mrb[0].mxu0
          %1441 = vmatprep.mubr.bf16.mxu0 %v1294
          %1442 = vmatmul.mubr.bf16.gmra.mrb[0].mxu0 %v1293
          %v1443 = vpop.f32.mrb[0].mxu0
          %v1444 = vadd.f32 0.0, %v1443
          %v1445 = vpop.f32.mrb[0].mxu0
          %v1446 = vpop.f32.mrb[0].mxu0
          %v1447 = vadd.f32 0.0, %v1446
          %v1448 = vpop.f32.mrb[0].mxu0
          %1449 = vmatprep.mubr.bf16.mxu0 %v1296
          %1450 = vmatmul.mubr.bf16.gmra.mrb[0].mxu0 %v1295
          %v1451 = vpop.f32.mrb[0].mxu0
          %v1452 = vadd.f32 0.0, %v1451
          %v1453 = vpop.f32.mrb[0].mxu0
          %v1454 = vpop.f32.mrb[0].mxu0
          %v1455 = vadd.f32 0.0, %v1454
          %v1456 = vpop.f32.mrb[0].mxu0
          %1457 = vdwg.mxu0
          %s1458 = scalar_lea.vmem %s553, 384 [#allocation6]
          %v1459 = vld [vmem:[%s1458] sm:$0xff]
          %v1460 = vld [vmem:[%s1458 + $0x8] sm:$0xff]
          %v1461 = vld [vmem:[%s1458 + $0x10] sm:$0xff]
          %v1462 = vld [vmem:[%s1458 + $0x18] sm:$0xff]
          %v1463 = vld [vmem:[%s1458 + $0x20] sm:$0xff]
          %v1464 = vld [vmem:[%s1458 + $0x28] sm:$0xff]
          %v1465 = vld [vmem:[%s1458 + $0x30] sm:$0xff]
          %v1466 = vld [vmem:[%s1458 + $0x38] sm:$0xff]
          %v1467 = vld [vmem:[%s1458 + $0x40] sm:$0xff]
          %v1468 = vld [vmem:[%s1458 + $0x48] sm:$0xff]
          %v1469 = vld [vmem:[%s1458 + $0x50] sm:$0xff]
          %v1470 = vld [vmem:[%s1458 + $0x58] sm:$0xff]
          %v1471 = vld [vmem:[%s1458 + $0x60] sm:$0xff]
          %v1472 = vld [vmem:[%s1458 + $0x68] sm:$0xff]
          %v1473 = vld [vmem:[%s1458 + $0x70] sm:$0xff]
          %v1474 = vld [vmem:[%s1458 + $0x78] sm:$0xff]
          %v1491 = vunpack.c.l.b16 %v1459
          %v1492 = vunpack.c.h.b16 %v1459
          %v1493 = vunpack.c.l.b16 %v1460
          %v1494 = vunpack.c.h.b16 %v1460
          %v1495 = vunpack.c.l.b16 %v1461
          %v1496 = vunpack.c.h.b16 %v1461
          %v1497 = vunpack.c.l.b16 %v1462
          %v1498 = vunpack.c.h.b16 %v1462
          %v1499 = vunpack.c.l.b16 %v1463
          %v1500 = vunpack.c.h.b16 %v1463
          %v1501 = vunpack.c.l.b16 %v1464
          %v1502 = vunpack.c.h.b16 %v1464
          %v1503 = vunpack.c.l.b16 %v1465
          %v1504 = vunpack.c.h.b16 %v1465
          %v1505 = vunpack.c.l.b16 %v1466
          %v1506 = vunpack.c.h.b16 %v1466
          %v1507 = vunpack.c.l.b16 %v1467
          %v1508 = vunpack.c.h.b16 %v1467
          %v1509 = vunpack.c.l.b16 %v1468
          %v1510 = vunpack.c.h.b16 %v1468
          %v1511 = vunpack.c.l.b16 %v1469
          %v1512 = vunpack.c.h.b16 %v1469
          %v1513 = vunpack.c.l.b16 %v1470
          %v1514 = vunpack.c.h.b16 %v1470
          %v1515 = vunpack.c.l.b16 %v1471
          %v1516 = vunpack.c.h.b16 %v1471
          %v1517 = vunpack.c.l.b16 %v1472
          %v1518 = vunpack.c.h.b16 %v1472
          %v1519 = vunpack.c.l.b16 %v1473
          %v1520 = vunpack.c.h.b16 %v1473
          %v1521 = vunpack.c.l.b16 %v1474
          %v1522 = vunpack.c.h.b16 %v1474
          %v1523 = vpack.c.b16 %v1493, %v1491
          %v1524 = vpack.c.b16 %v1494, %v1492
          %v1525 = vpack.c.b16 %v1497, %v1495
          %v1526 = vpack.c.b16 %v1498, %v1496
          %v1527 = vpack.c.b16 %v1501, %v1499
          %v1528 = vpack.c.b16 %v1502, %v1500
          %v1529 = vpack.c.b16 %v1505, %v1503
          %v1530 = vpack.c.b16 %v1506, %v1504
          %v1531 = vpack.c.b16 %v1509, %v1507
          %v1532 = vpack.c.b16 %v1510, %v1508
          %v1533 = vpack.c.b16 %v1513, %v1511
          %v1534 = vpack.c.b16 %v1514, %v1512
          %v1535 = vpack.c.b16 %v1517, %v1515
          %v1536 = vpack.c.b16 %v1518, %v1516
          %v1537 = vpack.c.b16 %v1521, %v1519
          %v1538 = vpack.c.b16 %v1522, %v1520
          %1555 = vrot.lane.b32.xlu0 %v845, 32
          %v1556 = vpop.permute.xlu0 %1555
          %1557 = vrot.lane.b32.xlu0 %v846, 32
          %v1558 = vpop.permute.xlu0 %1557
          %1559 = vrot.lane.b32.xlu0 %v847, 32
          %v1560 = vpop.permute.xlu0 %1559
          %1561 = vrot.lane.b32.xlu0 %v848, 32
          %v1562 = vpop.permute.xlu0 %1561
          %1563 = vrot.lane.b32.xlu0 %v849, 32
          %v1564 = vpop.permute.xlu0 %1563
          %1565 = vrot.lane.b32.xlu0 %v850, 32
          %v1566 = vpop.permute.xlu0 %1565
          %1567 = vrot.lane.b32.xlu0 %v851, 32
          %v1568 = vpop.permute.xlu0 %1567
          %1569 = vrot.lane.b32.xlu0 %v852, 32
          %v1570 = vpop.permute.xlu0 %1569
          %1571 = vrot.lane.b32.xlu0 %v853, 32
          %v1572 = vpop.permute.xlu0 %1571
          %1573 = vrot.lane.b32.xlu0 %v854, 32
          %v1574 = vpop.permute.xlu0 %1573
          %1575 = vrot.lane.b32.xlu0 %v855, 32
          %v1576 = vpop.permute.xlu0 %1575
          %1577 = vrot.lane.b32.xlu0 %v856, 32
          %v1578 = vpop.permute.xlu0 %1577
          %1579 = vrot.lane.b32.xlu0 %v857, 32
          %v1580 = vpop.permute.xlu0 %1579
          %1581 = vrot.lane.b32.xlu0 %v858, 32
          %v1582 = vpop.permute.xlu0 %1581
          %1583 = vrot.lane.b32.xlu0 %v859, 32
          %v1584 = vpop.permute.xlu0 %1583
          %1585 = vrot.lane.b32.xlu0 %v860, 32
          %v1586 = vpop.permute.xlu0 %1585
          %1603 = vmatprep.subr.bf16.mxu0 0
          %1604 = vmatpush1.bf16.msra.mxu0 %v1556
          %1605 = vmatprep.subr.bf16.mxu0 0
          %1606 = vmatpush1.bf16.msra.mxu0 %v1558
          %1607 = vmatprep.subr.bf16.mxu0 0
          %1608 = vmatpush1.bf16.msra.mxu0 %v1560
          %1609 = vmatprep.subr.bf16.mxu0 0
          %1610 = vmatpush1.bf16.msra.mxu0 %v1562
          %1611 = vmatprep.subr.bf16.mxu0 0
          %1612 = vmatpush1.bf16.msra.mxu0 %v1564
          %1613 = vmatprep.subr.bf16.mxu0 0
          %1614 = vmatpush1.bf16.msra.mxu0 %v1566
          %1615 = vmatprep.subr.bf16.mxu0 0
          %1616 = vmatpush1.bf16.msra.mxu0 %v1568
          %1617 = vmatprep.subr.bf16.mxu0 0
          %1618 = vmatpush1.bf16.msra.mxu0 %v1570
          %1619 = vmatprep.subr.bf16.mxu0 0
          %1620 = vmatpush1.bf16.msra.mxu0 %v1572
          %1621 = vmatprep.subr.bf16.mxu0 0
          %1622 = vmatpush1.bf16.msra.mxu0 %v1574
          %1623 = vmatprep.subr.bf16.mxu0 0
          %1624 = vmatpush1.bf16.msra.mxu0 %v1576
          %1625 = vmatprep.subr.bf16.mxu0 0
          %1626 = vmatpush1.bf16.msra.mxu0 %v1578
          %1627 = vmatprep.subr.bf16.mxu0 0
          %1628 = vmatpush1.bf16.msra.mxu0 %v1580
          %1629 = vmatprep.subr.bf16.mxu0 0
          %1630 = vmatpush1.bf16.msra.mxu0 %v1582
          %1631 = vmatprep.subr.bf16.mxu0 0
          %1632 = vmatpush1.bf16.msra.mxu0 %v1584
          %1633 = vmatprep.subr.bf16.mxu0 0
          %1634 = vmatpush1.bf16.msra.mxu0 %v1586
          %1635 = vmatprep.mubr.bf16.mxu0 %v1524
          %1636 = vmatmul.mubr.bf16.gmra.mrb[0].mxu0 %v1523
          %v1637 = vpop.f32.mrb[0].mxu0
          %v1638 = vadd.f32 0.0, %v1637
          %v1639 = vpop.f32.mrb[0].mxu0
          %v1640 = vpop.f32.mrb[0].mxu0
          %v1641 = vadd.f32 0.0, %v1640
          %v1642 = vpop.f32.mrb[0].mxu0
          %1643 = vmatprep.mubr.bf16.mxu0 %v1526
          %1644 = vmatmul.mubr.bf16.gmra.mrb[0].mxu0 %v1525
          %v1645 = vpop.f32.mrb[0].mxu0
          %v1646 = vadd.f32 0.0, %v1645
          %v1647 = vpop.f32.mrb[0].mxu0
          %v1648 = vpop.f32.mrb[0].mxu0
          %v1649 = vadd.f32 0.0, %v1648
          %v1650 = vpop.f32.mrb[0].mxu0
          %1651 = vmatprep.mubr.bf16.mxu0 %v1528
          %1652 = vmatmul.mubr.bf16.gmra.mrb[0].mxu0 %v1527
          %v1653 = vpop.f32.mrb[0].mxu0
          %v1654 = vadd.f32 0.0, %v1653
          %v1655 = vpop.f32.mrb[0].mxu0
          %v1656 = vpop.f32.mrb[0].mxu0
          %v1657 = vadd.f32 0.0, %v1656
          %v1658 = vpop.f32.mrb[0].mxu0
          %1659 = vmatprep.mubr.bf16.mxu0 %v1530
          %1660 = vmatmul.mubr.bf16.gmra.mrb[0].mxu0 %v1529
          %v1661 = vpop.f32.mrb[0].mxu0
          %v1662 = vadd.f32 0.0, %v1661
          %v1663 = vpop.f32.mrb[0].mxu0
          %v1664 = vpop.f32.mrb[0].mxu0
          %v1665 = vadd.f32 0.0, %v1664
          %v1666 = vpop.f32.mrb[0].mxu0
          %1667 = vmatprep.mubr.bf16.mxu0 %v1532
          %1668 = vmatmul.mubr.bf16.gmra.mrb[0].mxu0 %v1531
          %v1669 = vpop.f32.mrb[0].mxu0
          %v1670 = vadd.f32 0.0, %v1669
          %v1671 = vpop.f32.mrb[0].mxu0
          %v1672 = vpop.f32.mrb[0].mxu0
          %v1673 = vadd.f32 0.0, %v1672
          %v1674 = vpop.f32.mrb[0].mxu0
          %1675 = vmatprep.mubr.bf16.mxu0 %v1534
          %1676 = vmatmul.mubr.bf16.gmra.mrb[0].mxu0 %v1533
          %v1677 = vpop.f32.mrb[0].mxu0
          %v1678 = vadd.f32 0.0, %v1677
          %v1679 = vpop.f32.mrb[0].mxu0
          %v1680 = vpop.f32.mrb[0].mxu0
          %v1681 = vadd.f32 0.0, %v1680
          %v1682 = vpop.f32.mrb[0].mxu0
          %1683 = vmatprep.mubr.bf16.mxu0 %v1536
          %1684 = vmatmul.mubr.bf16.gmra.mrb[0].mxu0 %v1535
          %v1685 = vpop.f32.mrb[0].mxu0
          %v1686 = vadd.f32 0.0, %v1685
          %v1687 = vpop.f32.mrb[0].mxu0
          %v1688 = vpop.f32.mrb[0].mxu0
          %v1689 = vadd.f32 0.0, %v1688
          %v1690 = vpop.f32.mrb[0].mxu0
          %1691 = vmatprep.mubr.bf16.mxu0 %v1538
          %1692 = vmatmul.mubr.bf16.gmra.mrb[0].mxu0 %v1537
          %v1693 = vpop.f32.mrb[0].mxu0
          %v1694 = vadd.f32 0.0, %v1693
          %v1695 = vpop.f32.mrb[0].mxu0
          %v1696 = vpop.f32.mrb[0].mxu0
          %v1697 = vadd.f32 0.0, %v1696
          %v1698 = vpop.f32.mrb[0].mxu0
          %1699 = vdwg.mxu0
          %v1700 = vld [vmem:[#allocation2] sm:$0xff]
          %v1701 = vld [vmem:[#allocation2 + $0x8] sm:$0xff]
          %v1702 = vld [vmem:[#allocation2 + $0x10] sm:$0xff]
          %v1703 = vld [vmem:[#allocation2 + $0x18] sm:$0xff]
          %v1704 = vld [vmem:[#allocation2 + $0x20] sm:$0xff]
          %v1705 = vld [vmem:[#allocation2 + $0x28] sm:$0xff]
          %v1706 = vld [vmem:[#allocation2 + $0x30] sm:$0xff]
          %v1707 = vld [vmem:[#allocation2 + $0x38] sm:$0xff]
          %v1708 = vld [vmem:[#allocation2 + $0x40] sm:$0xff]
          %v1709 = vld [vmem:[#allocation2 + $0x48] sm:$0xff]
          %v1710 = vld [vmem:[#allocation2 + $0x50] sm:$0xff]
          %v1711 = vld [vmem:[#allocation2 + $0x58] sm:$0xff]
          %v1712 = vld [vmem:[#allocation2 + $0x60] sm:$0xff]
          %v1713 = vld [vmem:[#allocation2 + $0x68] sm:$0xff]
          %v1714 = vld [vmem:[#allocation2 + $0x70] sm:$0xff]
          %v1715 = vld [vmem:[#allocation2 + $0x78] sm:$0xff]
          %1732 = vrot.lane.b32.xlu0 %v1154, 32
          %v1733 = vpop.permute.xlu0 %1732
          %1734 = vrot.lane.b32.xlu0 %v1157, 32
          %v1735 = vpop.permute.xlu0 %1734
          %1736 = vrot.lane.b32.xlu0 %v1162, 32
          %v1737 = vpop.permute.xlu0 %1736
          %1738 = vrot.lane.b32.xlu0 %v1165, 32
          %v1739 = vpop.permute.xlu0 %1738
          %1740 = vrot.lane.b32.xlu0 %v1170, 32
          %v1741 = vpop.permute.xlu0 %1740
          %1742 = vrot.lane.b32.xlu0 %v1173, 32
          %v1743 = vpop.permute.xlu0 %1742
          %1744 = vrot.lane.b32.xlu0 %v1178, 32
          %v1745 = vpop.permute.xlu0 %1744
          %1746 = vrot.lane.b32.xlu0 %v1181, 32
          %v1747 = vpop.permute.xlu0 %1746
          %1748 = vrot.lane.b32.xlu0 %v1186, 32
          %v1749 = vpop.permute.xlu0 %1748
          %1750 = vrot.lane.b32.xlu0 %v1189, 32
          %v1751 = vpop.permute.xlu0 %1750
          %1752 = vrot.lane.b32.xlu0 %v1194, 32
          %v1753 = vpop.permute.xlu0 %1752
          %1754 = vrot.lane.b32.xlu0 %v1197, 32
          %v1755 = vpop.permute.xlu0 %1754
          %1756 = vrot.lane.b32.xlu0 %v1202, 32
          %v1757 = vpop.permute.xlu0 %1756
          %1758 = vrot.lane.b32.xlu0 %v1205, 32
          %v1759 = vpop.permute.xlu0 %1758
          %1760 = vrot.lane.b32.xlu0 %v1210, 32
          %v1761 = vpop.permute.xlu0 %1760
          %1762 = vrot.lane.b32.xlu0 %v1213, 32
          %v1763 = vpop.permute.xlu0 %1762
          %1796 = vrot.lane.b32.xlu0 %v1396, 64
          %v1797 = vpop.permute.xlu0 %1796
          %1798 = vrot.lane.b32.xlu0 %v1399, 64
          %v1799 = vpop.permute.xlu0 %1798
          %1800 = vrot.lane.b32.xlu0 %v1404, 64
          %v1801 = vpop.permute.xlu0 %1800
          %1802 = vrot.lane.b32.xlu0 %v1407, 64
          %v1803 = vpop.permute.xlu0 %1802
          %1804 = vrot.lane.b32.xlu0 %v1412, 64
          %v1805 = vpop.permute.xlu0 %1804
          %1806 = vrot.lane.b32.xlu0 %v1415, 64
          %v1807 = vpop.permute.xlu0 %1806
          %1808 = vrot.lane.b32.xlu0 %v1420, 64
          %v1809 = vpop.permute.xlu0 %1808
          %1810 = vrot.lane.b32.xlu0 %v1423, 64
          %v1811 = vpop.permute.xlu0 %1810
          %1812 = vrot.lane.b32.xlu0 %v1428, 64
          %v1813 = vpop.permute.xlu0 %1812
          %1814 = vrot.lane.b32.xlu0 %v1431, 64
          %v1815 = vpop.permute.xlu0 %1814
          %1816 = vrot.lane.b32.xlu0 %v1436, 64
          %v1817 = vpop.permute.xlu0 %1816
          %1818 = vrot.lane.b32.xlu0 %v1439, 64
          %v1819 = vpop.permute.xlu0 %1818
          %1820 = vrot.lane.b32.xlu0 %v1444, 64
          %v1821 = vpop.permute.xlu0 %1820
          %1822 = vrot.lane.b32.xlu0 %v1447, 64
          %v1823 = vpop.permute.xlu0 %1822
          %1824 = vrot.lane.b32.xlu0 %v1452, 64
          %v1825 = vpop.permute.xlu0 %1824
          %1826 = vrot.lane.b32.xlu0 %v1455, 64
          %v1827 = vpop.permute.xlu0 %1826
          %1860 = vrot.lane.b32.xlu0 %v1638, 96
          %v1861 = vpop.permute.xlu0 %1860
          %1862 = vrot.lane.b32.xlu0 %v1641, 96
          %v1863 = vpop.permute.xlu0 %1862
          %1864 = vrot.lane.b32.xlu0 %v1646, 96
          %v1865 = vpop.permute.xlu0 %1864
          %1866 = vrot.lane.b32.xlu0 %v1649, 96
          %v1867 = vpop.permute.xlu0 %1866
          %1868 = vrot.lane.b32.xlu0 %v1654, 96
          %v1869 = vpop.permute.xlu0 %1868
          %1870 = vrot.lane.b32.xlu0 %v1657, 96
          %v1871 = vpop.permute.xlu0 %1870
          %1872 = vrot.lane.b32.xlu0 %v1662, 96
          %v1873 = vpop.permute.xlu0 %1872
          %1874 = vrot.lane.b32.xlu0 %v1665, 96
          %v1875 = vpop.permute.xlu0 %1874
          %1876 = vrot.lane.b32.xlu0 %v1670, 96
          %v1877 = vpop.permute.xlu0 %1876
          %1878 = vrot.lane.b32.xlu0 %v1673, 96
          %v1879 = vpop.permute.xlu0 %1878
          %1880 = vrot.lane.b32.xlu0 %v1678, 96
          %v1881 = vpop.permute.xlu0 %1880
          %1882 = vrot.lane.b32.xlu0 %v1681, 96
          %v1883 = vpop.permute.xlu0 %1882
          %1884 = vrot.lane.b32.xlu0 %v1686, 96
          %v1885 = vpop.permute.xlu0 %1884
          %1886 = vrot.lane.b32.xlu0 %v1689, 96
          %v1887 = vpop.permute.xlu0 %1886
          %1888 = vrot.lane.b32.xlu0 %v1694, 96
          %v1889 = vpop.permute.xlu0 %1888
          %1890 = vrot.lane.b32.xlu0 %v1697, 96
          %v1891 = vpop.permute.xlu0 %1890
          %vm1908 = vcmask 261120
          %v1909 = vsel %vm1908, %v912, %v1733
          %v1910 = vsel %vm1908, %v915, %v1735
          %v1911 = vsel %vm1908, %v920, %v1737
          %v1912 = vsel %vm1908, %v923, %v1739
          %v1913 = vsel %vm1908, %v928, %v1741
          %v1914 = vsel %vm1908, %v931, %v1743
          %v1915 = vsel %vm1908, %v936, %v1745
          %v1916 = vsel %vm1908, %v939, %v1747
          %v1917 = vsel %vm1908, %v944, %v1749
          %v1918 = vsel %vm1908, %v947, %v1751
          %v1919 = vsel %vm1908, %v952, %v1753
          %v1920 = vsel %vm1908, %v955, %v1755
          %v1921 = vsel %vm1908, %v960, %v1757
          %v1922 = vsel %vm1908, %v963, %v1759
          %v1923 = vsel %vm1908, %v968, %v1761
          %v1924 = vsel %vm1908, %v971, %v1763
          %vm1925 = vcmask 523264
          %v1926 = vsel %vm1925, %v1909, %v1797
          %v1927 = vsel %vm1925, %v1910, %v1799
          %v1928 = vsel %vm1925, %v1911, %v1801
          %v1929 = vsel %vm1925, %v1912, %v1803
          %v1930 = vsel %vm1925, %v1913, %v1805
          %v1931 = vsel %vm1925, %v1914, %v1807
          %v1932 = vsel %vm1925, %v1915, %v1809
          %v1933 = vsel %vm1925, %v1916, %v1811
          %v1934 = vsel %vm1925, %v1917, %v1813
          %v1935 = vsel %vm1925, %v1918, %v1815
          %v1936 = vsel %vm1925, %v1919, %v1817
          %v1937 = vsel %vm1925, %v1920, %v1819
          %v1938 = vsel %vm1925, %v1921, %v1821
          %v1939 = vsel %vm1925, %v1922, %v1823
          %v1940 = vsel %vm1925, %v1923, %v1825
          %v1941 = vsel %vm1925, %v1924, %v1827
          %vm1942 = vcmask 785408
          %v1943 = vsel %vm1942, %v1926, %v1861
          %v1944 = vsel %vm1942, %v1927, %v1863
          %v1945 = vsel %vm1942, %v1928, %v1865
          %v1946 = vsel %vm1942, %v1929, %v1867
          %v1947 = vsel %vm1942, %v1930, %v1869
          %v1948 = vsel %vm1942, %v1931, %v1871
          %v1949 = vsel %vm1942, %v1932, %v1873
          %v1950 = vsel %vm1942, %v1933, %v1875
          %v1951 = vsel %vm1942, %v1934, %v1877
          %v1952 = vsel %vm1942, %v1935, %v1879
          %v1953 = vsel %vm1942, %v1936, %v1881
          %v1954 = vsel %vm1942, %v1937, %v1883
          %v1955 = vsel %vm1942, %v1938, %v1885
          %v1956 = vsel %vm1942, %v1939, %v1887
          %v1957 = vsel %vm1942, %v1940, %v1889
          %v1958 = vsel %vm1942, %v1941, %v1891
          %v1959 = vadd.f32 %v1700, %v1943
          %v1960 = vadd.f32 %v1701, %v1944
          %v1961 = vadd.f32 %v1702, %v1945
          %v1962 = vadd.f32 %v1703, %v1946
          %v1963 = vadd.f32 %v1704, %v1947
          %v1964 = vadd.f32 %v1705, %v1948
          %v1965 = vadd.f32 %v1706, %v1949
          %v1966 = vadd.f32 %v1707, %v1950
          %v1967 = vadd.f32 %v1708, %v1951
          %v1968 = vadd.f32 %v1709, %v1952
          %v1969 = vadd.f32 %v1710, %v1953
          %v1970 = vadd.f32 %v1711, %v1954
          %v1971 = vadd.f32 %v1712, %v1955
          %v1972 = vadd.f32 %v1713, %v1956
          %v1973 = vadd.f32 %v1714, %v1957
          %v1974 = vadd.f32 %v1715, %v1958
          %1975 = vst [vmem:[#allocation2] sm:$0xff] %v1959
          %1976 = vst [vmem:[#allocation2 + $0x8] sm:$0xff] %v1960
          %1977 = vst [vmem:[#allocation2 + $0x10] sm:$0xff] %v1961
          %1978 = vst [vmem:[#allocation2 + $0x18] sm:$0xff] %v1962
          %1979 = vst [vmem:[#allocation2 + $0x20] sm:$0xff] %v1963
          %1980 = vst [vmem:[#allocation2 + $0x28] sm:$0xff] %v1964
          %1981 = vst [vmem:[#allocation2 + $0x30] sm:$0xff] %v1965
          %1982 = vst [vmem:[#allocation2 + $0x38] sm:$0xff] %v1966
          %1983 = vst [vmem:[#allocation2 + $0x40] sm:$0xff] %v1967
          %1984 = vst [vmem:[#allocation2 + $0x48] sm:$0xff] %v1968
          %1985 = vst [vmem:[#allocation2 + $0x50] sm:$0xff] %v1969
          %1986 = vst [vmem:[#allocation2 + $0x58] sm:$0xff] %v1970
          %1987 = vst [vmem:[#allocation2 + $0x60] sm:$0xff] %v1971
          %1988 = vst [vmem:[#allocation2 + $0x68] sm:$0xff] %v1972
          %1989 = vst [vmem:[#allocation2 + $0x70] sm:$0xff] %v1973
          %1990 = vst [vmem:[#allocation2 + $0x78] sm:$0xff] %v1974
        $region82: #{dmcr_forward.2} parent=69 // pred_fallthru
          _
        // Predicated region
        $region83: #{dmcr_forward.2} parent=69 // pred_check
          %p1991 = pneg %p628
        $region84: #{dmcr_forward.2} parent=69 // pred_check_branch
          %1993 = sbr.rel (%p1991) target = $region86
        $region85: #{dmcr_forward.2} parent=69 // pred_region
          %v1994 = vld [vmem:[#allocation2] sm:$0xff]
          %v1995 = vld [vmem:[#allocation2 + $0x8] sm:$0xff]
          %v1996 = vld [vmem:[#allocation2 + $0x10] sm:$0xff]
          %v1997 = vld [vmem:[#allocation2 + $0x18] sm:$0xff]
          %v1998 = vld [vmem:[#allocation2 + $0x20] sm:$0xff]
          %v1999 = vld [vmem:[#allocation2 + $0x28] sm:$0xff]
          %v2000 = vld [vmem:[#allocation2 + $0x30] sm:$0xff]
          %v2001 = vld [vmem:[#allocation2 + $0x38] sm:$0xff]
          %v2002 = vld [vmem:[#allocation2 + $0x40] sm:$0xff]
          %v2003 = vld [vmem:[#allocation2 + $0x48] sm:$0xff]
          %v2004 = vld [vmem:[#allocation2 + $0x50] sm:$0xff]
          %v2005 = vld [vmem:[#allocation2 + $0x58] sm:$0xff]
          %v2006 = vld [vmem:[#allocation2 + $0x60] sm:$0xff]
          %v2007 = vld [vmem:[#allocation2 + $0x68] sm:$0xff]
          %v2008 = vld [vmem:[#allocation2 + $0x70] sm:$0xff]
          %v2009 = vld [vmem:[#allocation2 + $0x78] sm:$0xff]
          %vm2010 = vcmp.ge.f32.partialorder %v1994, 0.0
          %vm2011 = vcmp.ge.f32.partialorder %v1995, 0.0
          %vm2012 = vcmp.ge.f32.partialorder %v1996, 0.0
          %vm2013 = vcmp.ge.f32.partialorder %v1997, 0.0
          %vm2014 = vcmp.ge.f32.partialorder %v1998, 0.0
          %vm2015 = vcmp.ge.f32.partialorder %v1999, 0.0
          %vm2016 = vcmp.ge.f32.partialorder %v2000, 0.0
          %vm2017 = vcmp.ge.f32.partialorder %v2001, 0.0
          %vm2018 = vcmp.ge.f32.partialorder %v2002, 0.0
          %vm2019 = vcmp.ge.f32.partialorder %v2003, 0.0
          %vm2020 = vcmp.ge.f32.partialorder %v2004, 0.0
          %vm2021 = vcmp.ge.f32.partialorder %v2005, 0.0
          %vm2022 = vcmp.ge.f32.partialorder %v2006, 0.0
          %vm2023 = vcmp.ge.f32.partialorder %v2007, 0.0
          %vm2024 = vcmp.ge.f32.partialorder %v2008, 0.0
          %vm2025 = vcmp.ge.f32.partialorder %v2009, 0.0
          %v2026 = vmul.f32 %v1994, 0.01
          %v2027 = vmul.f32 %v1995, 0.01
          %v2028 = vmul.f32 %v1996, 0.01
          %v2029 = vmul.f32 %v1997, 0.01
          %v2030 = vmul.f32 %v1998, 0.01
          %v2031 = vmul.f32 %v1999, 0.01
          %v2032 = vmul.f32 %v2000, 0.01
          %v2033 = vmul.f32 %v2001, 0.01
          %v2034 = vmul.f32 %v2002, 0.01
          %v2035 = vmul.f32 %v2003, 0.01
          %v2036 = vmul.f32 %v2004, 0.01
          %v2037 = vmul.f32 %v2005, 0.01
          %v2038 = vmul.f32 %v2006, 0.01
          %v2039 = vmul.f32 %v2007, 0.01
          %v2040 = vmul.f32 %v2008, 0.01
          %v2041 = vmul.f32 %v2009, 0.01
          %v2042 = vsel %vm2010, %v1994, %v2026
          %v2043 = vsel %vm2011, %v1995, %v2027
          %v2044 = vsel %vm2012, %v1996, %v2028
          %v2045 = vsel %vm2013, %v1997, %v2029
          %v2046 = vsel %vm2014, %v1998, %v2030
          %v2047 = vsel %vm2015, %v1999, %v2031
          %v2048 = vsel %vm2016, %v2000, %v2032
          %v2049 = vsel %vm2017, %v2001, %v2033
          %v2050 = vsel %vm2018, %v2002, %v2034
          %v2051 = vsel %vm2019, %v2003, %v2035
          %v2052 = vsel %vm2020, %v2004, %v2036
          %v2053 = vsel %vm2021, %v2005, %v2037
          %v2054 = vsel %vm2022, %v2006, %v2038
          %v2055 = vsel %vm2023, %v2007, %v2039
          %v2056 = vsel %vm2024, %v2008, %v2040
          %v2057 = vsel %vm2025, %v2009, %v2041
          %v2058 = vpack.c.bf16 %v2043, %v2042
          %v2059 = vpack.c.bf16 %v2045, %v2044
          %v2060 = vpack.c.bf16 %v2047, %v2046
          %v2061 = vpack.c.bf16 %v2049, %v2048
          %v2062 = vpack.c.bf16 %v2051, %v2050
          %v2063 = vpack.c.bf16 %v2053, %v2052
          %v2064 = vpack.c.bf16 %v2055, %v2054
          %v2065 = vpack.c.bf16 %v2057, %v2056
          %v2066 = vld [vmem:[%s4] sm:$0xf]
          %v2067 = vld [vmem:[%s4 + $0x4] sm:$0xf]
          %v2068 = vld [vmem:[%s4 + $0x8] sm:$0xf]
          %v2069 = vld [vmem:[%s4 + $0xc] sm:$0xf]
          %v2074 = vunpack.c.l.b16 %v2066
          %v2075 = vunpack.c.l.b16 %v2067
          %v2076 = vunpack.c.l.b16 %v2068
          %v2077 = vunpack.c.l.b16 %v2069
          %v2078 = vpack.c.b16 %v2075, %v2074
          %v2079 = vpack.c.b16 %v2077, %v2076
          %vm2082 = vcmask 261120
          %v2084 = vsel %vm2082, %v2058, 0
          %v2087 = vsel %vm2082, %v2059, 0
          %v2090 = vsel %vm2082, %v2060, 0
          %v2093 = vsel %vm2082, %v2061, 0
          %v2096 = vsel %vm2082, %v2062, 0
          %v2099 = vsel %vm2082, %v2063, 0
          %v2102 = vsel %vm2082, %v2064, 0
          %v2105 = vsel %vm2082, %v2065, 0
          %2107 = vmatprep.subr.bf16.mxu0 0
          %2108 = vmatpush1.bf16.msra.mxu0 %v2078
          %2109 = vmatprep.subr.bf16.mxu0 0
          %2110 = vmatpush1.bf16.msra.mxu0 %v2079
          %2111 = vmatprep.subr.bf16.mxu0 0
          %2112 = vmatpush1.bf16.msra.mxu0 0
          %2113 = vmatprep.subr.bf16.mxu0 0
          %2114 = vmatpush1.bf16.msra.mxu0 0
          %2115 = vmatprep.subr.bf16.mxu0 0
          %2116 = vmatpush1.bf16.msra.mxu0 0
          %2117 = vmatprep.subr.bf16.mxu0 0
          %2118 = vmatpush1.bf16.msra.mxu0 0
          %2119 = vmatprep.subr.bf16.mxu0 0
          %2120 = vmatpush1.bf16.msra.mxu0 0
          %2121 = vmatprep.subr.bf16.mxu0 0
          %2122 = vmatpush1.bf16.msra.mxu0 0
          %2123 = vmatprep.subr.bf16.mxu0 0
          %2124 = vmatpush1.bf16.msra.mxu0 0
          %2125 = vmatprep.subr.bf16.mxu0 0
          %2126 = vmatpush1.bf16.msra.mxu0 0
          %2127 = vmatprep.subr.bf16.mxu0 0
          %2128 = vmatpush1.bf16.msra.mxu0 0
          %2129 = vmatprep.subr.bf16.mxu0 0
          %2130 = vmatpush1.bf16.msra.mxu0 0
          %2131 = vmatprep.subr.bf16.mxu0 0
          %2132 = vmatpush1.bf16.msra.mxu0 0
          %2133 = vmatprep.subr.bf16.mxu0 0
          %2134 = vmatpush1.bf16.msra.mxu0 0
          %2135 = vmatprep.subr.bf16.mxu0 0
          %2136 = vmatpush1.bf16.msra.mxu0 0
          %2137 = vmatprep.subr.bf16.mxu0 0
          %2138 = vmatpush1.bf16.msra.mxu0 0
          %2139 = vmatprep.mubr.bf16.mxu0 0
          %2140 = vmatmul.mubr.bf16.gmra.mrb[0].mxu0 %v2084
          %v2141 = vpop.f32.mrb[0].mxu0
          %v2142 = vadd.f32 0.0, %v2141
          %v2143 = vpop.f32.mrb[0].mxu0
          %v2144 = vpop.f32.mrb[0].mxu0
          %v2145 = vadd.f32 0.0, %v2144
          %v2146 = vpop.f32.mrb[0].mxu0
          %2147 = vmatprep.mubr.bf16.mxu0 0
          %2148 = vmatmul.mubr.bf16.gmra.mrb[0].mxu0 %v2087
          %v2149 = vpop.f32.mrb[0].mxu0
          %v2150 = vadd.f32 0.0, %v2149
          %v2151 = vpop.f32.mrb[0].mxu0
          %v2152 = vpop.f32.mrb[0].mxu0
          %v2153 = vadd.f32 0.0, %v2152
          %v2154 = vpop.f32.mrb[0].mxu0
          %2155 = vmatprep.mubr.bf16.mxu0 0
          %2156 = vmatmul.mubr.bf16.gmra.mrb[0].mxu0 %v2090
          %v2157 = vpop.f32.mrb[0].mxu0
          %v2158 = vadd.f32 0.0, %v2157
          %v2159 = vpop.f32.mrb[0].mxu0
          %v2160 = vpop.f32.mrb[0].mxu0
          %v2161 = vadd.f32 0.0, %v2160
          %v2162 = vpop.f32.mrb[0].mxu0
          %2163 = vmatprep.mubr.bf16.mxu0 0
          %2164 = vmatmul.mubr.bf16.gmra.mrb[0].mxu0 %v2093
          %v2165 = vpop.f32.mrb[0].mxu0
          %v2166 = vadd.f32 0.0, %v2165
          %v2167 = vpop.f32.mrb[0].mxu0
          %v2168 = vpop.f32.mrb[0].mxu0
          %v2169 = vadd.f32 0.0, %v2168
          %v2170 = vpop.f32.mrb[0].mxu0
          %2171 = vmatprep.mubr.bf16.mxu0 0
          %2172 = vmatmul.mubr.bf16.gmra.mrb[0].mxu0 %v2096
          %v2173 = vpop.f32.mrb[0].mxu0
          %v2174 = vadd.f32 0.0, %v2173
          %v2175 = vpop.f32.mrb[0].mxu0
          %v2176 = vpop.f32.mrb[0].mxu0
          %v2177 = vadd.f32 0.0, %v2176
          %v2178 = vpop.f32.mrb[0].mxu0
          %2179 = vmatprep.mubr.bf16.mxu0 0
          %2180 = vmatmul.mubr.bf16.gmra.mrb[0].mxu0 %v2099
          %v2181 = vpop.f32.mrb[0].mxu0
          %v2182 = vadd.f32 0.0, %v2181
          %v2183 = vpop.f32.mrb[0].mxu0
          %v2184 = vpop.f32.mrb[0].mxu0
          %v2185 = vadd.f32 0.0, %v2184
          %v2186 = vpop.f32.mrb[0].mxu0
          %2187 = vmatprep.mubr.bf16.mxu0 0
          %2188 = vmatmul.mubr.bf16.gmra.mrb[0].mxu0 %v2102
          %v2189 = vpop.f32.mrb[0].mxu0
          %v2190 = vadd.f32 0.0, %v2189
          %v2191 = vpop.f32.mrb[0].mxu0
          %v2192 = vpop.f32.mrb[0].mxu0
          %v2193 = vadd.f32 0.0, %v2192
          %v2194 = vpop.f32.mrb[0].mxu0
          %2195 = vmatprep.mubr.bf16.mxu0 0
          %2196 = vmatmul.mubr.bf16.gmra.mrb[0].mxu0 %v2105
          %v2197 = vpop.f32.mrb[0].mxu0
          %v2198 = vadd.f32 0.0, %v2197
          %v2199 = vpop.f32.mrb[0].mxu0
          %v2200 = vpop.f32.mrb[0].mxu0
          %v2201 = vadd.f32 0.0, %v2200
          %v2202 = vpop.f32.mrb[0].mxu0
          %2203 = vdwg.mxu0
          %v2204 = vtanh.pop %v2142
          %v2205 = vtanh.pop %v2145
          %v2206 = vtanh.pop %v2150
          %v2207 = vtanh.pop %v2153
          %v2208 = vtanh.pop %v2158
          %v2209 = vtanh.pop %v2161
          %v2210 = vtanh.pop %v2166
          %v2211 = vtanh.pop %v2169
          %v2212 = vtanh.pop %v2174
          %v2213 = vtanh.pop %v2177
          %v2214 = vtanh.pop %v2182
          %v2215 = vtanh.pop %v2185
          %v2216 = vtanh.pop %v2190
          %v2217 = vtanh.pop %v2193
          %v2218 = vtanh.pop %v2198
          %v2219 = vtanh.pop %v2201
          %v2220 = vpack.c.bf16 %v2205, %v2204
          %v2221 = vpack.c.bf16 %v2207, %v2206
          %v2222 = vpack.c.bf16 %v2209, %v2208
          %v2223 = vpack.c.bf16 %v2211, %v2210
          %v2224 = vpack.c.bf16 %v2213, %v2212
          %v2225 = vpack.c.bf16 %v2215, %v2214
          %v2226 = vpack.c.bf16 %v2217, %v2216
          %v2227 = vpack.c.bf16 %v2219, %v2218
          %v2228 = vld [vmem:[%s5] sm:$0xf]
          %v2229 = vld [vmem:[%s5 + $0x4] sm:$0xf]
          %v2230 = vld [vmem:[%s5 + $0x8] sm:$0xf]
          %v2231 = vld [vmem:[%s5 + $0xc] sm:$0xf]
          %v2232 = vld [vmem:[%s5 + $0x10] sm:$0xf]
          %v2233 = vld [vmem:[%s5 + $0x14] sm:$0xf]
          %v2234 = vld [vmem:[%s5 + $0x18] sm:$0xf]
          %v2235 = vld [vmem:[%s5 + $0x1c] sm:$0xf]
          %v2236 = vld [vmem:[%s5 + $0x20] sm:$0xf]
          %v2237 = vld [vmem:[%s5 + $0x24] sm:$0xf]
          %v2238 = vld [vmem:[%s5 + $0x28] sm:$0xf]
          %v2239 = vld [vmem:[%s5 + $0x2c] sm:$0xf]
          %v2240 = vld [vmem:[%s5 + $0x30] sm:$0xf]
          %v2241 = vld [vmem:[%s5 + $0x34] sm:$0xf]
          %v2242 = vld [vmem:[%s5 + $0x38] sm:$0xf]
          %v2243 = vld [vmem:[%s5 + $0x3c] sm:$0xf]
          %v2260 = vunpack.c.l.b16 %v2228
          %v2261 = vunpack.c.l.b16 %v2229
          %v2262 = vunpack.c.l.b16 %v2230
          %v2263 = vunpack.c.l.b16 %v2231
          %v2264 = vunpack.c.l.b16 %v2232
          %v2265 = vunpack.c.l.b16 %v2233
          %v2266 = vunpack.c.l.b16 %v2234
          %v2267 = vunpack.c.l.b16 %v2235
          %v2268 = vunpack.c.l.b16 %v2236
          %v2269 = vunpack.c.l.b16 %v2237
          %v2270 = vunpack.c.l.b16 %v2238
          %v2271 = vunpack.c.l.b16 %v2239
          %v2272 = vunpack.c.l.b16 %v2240
          %v2273 = vunpack.c.l.b16 %v2241
          %v2274 = vunpack.c.l.b16 %v2242
          %v2275 = vunpack.c.l.b16 %v2243
          %v2276 = vpack.c.b16 %v2261, %v2260
          %v2277 = vpack.c.b16 %v2263, %v2262
          %v2278 = vpack.c.b16 %v2265, %v2264
          %v2279 = vpack.c.b16 %v2267, %v2266
          %v2280 = vpack.c.b16 %v2269, %v2268
          %v2281 = vpack.c.b16 %v2271, %v2270
          %v2282 = vpack.c.b16 %v2273, %v2272
          %v2283 = vpack.c.b16 %v2275, %v2274
          %2292 = vmatprep.subr.bf16.mxu0 0
          %2293 = vmatpush1.bf16.msra.mxu0 %v2276
          %2294 = vmatprep.subr.bf16.mxu0 0
          %2295 = vmatpush1.bf16.msra.mxu0 %v2277
          %2296 = vmatprep.subr.bf16.mxu0 0
          %2297 = vmatpush1.bf16.msra.mxu0 %v2278
          %2298 = vmatprep.subr.bf16.mxu0 0
          %2299 = vmatpush1.bf16.msra.mxu0 %v2279
          %2300 = vmatprep.subr.bf16.mxu0 0
          %2301 = vmatpush1.bf16.msra.mxu0 %v2280
          %2302 = vmatprep.subr.bf16.mxu0 0
          %2303 = vmatpush1.bf16.msra.mxu0 %v2281
          %2304 = vmatprep.subr.bf16.mxu0 0
          %2305 = vmatpush1.bf16.msra.mxu0 %v2282
          %2306 = vmatprep.subr.bf16.mxu0 0
          %2307 = vmatpush1.bf16.msra.mxu0 %v2283
          %2308 = vmatprep.subr.bf16.mxu0 0
          %2309 = vmatpush1.bf16.msra.mxu0 0
          %2310 = vmatprep.subr.bf16.mxu0 0
          %2311 = vmatpush1.bf16.msra.mxu0 0
          %2312 = vmatprep.subr.bf16.mxu0 0
          %2313 = vmatpush1.bf16.msra.mxu0 0
          %2314 = vmatprep.subr.bf16.mxu0 0
          %2315 = vmatpush1.bf16.msra.mxu0 0
          %2316 = vmatprep.subr.bf16.mxu0 0
          %2317 = vmatpush1.bf16.msra.mxu0 0
          %2318 = vmatprep.subr.bf16.mxu0 0
          %2319 = vmatpush1.bf16.msra.mxu0 0
          %2320 = vmatprep.subr.bf16.mxu0 0
          %2321 = vmatpush1.bf16.msra.mxu0 0
          %2322 = vmatprep.subr.bf16.mxu0 0
          %2323 = vmatpush1.bf16.msra.mxu0 0
          %2324 = vmatprep.mubr.bf16.mxu0 0
          %2325 = vmatmul.mubr.bf16.gmra.mrb[0].mxu0 %v2220
          %v2326 = vpop.f32.mrb[0].mxu0
          %v2327 = vadd.f32 0.0, %v2326
          %v2328 = vpop.f32.mrb[0].mxu0
          %v2329 = vpop.f32.mrb[0].mxu0
          %v2330 = vadd.f32 0.0, %v2329
          %v2331 = vpop.f32.mrb[0].mxu0
          %2332 = vmatprep.mubr.bf16.mxu0 0
          %2333 = vmatmul.mubr.bf16.gmra.mrb[0].mxu0 %v2221
          %v2334 = vpop.f32.mrb[0].mxu0
          %v2335 = vadd.f32 0.0, %v2334
          %v2336 = vpop.f32.mrb[0].mxu0
          %v2337 = vpop.f32.mrb[0].mxu0
          %v2338 = vadd.f32 0.0, %v2337
          %v2339 = vpop.f32.mrb[0].mxu0
          %2340 = vmatprep.mubr.bf16.mxu0 0
          %2341 = vmatmul.mubr.bf16.gmra.mrb[0].mxu0 %v2222
          %v2342 = vpop.f32.mrb[0].mxu0
          %v2343 = vadd.f32 0.0, %v2342
          %v2344 = vpop.f32.mrb[0].mxu0
          %v2345 = vpop.f32.mrb[0].mxu0
          %v2346 = vadd.f32 0.0, %v2345
          %v2347 = vpop.f32.mrb[0].mxu0
          %2348 = vmatprep.mubr.bf16.mxu0 0
          %2349 = vmatmul.mubr.bf16.gmra.mrb[0].mxu0 %v2223
          %v2350 = vpop.f32.mrb[0].mxu0
          %v2351 = vadd.f32 0.0, %v2350
          %v2352 = vpop.f32.mrb[0].mxu0
          %v2353 = vpop.f32.mrb[0].mxu0
          %v2354 = vadd.f32 0.0, %v2353
          %v2355 = vpop.f32.mrb[0].mxu0
          %2356 = vmatprep.mubr.bf16.mxu0 0
          %2357 = vmatmul.mubr.bf16.gmra.mrb[0].mxu0 %v2224
          %v2358 = vpop.f32.mrb[0].mxu0
          %v2359 = vadd.f32 0.0, %v2358
          %v2360 = vpop.f32.mrb[0].mxu0
          %v2361 = vpop.f32.mrb[0].mxu0
          %v2362 = vadd.f32 0.0, %v2361
          %v2363 = vpop.f32.mrb[0].mxu0
          %2364 = vmatprep.mubr.bf16.mxu0 0
          %2365 = vmatmul.mubr.bf16.gmra.mrb[0].mxu0 %v2225
          %v2366 = vpop.f32.mrb[0].mxu0
          %v2367 = vadd.f32 0.0, %v2366
          %v2368 = vpop.f32.mrb[0].mxu0
          %v2369 = vpop.f32.mrb[0].mxu0
          %v2370 = vadd.f32 0.0, %v2369
          %v2371 = vpop.f32.mrb[0].mxu0
          %2372 = vmatprep.mubr.bf16.mxu0 0
          %2373 = vmatmul.mubr.bf16.gmra.mrb[0].mxu0 %v2226
          %v2374 = vpop.f32.mrb[0].mxu0
          %v2375 = vadd.f32 0.0, %v2374
          %v2376 = vpop.f32.mrb[0].mxu0
          %v2377 = vpop.f32.mrb[0].mxu0
          %v2378 = vadd.f32 0.0, %v2377
          %v2379 = vpop.f32.mrb[0].mxu0
          %2380 = vmatprep.mubr.bf16.mxu0 0
          %2381 = vmatmul.mubr.bf16.gmra.mrb[0].mxu0 %v2227
          %v2382 = vpop.f32.mrb[0].mxu0
          %v2383 = vadd.f32 0.0, %v2382
          %v2384 = vpop.f32.mrb[0].mxu0
          %v2385 = vpop.f32.mrb[0].mxu0
          %v2386 = vadd.f32 0.0, %v2385
          %v2387 = vpop.f32.mrb[0].mxu0
          %2388 = vdwg.mxu0
          %2397 = vrot.lane.b32.xlu0 %v2058, 96
          %v2398 = vpop.permute.xlu0 %2397
          %2399 = vrot.lane.b32.xlu0 %v2059, 96
          %v2400 = vpop.permute.xlu0 %2399
          %2401 = vrot.lane.b32.xlu0 %v2060, 96
          %v2402 = vpop.permute.xlu0 %2401
          %2403 = vrot.lane.b32.xlu0 %v2061, 96
          %v2404 = vpop.permute.xlu0 %2403
          %2405 = vrot.lane.b32.xlu0 %v2062, 96
          %v2406 = vpop.permute.xlu0 %2405
          %2407 = vrot.lane.b32.xlu0 %v2063, 96
          %v2408 = vpop.permute.xlu0 %2407
          %2409 = vrot.lane.b32.xlu0 %v2064, 96
          %v2410 = vpop.permute.xlu0 %2409
          %2411 = vrot.lane.b32.xlu0 %v2065, 96
          %v2412 = vpop.permute.xlu0 %2411
          %v2414 = vsel %vm2082, %v2398, 0
          %v2417 = vsel %vm2082, %v2400, 0
          %v2420 = vsel %vm2082, %v2402, 0
          %v2423 = vsel %vm2082, %v2404, 0
          %v2426 = vsel %vm2082, %v2406, 0
          %v2429 = vsel %vm2082, %v2408, 0
          %v2432 = vsel %vm2082, %v2410, 0
          %v2435 = vsel %vm2082, %v2412, 0
          %2437 = vmatprep.subr.bf16.mxu0 0
          %2438 = vmatpush1.bf16.msra.mxu0 %v2078
          %2439 = vmatprep.subr.bf16.mxu0 0
          %2440 = vmatpush1.bf16.msra.mxu0 %v2079
          %2441 = vmatprep.subr.bf16.mxu0 0
          %2442 = vmatpush1.bf16.msra.mxu0 0
          %2443 = vmatprep.subr.bf16.mxu0 0
          %2444 = vmatpush1.bf16.msra.mxu0 0
          %2445 = vmatprep.subr.bf16.mxu0 0
          %2446 = vmatpush1.bf16.msra.mxu0 0
          %2447 = vmatprep.subr.bf16.mxu0 0
          %2448 = vmatpush1.bf16.msra.mxu0 0
          %2449 = vmatprep.subr.bf16.mxu0 0
          %2450 = vmatpush1.bf16.msra.mxu0 0
          %2451 = vmatprep.subr.bf16.mxu0 0
          %2452 = vmatpush1.bf16.msra.mxu0 0
          %2453 = vmatprep.subr.bf16.mxu0 0
          %2454 = vmatpush1.bf16.msra.mxu0 0
          %2455 = vmatprep.subr.bf16.mxu0 0
          %2456 = vmatpush1.bf16.msra.mxu0 0
          %2457 = vmatprep.subr.bf16.mxu0 0
          %2458 = vmatpush1.bf16.msra.mxu0 0
          %2459 = vmatprep.subr.bf16.mxu0 0
          %2460 = vmatpush1.bf16.msra.mxu0 0
          %2461 = vmatprep.subr.bf16.mxu0 0
          %2462 = vmatpush1.bf16.msra.mxu0 0
          %2463 = vmatprep.subr.bf16.mxu0 0
          %2464 = vmatpush1.bf16.msra.mxu0 0
          %2465 = vmatprep.subr.bf16.mxu0 0
          %2466 = vmatpush1.bf16.msra.mxu0 0
          %2467 = vmatprep.subr.bf16.mxu0 0
          %2468 = vmatpush1.bf16.msra.mxu0 0
          %2469 = vmatprep.mubr.bf16.mxu0 0
          %2470 = vmatmul.mubr.bf16.gmra.mrb[0].mxu0 %v2414
          %v2471 = vpop.f32.mrb[0].mxu0
          %v2472 = vadd.f32 0.0, %v2471
          %v2473 = vpop.f32.mrb[0].mxu0
          %v2474 = vpop.f32.mrb[0].mxu0
          %v2475 = vadd.f32 0.0, %v2474
          %v2476 = vpop.f32.mrb[0].mxu0
          %2477 = vmatprep.mubr.bf16.mxu0 0
          %2478 = vmatmul.mubr.bf16.gmra.mrb[0].mxu0 %v2417
          %v2479 = vpop.f32.mrb[0].mxu0
          %v2480 = vadd.f32 0.0, %v2479
          %v2481 = vpop.f32.mrb[0].mxu0
          %v2482 = vpop.f32.mrb[0].mxu0
          %v2483 = vadd.f32 0.0, %v2482
          %v2484 = vpop.f32.mrb[0].mxu0
          %2485 = vmatprep.mubr.bf16.mxu0 0
          %2486 = vmatmul.mubr.bf16.gmra.mrb[0].mxu0 %v2420
          %v2487 = vpop.f32.mrb[0].mxu0
          %v2488 = vadd.f32 0.0, %v2487
          %v2489 = vpop.f32.mrb[0].mxu0
          %v2490 = vpop.f32.mrb[0].mxu0
          %v2491 = vadd.f32 0.0, %v2490
          %v2492 = vpop.f32.mrb[0].mxu0
          %2493 = vmatprep.mubr.bf16.mxu0 0
          %2494 = vmatmul.mubr.bf16.gmra.mrb[0].mxu0 %v2423
          %v2495 = vpop.f32.mrb[0].mxu0
          %v2496 = vadd.f32 0.0, %v2495
          %v2497 = vpop.f32.mrb[0].mxu0
          %v2498 = vpop.f32.mrb[0].mxu0
          %v2499 = vadd.f32 0.0, %v2498
          %v2500 = vpop.f32.mrb[0].mxu0
          %2501 = vmatprep.mubr.bf16.mxu0 0
          %2502 = vmatmul.mubr.bf16.gmra.mrb[0].mxu0 %v2426
          %v2503 = vpop.f32.mrb[0].mxu0
          %v2504 = vadd.f32 0.0, %v2503
          %v2505 = vpop.f32.mrb[0].mxu0
          %v2506 = vpop.f32.mrb[0].mxu0
          %v2507 = vadd.f32 0.0, %v2506
          %v2508 = vpop.f32.mrb[0].mxu0
          %2509 = vmatprep.mubr.bf16.mxu0 0
          %2510 = vmatmul.mubr.bf16.gmra.mrb[0].mxu0 %v2429
          %v2511 = vpop.f32.mrb[0].mxu0
          %v2512 = vadd.f32 0.0, %v2511
          %v2513 = vpop.f32.mrb[0].mxu0
          %v2514 = vpop.f32.mrb[0].mxu0
          %v2515 = vadd.f32 0.0, %v2514
          %v2516 = vpop.f32.mrb[0].mxu0
          %2517 = vmatprep.mubr.bf16.mxu0 0
          %2518 = vmatmul.mubr.bf16.gmra.mrb[0].mxu0 %v2432
          %v2519 = vpop.f32.mrb[0].mxu0
          %v2520 = vadd.f32 0.0, %v2519
          %v2521 = vpop.f32.mrb[0].mxu0
          %v2522 = vpop.f32.mrb[0].mxu0
          %v2523 = vadd.f32 0.0, %v2522
          %v2524 = vpop.f32.mrb[0].mxu0
          %2525 = vmatprep.mubr.bf16.mxu0 0
          %2526 = vmatmul.mubr.bf16.gmra.mrb[0].mxu0 %v2435
          %v2527 = vpop.f32.mrb[0].mxu0
          %v2528 = vadd.f32 0.0, %v2527
          %v2529 = vpop.f32.mrb[0].mxu0
          %v2530 = vpop.f32.mrb[0].mxu0
          %v2531 = vadd.f32 0.0, %v2530
          %v2532 = vpop.f32.mrb[0].mxu0
          %2533 = vdwg.mxu0
          %v2534 = vtanh.pop %v2472
          %v2535 = vtanh.pop %v2475
          %v2536 = vtanh.pop %v2480
          %v2537 = vtanh.pop %v2483
          %v2538 = vtanh.pop %v2488
          %v2539 = vtanh.pop %v2491
          %v2540 = vtanh.pop %v2496
          %v2541 = vtanh.pop %v2499
          %v2542 = vtanh.pop %v2504
          %v2543 = vtanh.pop %v2507
          %v2544 = vtanh.pop %v2512
          %v2545 = vtanh.pop %v2515
          %v2546 = vtanh.pop %v2520
          %v2547 = vtanh.pop %v2523
          %v2548 = vtanh.pop %v2528
          %v2549 = vtanh.pop %v2531
          %v2550 = vpack.c.bf16 %v2535, %v2534
          %v2551 = vpack.c.bf16 %v2537, %v2536
          %v2552 = vpack.c.bf16 %v2539, %v2538
          %v2553 = vpack.c.bf16 %v2541, %v2540
          %v2554 = vpack.c.bf16 %v2543, %v2542
          %v2555 = vpack.c.bf16 %v2545, %v2544
          %v2556 = vpack.c.bf16 %v2547, %v2546
          %v2557 = vpack.c.bf16 %v2549, %v2548
          %2558 = vmatprep.subr.bf16.mxu0 0
          %2559 = vmatpush1.bf16.msra.mxu0 %v2276
          %2560 = vmatprep.subr.bf16.mxu0 0
          %2561 = vmatpush1.bf16.msra.mxu0 %v2277
          %2562 = vmatprep.subr.bf16.mxu0 0
          %2563 = vmatpush1.bf16.msra.mxu0 %v2278
          %2564 = vmatprep.subr.bf16.mxu0 0
          %2565 = vmatpush1.bf16.msra.mxu0 %v2279
          %2566 = vmatprep.subr.bf16.mxu0 0
          %2567 = vmatpush1.bf16.msra.mxu0 %v2280
          %2568 = vmatprep.subr.bf16.mxu0 0
          %2569 = vmatpush1.bf16.msra.mxu0 %v2281
          %2570 = vmatprep.subr.bf16.mxu0 0
          %2571 = vmatpush1.bf16.msra.mxu0 %v2282
          %2572 = vmatprep.subr.bf16.mxu0 0
          %2573 = vmatpush1.bf16.msra.mxu0 %v2283
          %2574 = vmatprep.subr.bf16.mxu0 0
          %2575 = vmatpush1.bf16.msra.mxu0 0
          %2576 = vmatprep.subr.bf16.mxu0 0
          %2577 = vmatpush1.bf16.msra.mxu0 0
          %2578 = vmatprep.subr.bf16.mxu0 0
          %2579 = vmatpush1.bf16.msra.mxu0 0
          %2580 = vmatprep.subr.bf16.mxu0 0
          %2581 = vmatpush1.bf16.msra.mxu0 0
          %2582 = vmatprep.subr.bf16.mxu0 0
          %2583 = vmatpush1.bf16.msra.mxu0 0
          %2584 = vmatprep.subr.bf16.mxu0 0
          %2585 = vmatpush1.bf16.msra.mxu0 0
          %2586 = vmatprep.subr.bf16.mxu0 0
          %2587 = vmatpush1.bf16.msra.mxu0 0
          %2588 = vmatprep.subr.bf16.mxu0 0
          %2589 = vmatpush1.bf16.msra.mxu0 0
          %2590 = vmatprep.mubr.bf16.mxu0 0
          %2591 = vmatmul.mubr.bf16.gmra.mrb[0].mxu0 %v2550
          %v2592 = vpop.f32.mrb[0].mxu0
          %v2593 = vadd.f32 0.0, %v2592
          %v2594 = vpop.f32.mrb[0].mxu0
          %v2595 = vpop.f32.mrb[0].mxu0
          %v2596 = vadd.f32 0.0, %v2595
          %v2597 = vpop.f32.mrb[0].mxu0
          %2598 = vmatprep.mubr.bf16.mxu0 0
          %2599 = vmatmul.mubr.bf16.gmra.mrb[0].mxu0 %v2551
          %v2600 = vpop.f32.mrb[0].mxu0
          %v2601 = vadd.f32 0.0, %v2600
          %v2602 = vpop.f32.mrb[0].mxu0
          %v2603 = vpop.f32.mrb[0].mxu0
          %v2604 = vadd.f32 0.0, %v2603
          %v2605 = vpop.f32.mrb[0].mxu0
          %2606 = vmatprep.mubr.bf16.mxu0 0
          %2607 = vmatmul.mubr.bf16.gmra.mrb[0].mxu0 %v2552
          %v2608 = vpop.f32.mrb[0].mxu0
          %v2609 = vadd.f32 0.0, %v2608
          %v2610 = vpop.f32.mrb[0].mxu0
          %v2611 = vpop.f32.mrb[0].mxu0
          %v2612 = vadd.f32 0.0, %v2611
          %v2613 = vpop.f32.mrb[0].mxu0
          %2614 = vmatprep.mubr.bf16.mxu0 0
          %2615 = vmatmul.mubr.bf16.gmra.mrb[0].mxu0 %v2553
          %v2616 = vpop.f32.mrb[0].mxu0
          %v2617 = vadd.f32 0.0, %v2616
          %v2618 = vpop.f32.mrb[0].mxu0
          %v2619 = vpop.f32.mrb[0].mxu0
          %v2620 = vadd.f32 0.0, %v2619
          %v2621 = vpop.f32.mrb[0].mxu0
          %2622 = vmatprep.mubr.bf16.mxu0 0
          %2623 = vmatmul.mubr.bf16.gmra.mrb[0].mxu0 %v2554
          %v2624 = vpop.f32.mrb[0].mxu0
          %v2625 = vadd.f32 0.0, %v2624
          %v2626 = vpop.f32.mrb[0].mxu0
          %v2627 = vpop.f32.mrb[0].mxu0
          %v2628 = vadd.f32 0.0, %v2627
          %v2629 = vpop.f32.mrb[0].mxu0
          %2630 = vmatprep.mubr.bf16.mxu0 0
          %2631 = vmatmul.mubr.bf16.gmra.mrb[0].mxu0 %v2555
          %v2632 = vpop.f32.mrb[0].mxu0
          %v2633 = vadd.f32 0.0, %v2632
          %v2634 = vpop.f32.mrb[0].mxu0
          %v2635 = vpop.f32.mrb[0].mxu0
          %v2636 = vadd.f32 0.0, %v2635
          %v2637 = vpop.f32.mrb[0].mxu0
          %2638 = vmatprep.mubr.bf16.mxu0 0
          %2639 = vmatmul.mubr.bf16.gmra.mrb[0].mxu0 %v2556
          %v2640 = vpop.f32.mrb[0].mxu0
          %v2641 = vadd.f32 0.0, %v2640
          %v2642 = vpop.f32.mrb[0].mxu0
          %v2643 = vpop.f32.mrb[0].mxu0
          %v2644 = vadd.f32 0.0, %v2643
          %v2645 = vpop.f32.mrb[0].mxu0
          %2646 = vmatprep.mubr.bf16.mxu0 0
          %2647 = vmatmul.mubr.bf16.gmra.mrb[0].mxu0 %v2557
          %v2648 = vpop.f32.mrb[0].mxu0
          %v2649 = vadd.f32 0.0, %v2648
          %v2650 = vpop.f32.mrb[0].mxu0
          %v2651 = vpop.f32.mrb[0].mxu0
          %v2652 = vadd.f32 0.0, %v2651
          %v2653 = vpop.f32.mrb[0].mxu0
          %2654 = vdwg.mxu0
          %2655 = vrot.lane.b32.xlu0 %v2058, 64
          %v2656 = vpop.permute.xlu0 %2655
          %2657 = vrot.lane.b32.xlu0 %v2059, 64
          %v2658 = vpop.permute.xlu0 %2657
          %2659 = vrot.lane.b32.xlu0 %v2060, 64
          %v2660 = vpop.permute.xlu0 %2659
          %2661 = vrot.lane.b32.xlu0 %v2061, 64
          %v2662 = vpop.permute.xlu0 %2661
          %2663 = vrot.lane.b32.xlu0 %v2062, 64
          %v2664 = vpop.permute.xlu0 %2663
          %2665 = vrot.lane.b32.xlu0 %v2063, 64
          %v2666 = vpop.permute.xlu0 %2665
          %2667 = vrot.lane.b32.xlu0 %v2064, 64
          %v2668 = vpop.permute.xlu0 %2667
          %2669 = vrot.lane.b32.xlu0 %v2065, 64
          %v2670 = vpop.permute.xlu0 %2669
          %v2672 = vsel %vm2082, %v2656, 0
          %v2675 = vsel %vm2082, %v2658, 0
          %v2678 = vsel %vm2082, %v2660, 0
          %v2681 = vsel %vm2082, %v2662, 0
          %v2684 = vsel %vm2082, %v2664, 0
          %v2687 = vsel %vm2082, %v2666, 0
          %v2690 = vsel %vm2082, %v2668, 0
          %v2693 = vsel %vm2082, %v2670, 0
          %2695 = vmatprep.subr.bf16.mxu0 0
          %2696 = vmatpush1.bf16.msra.mxu0 %v2078
          %2697 = vmatprep.subr.bf16.mxu0 0
          %2698 = vmatpush1.bf16.msra.mxu0 %v2079
          %2699 = vmatprep.subr.bf16.mxu0 0
          %2700 = vmatpush1.bf16.msra.mxu0 0
          %2701 = vmatprep.subr.bf16.mxu0 0
          %2702 = vmatpush1.bf16.msra.mxu0 0
          %2703 = vmatprep.subr.bf16.mxu0 0
          %2704 = vmatpush1.bf16.msra.mxu0 0
          %2705 = vmatprep.subr.bf16.mxu0 0
          %2706 = vmatpush1.bf16.msra.mxu0 0
          %2707 = vmatprep.subr.bf16.mxu0 0
          %2708 = vmatpush1.bf16.msra.mxu0 0
          %2709 = vmatprep.subr.bf16.mxu0 0
          %2710 = vmatpush1.bf16.msra.mxu0 0
          %2711 = vmatprep.subr.bf16.mxu0 0
          %2712 = vmatpush1.bf16.msra.mxu0 0
          %2713 = vmatprep.subr.bf16.mxu0 0
          %2714 = vmatpush1.bf16.msra.mxu0 0
          %2715 = vmatprep.subr.bf16.mxu0 0
          %2716 = vmatpush1.bf16.msra.mxu0 0
          %2717 = vmatprep.subr.bf16.mxu0 0
          %2718 = vmatpush1.bf16.msra.mxu0 0
          %2719 = vmatprep.subr.bf16.mxu0 0
          %2720 = vmatpush1.bf16.msra.mxu0 0
          %2721 = vmatprep.subr.bf16.mxu0 0
          %2722 = vmatpush1.bf16.msra.mxu0 0
          %2723 = vmatprep.subr.bf16.mxu0 0
          %2724 = vmatpush1.bf16.msra.mxu0 0
          %2725 = vmatprep.subr.bf16.mxu0 0
          %2726 = vmatpush1.bf16.msra.mxu0 0
          %2727 = vmatprep.mubr.bf16.mxu0 0
          %2728 = vmatmul.mubr.bf16.gmra.mrb[0].mxu0 %v2672
          %v2729 = vpop.f32.mrb[0].mxu0
          %v2730 = vadd.f32 0.0, %v2729
          %v2731 = vpop.f32.mrb[0].mxu0
          %v2732 = vpop.f32.mrb[0].mxu0
          %v2733 = vadd.f32 0.0, %v2732
          %v2734 = vpop.f32.mrb[0].mxu0
          %2735 = vmatprep.mubr.bf16.mxu0 0
          %2736 = vmatmul.mubr.bf16.gmra.mrb[0].mxu0 %v2675
          %v2737 = vpop.f32.mrb[0].mxu0
          %v2738 = vadd.f32 0.0, %v2737
          %v2739 = vpop.f32.mrb[0].mxu0
          %v2740 = vpop.f32.mrb[0].mxu0
          %v2741 = vadd.f32 0.0, %v2740
          %v2742 = vpop.f32.mrb[0].mxu0
          %2743 = vmatprep.mubr.bf16.mxu0 0
          %2744 = vmatmul.mubr.bf16.gmra.mrb[0].mxu0 %v2678
          %v2745 = vpop.f32.mrb[0].mxu0
          %v2746 = vadd.f32 0.0, %v2745
          %v2747 = vpop.f32.mrb[0].mxu0
          %v2748 = vpop.f32.mrb[0].mxu0
          %v2749 = vadd.f32 0.0, %v2748
          %v2750 = vpop.f32.mrb[0].mxu0
          %2751 = vmatprep.mubr.bf16.mxu0 0
          %2752 = vmatmul.mubr.bf16.gmra.mrb[0].mxu0 %v2681
          %v2753 = vpop.f32.mrb[0].mxu0
          %v2754 = vadd.f32 0.0, %v2753
          %v2755 = vpop.f32.mrb[0].mxu0
          %v2756 = vpop.f32.mrb[0].mxu0
          %v2757 = vadd.f32 0.0, %v2756
          %v2758 = vpop.f32.mrb[0].mxu0
          %2759 = vmatprep.mubr.bf16.mxu0 0
          %2760 = vmatmul.mubr.bf16.gmra.mrb[0].mxu0 %v2684
          %v2761 = vpop.f32.mrb[0].mxu0
          %v2762 = vadd.f32 0.0, %v2761
          %v2763 = vpop.f32.mrb[0].mxu0
          %v2764 = vpop.f32.mrb[0].mxu0
          %v2765 = vadd.f32 0.0, %v2764
          %v2766 = vpop.f32.mrb[0].mxu0
          %2767 = vmatprep.mubr.bf16.mxu0 0
          %2768 = vmatmul.mubr.bf16.gmra.mrb[0].mxu0 %v2687
          %v2769 = vpop.f32.mrb[0].mxu0
          %v2770 = vadd.f32 0.0, %v2769
          %v2771 = vpop.f32.mrb[0].mxu0
          %v2772 = vpop.f32.mrb[0].mxu0
          %v2773 = vadd.f32 0.0, %v2772
          %v2774 = vpop.f32.mrb[0].mxu0
          %2775 = vmatprep.mubr.bf16.mxu0 0
          %2776 = vmatmul.mubr.bf16.gmra.mrb[0].mxu0 %v2690
          %v2777 = vpop.f32.mrb[0].mxu0
          %v2778 = vadd.f32 0.0, %v2777
          %v2779 = vpop.f32.mrb[0].mxu0
          %v2780 = vpop.f32.mrb[0].mxu0
          %v2781 = vadd.f32 0.0, %v2780
          %v2782 = vpop.f32.mrb[0].mxu0
          %2783 = vmatprep.mubr.bf16.mxu0 0
          %2784 = vmatmul.mubr.bf16.gmra.mrb[0].mxu0 %v2693
          %v2785 = vpop.f32.mrb[0].mxu0
          %v2786 = vadd.f32 0.0, %v2785
          %v2787 = vpop.f32.mrb[0].mxu0
          %v2788 = vpop.f32.mrb[0].mxu0
          %v2789 = vadd.f32 0.0, %v2788
          %v2790 = vpop.f32.mrb[0].mxu0
          %2791 = vdwg.mxu0
          %v2792 = vtanh.pop %v2730
          %v2793 = vtanh.pop %v2733
          %v2794 = vtanh.pop %v2738
          %v2795 = vtanh.pop %v2741
          %v2796 = vtanh.pop %v2746
          %v2797 = vtanh.pop %v2749
          %v2798 = vtanh.pop %v2754
          %v2799 = vtanh.pop %v2757
          %v2800 = vtanh.pop %v2762
          %v2801 = vtanh.pop %v2765
          %v2802 = vtanh.pop %v2770
          %v2803 = vtanh.pop %v2773
          %v2804 = vtanh.pop %v2778
          %v2805 = vtanh.pop %v2781
          %v2806 = vtanh.pop %v2786
          %v2807 = vtanh.pop %v2789
          %v2808 = vpack.c.bf16 %v2793, %v2792
          %v2809 = vpack.c.bf16 %v2795, %v2794
          %v2810 = vpack.c.bf16 %v2797, %v2796
          %v2811 = vpack.c.bf16 %v2799, %v2798
          %v2812 = vpack.c.bf16 %v2801, %v2800
          %v2813 = vpack.c.bf16 %v2803, %v2802
          %v2814 = vpack.c.bf16 %v2805, %v2804
          %v2815 = vpack.c.bf16 %v2807, %v2806
          %2816 = vmatprep.subr.bf16.mxu0 0
          %2817 = vmatpush1.bf16.msra.mxu0 %v2276
          %2818 = vmatprep.subr.bf16.mxu0 0
          %2819 = vmatpush1.bf16.msra.mxu0 %v2277
          %2820 = vmatprep.subr.bf16.mxu0 0
          %2821 = vmatpush1.bf16.msra.mxu0 %v2278
          %2822 = vmatprep.subr.bf16.mxu0 0
          %2823 = vmatpush1.bf16.msra.mxu0 %v2279
          %2824 = vmatprep.subr.bf16.mxu0 0
          %2825 = vmatpush1.bf16.msra.mxu0 %v2280
          %2826 = vmatprep.subr.bf16.mxu0 0
          %2827 = vmatpush1.bf16.msra.mxu0 %v2281
          %2828 = vmatprep.subr.bf16.mxu0 0
          %2829 = vmatpush1.bf16.msra.mxu0 %v2282
          %2830 = vmatprep.subr.bf16.mxu0 0
          %2831 = vmatpush1.bf16.msra.mxu0 %v2283
          %2832 = vmatprep.subr.bf16.mxu0 0
          %2833 = vmatpush1.bf16.msra.mxu0 0
          %2834 = vmatprep.subr.bf16.mxu0 0
          %2835 = vmatpush1.bf16.msra.mxu0 0
          %2836 = vmatprep.subr.bf16.mxu0 0
          %2837 = vmatpush1.bf16.msra.mxu0 0
          %2838 = vmatprep.subr.bf16.mxu0 0
          %2839 = vmatpush1.bf16.msra.mxu0 0
          %2840 = vmatprep.subr.bf16.mxu0 0
          %2841 = vmatpush1.bf16.msra.mxu0 0
          %2842 = vmatprep.subr.bf16.mxu0 0
          %2843 = vmatpush1.bf16.msra.mxu0 0
          %2844 = vmatprep.subr.bf16.mxu0 0
          %2845 = vmatpush1.bf16.msra.mxu0 0
          %2846 = vmatprep.subr.bf16.mxu0 0
          %2847 = vmatpush1.bf16.msra.mxu0 0
          %2848 = vmatprep.mubr.bf16.mxu0 0
          %2849 = vmatmul.mubr.bf16.gmra.mrb[0].mxu0 %v2808
          %v2850 = vpop.f32.mrb[0].mxu0
          %v2851 = vadd.f32 0.0, %v2850
          %v2852 = vpop.f32.mrb[0].mxu0
          %v2853 = vpop.f32.mrb[0].mxu0
          %v2854 = vadd.f32 0.0, %v2853
          %v2855 = vpop.f32.mrb[0].mxu0
          %2856 = vmatprep.mubr.bf16.mxu0 0
          %2857 = vmatmul.mubr.bf16.gmra.mrb[0].mxu0 %v2809
          %v2858 = vpop.f32.mrb[0].mxu0
          %v2859 = vadd.f32 0.0, %v2858
          %v2860 = vpop.f32.mrb[0].mxu0
          %v2861 = vpop.f32.mrb[0].mxu0
          %v2862 = vadd.f32 0.0, %v2861
          %v2863 = vpop.f32.mrb[0].mxu0
          %2864 = vmatprep.mubr.bf16.mxu0 0
          %2865 = vmatmul.mubr.bf16.gmra.mrb[0].mxu0 %v2810
          %v2866 = vpop.f32.mrb[0].mxu0
          %v2867 = vadd.f32 0.0, %v2866
          %v2868 = vpop.f32.mrb[0].mxu0
          %v2869 = vpop.f32.mrb[0].mxu0
          %v2870 = vadd.f32 0.0, %v2869
          %v2871 = vpop.f32.mrb[0].mxu0
          %2872 = vmatprep.mubr.bf16.mxu0 0
          %2873 = vmatmul.mubr.bf16.gmra.mrb[0].mxu0 %v2811
          %v2874 = vpop.f32.mrb[0].mxu0
          %v2875 = vadd.f32 0.0, %v2874
          %v2876 = vpop.f32.mrb[0].mxu0
          %v2877 = vpop.f32.mrb[0].mxu0
          %v2878 = vadd.f32 0.0, %v2877
          %v2879 = vpop.f32.mrb[0].mxu0
          %2880 = vmatprep.mubr.bf16.mxu0 0
          %2881 = vmatmul.mubr.bf16.gmra.mrb[0].mxu0 %v2812
          %v2882 = vpop.f32.mrb[0].mxu0
          %v2883 = vadd.f32 0.0, %v2882
          %v2884 = vpop.f32.mrb[0].mxu0
          %v2885 = vpop.f32.mrb[0].mxu0
          %v2886 = vadd.f32 0.0, %v2885
          %v2887 = vpop.f32.mrb[0].mxu0
          %2888 = vmatprep.mubr.bf16.mxu0 0
          %2889 = vmatmul.mubr.bf16.gmra.mrb[0].mxu0 %v2813
          %v2890 = vpop.f32.mrb[0].mxu0
          %v2891 = vadd.f32 0.0, %v2890
          %v2892 = vpop.f32.mrb[0].mxu0
          %v2893 = vpop.f32.mrb[0].mxu0
          %v2894 = vadd.f32 0.0, %v2893
          %v2895 = vpop.f32.mrb[0].mxu0
          %2896 = vmatprep.mubr.bf16.mxu0 0
          %2897 = vmatmul.mubr.bf16.gmra.mrb[0].mxu0 %v2814
          %v2898 = vpop.f32.mrb[0].mxu0
          %v2899 = vadd.f32 0.0, %v2898
          %v2900 = vpop.f32.mrb[0].mxu0
          %v2901 = vpop.f32.mrb[0].mxu0
          %v2902 = vadd.f32 0.0, %v2901
          %v2903 = vpop.f32.mrb[0].mxu0
          %2904 = vmatprep.mubr.bf16.mxu0 0
          %2905 = vmatmul.mubr.bf16.gmra.mrb[0].mxu0 %v2815
          %v2906 = vpop.f32.mrb[0].mxu0
          %v2907 = vadd.f32 0.0, %v2906
          %v2908 = vpop.f32.mrb[0].mxu0
          %v2909 = vpop.f32.mrb[0].mxu0
          %v2910 = vadd.f32 0.0, %v2909
          %v2911 = vpop.f32.mrb[0].mxu0
          %2912 = vdwg.mxu0
          %2913 = vrot.lane.b32.xlu0 %v2058, 32
          %v2914 = vpop.permute.xlu0 %2913
          %2915 = vrot.lane.b32.xlu0 %v2059, 32
          %v2916 = vpop.permute.xlu0 %2915
          %2917 = vrot.lane.b32.xlu0 %v2060, 32
          %v2918 = vpop.permute.xlu0 %2917
          %2919 = vrot.lane.b32.xlu0 %v2061, 32
          %v2920 = vpop.permute.xlu0 %2919
          %2921 = vrot.lane.b32.xlu0 %v2062, 32
          %v2922 = vpop.permute.xlu0 %2921
          %2923 = vrot.lane.b32.xlu0 %v2063, 32
          %v2924 = vpop.permute.xlu0 %2923
          %2925 = vrot.lane.b32.xlu0 %v2064, 32
          %v2926 = vpop.permute.xlu0 %2925
          %2927 = vrot.lane.b32.xlu0 %v2065, 32
          %v2928 = vpop.permute.xlu0 %2927
          %v2930 = vsel %vm2082, %v2914, 0
          %v2933 = vsel %vm2082, %v2916, 0
          %v2936 = vsel %vm2082, %v2918, 0
          %v2939 = vsel %vm2082, %v2920, 0
          %v2942 = vsel %vm2082, %v2922, 0
          %v2945 = vsel %vm2082, %v2924, 0
          %v2948 = vsel %vm2082, %v2926, 0
          %v2951 = vsel %vm2082, %v2928, 0
          %2953 = vmatprep.subr.bf16.mxu0 0
          %2954 = vmatpush1.bf16.msra.mxu0 %v2078
          %2955 = vmatprep.subr.bf16.mxu0 0
          %2956 = vmatpush1.bf16.msra.mxu0 %v2079
          %2957 = vmatprep.subr.bf16.mxu0 0
          %2958 = vmatpush1.bf16.msra.mxu0 0
          %2959 = vmatprep.subr.bf16.mxu0 0
          %2960 = vmatpush1.bf16.msra.mxu0 0
          %2961 = vmatprep.subr.bf16.mxu0 0
          %2962 = vmatpush1.bf16.msra.mxu0 0
          %2963 = vmatprep.subr.bf16.mxu0 0
          %2964 = vmatpush1.bf16.msra.mxu0 0
          %2965 = vmatprep.subr.bf16.mxu0 0
          %2966 = vmatpush1.bf16.msra.mxu0 0
          %2967 = vmatprep.subr.bf16.mxu0 0
          %2968 = vmatpush1.bf16.msra.mxu0 0
          %2969 = vmatprep.subr.bf16.mxu0 0
          %2970 = vmatpush1.bf16.msra.mxu0 0
          %2971 = vmatprep.subr.bf16.mxu0 0
          %2972 = vmatpush1.bf16.msra.mxu0 0
          %2973 = vmatprep.subr.bf16.mxu0 0
          %2974 = vmatpush1.bf16.msra.mxu0 0
          %2975 = vmatprep.subr.bf16.mxu0 0
          %2976 = vmatpush1.bf16.msra.mxu0 0
          %2977 = vmatprep.subr.bf16.mxu0 0
          %2978 = vmatpush1.bf16.msra.mxu0 0
          %2979 = vmatprep.subr.bf16.mxu0 0
          %2980 = vmatpush1.bf16.msra.mxu0 0
          %2981 = vmatprep.subr.bf16.mxu0 0
          %2982 = vmatpush1.bf16.msra.mxu0 0
          %2983 = vmatprep.subr.bf16.mxu0 0
          %2984 = vmatpush1.bf16.msra.mxu0 0
          %2985 = vmatprep.mubr.bf16.mxu0 0
          %2986 = vmatmul.mubr.bf16.gmra.mrb[0].mxu0 %v2930
          %v2987 = vpop.f32.mrb[0].mxu0
          %v2988 = vadd.f32 0.0, %v2987
          %v2989 = vpop.f32.mrb[0].mxu0
          %v2990 = vpop.f32.mrb[0].mxu0
          %v2991 = vadd.f32 0.0, %v2990
          %v2992 = vpop.f32.mrb[0].mxu0
          %2993 = vmatprep.mubr.bf16.mxu0 0
          %2994 = vmatmul.mubr.bf16.gmra.mrb[0].mxu0 %v2933
          %v2995 = vpop.f32.mrb[0].mxu0
          %v2996 = vadd.f32 0.0, %v2995
          %v2997 = vpop.f32.mrb[0].mxu0
          %v2998 = vpop.f32.mrb[0].mxu0
          %v2999 = vadd.f32 0.0, %v2998
          %v3000 = vpop.f32.mrb[0].mxu0
          %3001 = vmatprep.mubr.bf16.mxu0 0
          %3002 = vmatmul.mubr.bf16.gmra.mrb[0].mxu0 %v2936
          %v3003 = vpop.f32.mrb[0].mxu0
          %v3004 = vadd.f32 0.0, %v3003
          %v3005 = vpop.f32.mrb[0].mxu0
          %v3006 = vpop.f32.mrb[0].mxu0
          %v3007 = vadd.f32 0.0, %v3006
          %v3008 = vpop.f32.mrb[0].mxu0
          %3009 = vmatprep.mubr.bf16.mxu0 0
          %3010 = vmatmul.mubr.bf16.gmra.mrb[0].mxu0 %v2939
          %v3011 = vpop.f32.mrb[0].mxu0
          %v3012 = vadd.f32 0.0, %v3011
          %v3013 = vpop.f32.mrb[0].mxu0
          %v3014 = vpop.f32.mrb[0].mxu0
          %v3015 = vadd.f32 0.0, %v3014
          %v3016 = vpop.f32.mrb[0].mxu0
          %3017 = vmatprep.mubr.bf16.mxu0 0
          %3018 = vmatmul.mubr.bf16.gmra.mrb[0].mxu0 %v2942
          %v3019 = vpop.f32.mrb[0].mxu0
          %v3020 = vadd.f32 0.0, %v3019
          %v3021 = vpop.f32.mrb[0].mxu0
          %v3022 = vpop.f32.mrb[0].mxu0
          %v3023 = vadd.f32 0.0, %v3022
          %v3024 = vpop.f32.mrb[0].mxu0
          %3025 = vmatprep.mubr.bf16.mxu0 0
          %3026 = vmatmul.mubr.bf16.gmra.mrb[0].mxu0 %v2945
          %v3027 = vpop.f32.mrb[0].mxu0
          %v3028 = vadd.f32 0.0, %v3027
          %v3029 = vpop.f32.mrb[0].mxu0
          %v3030 = vpop.f32.mrb[0].mxu0
          %v3031 = vadd.f32 0.0, %v3030
          %v3032 = vpop.f32.mrb[0].mxu0
          %3033 = vmatprep.mubr.bf16.mxu0 0
          %3034 = vmatmul.mubr.bf16.gmra.mrb[0].mxu0 %v2948
          %v3035 = vpop.f32.mrb[0].mxu0
          %v3036 = vadd.f32 0.0, %v3035
          %v3037 = vpop.f32.mrb[0].mxu0
          %v3038 = vpop.f32.mrb[0].mxu0
          %v3039 = vadd.f32 0.0, %v3038
          %v3040 = vpop.f32.mrb[0].mxu0
          %3041 = vmatprep.mubr.bf16.mxu0 0
          %3042 = vmatmul.mubr.bf16.gmra.mrb[0].mxu0 %v2951
          %v3043 = vpop.f32.mrb[0].mxu0
          %v3044 = vadd.f32 0.0, %v3043
          %v3045 = vpop.f32.mrb[0].mxu0
          %v3046 = vpop.f32.mrb[0].mxu0
          %v3047 = vadd.f32 0.0, %v3046
          %v3048 = vpop.f32.mrb[0].mxu0
          %3049 = vdwg.mxu0
          %v3050 = vtanh.pop %v2988
          %v3051 = vtanh.pop %v2991
          %v3052 = vtanh.pop %v2996
          %v3053 = vtanh.pop %v2999
          %v3054 = vtanh.pop %v3004
          %v3055 = vtanh.pop %v3007
          %v3056 = vtanh.pop %v3012
          %v3057 = vtanh.pop %v3015
          %v3058 = vtanh.pop %v3020
          %v3059 = vtanh.pop %v3023
          %v3060 = vtanh.pop %v3028
          %v3061 = vtanh.pop %v3031
          %v3062 = vtanh.pop %v3036
          %v3063 = vtanh.pop %v3039
          %v3064 = vtanh.pop %v3044
          %v3065 = vtanh.pop %v3047
          %v3066 = vpack.c.bf16 %v3051, %v3050
          %v3067 = vpack.c.bf16 %v3053, %v3052
          %v3068 = vpack.c.bf16 %v3055, %v3054
          %v3069 = vpack.c.bf16 %v3057, %v3056
          %v3070 = vpack.c.bf16 %v3059, %v3058
          %v3071 = vpack.c.bf16 %v3061, %v3060
          %v3072 = vpack.c.bf16 %v3063, %v3062
          %v3073 = vpack.c.bf16 %v3065, %v3064
          %3074 = vmatprep.subr.bf16.mxu0 0
          %3075 = vmatpush1.bf16.msra.mxu0 %v2276
          %3076 = vmatprep.subr.bf16.mxu0 0
          %3077 = vmatpush1.bf16.msra.mxu0 %v2277
          %3078 = vmatprep.subr.bf16.mxu0 0
          %3079 = vmatpush1.bf16.msra.mxu0 %v2278
          %3080 = vmatprep.subr.bf16.mxu0 0
          %3081 = vmatpush1.bf16.msra.mxu0 %v2279
          %3082 = vmatprep.subr.bf16.mxu0 0
          %3083 = vmatpush1.bf16.msra.mxu0 %v2280
          %3084 = vmatprep.subr.bf16.mxu0 0
          %3085 = vmatpush1.bf16.msra.mxu0 %v2281
          %3086 = vmatprep.subr.bf16.mxu0 0
          %3087 = vmatpush1.bf16.msra.mxu0 %v2282
          %3088 = vmatprep.subr.bf16.mxu0 0
          %3089 = vmatpush1.bf16.msra.mxu0 %v2283
          %3090 = vmatprep.subr.bf16.mxu0 0
          %3091 = vmatpush1.bf16.msra.mxu0 0
          %3092 = vmatprep.subr.bf16.mxu0 0
          %3093 = vmatpush1.bf16.msra.mxu0 0
          %3094 = vmatprep.subr.bf16.mxu0 0
          %3095 = vmatpush1.bf16.msra.mxu0 0
          %3096 = vmatprep.subr.bf16.mxu0 0
          %3097 = vmatpush1.bf16.msra.mxu0 0
          %3098 = vmatprep.subr.bf16.mxu0 0
          %3099 = vmatpush1.bf16.msra.mxu0 0
          %3100 = vmatprep.subr.bf16.mxu0 0
          %3101 = vmatpush1.bf16.msra.mxu0 0
          %3102 = vmatprep.subr.bf16.mxu0 0
          %3103 = vmatpush1.bf16.msra.mxu0 0
          %3104 = vmatprep.subr.bf16.mxu0 0
          %3105 = vmatpush1.bf16.msra.mxu0 0
          %3106 = vmatprep.mubr.bf16.mxu0 0
          %3107 = vmatmul.mubr.bf16.gmra.mrb[0].mxu0 %v3066
          %v3108 = vpop.f32.mrb[0].mxu0
          %v3109 = vadd.f32 0.0, %v3108
          %v3110 = vpop.f32.mrb[0].mxu0
          %v3111 = vpop.f32.mrb[0].mxu0
          %v3112 = vadd.f32 0.0, %v3111
          %v3113 = vpop.f32.mrb[0].mxu0
          %3114 = vmatprep.mubr.bf16.mxu0 0
          %3115 = vmatmul.mubr.bf16.gmra.mrb[0].mxu0 %v3067
          %v3116 = vpop.f32.mrb[0].mxu0
          %v3117 = vadd.f32 0.0, %v3116
          %v3118 = vpop.f32.mrb[0].mxu0
          %v3119 = vpop.f32.mrb[0].mxu0
          %v3120 = vadd.f32 0.0, %v3119
          %v3121 = vpop.f32.mrb[0].mxu0
          %3122 = vmatprep.mubr.bf16.mxu0 0
          %3123 = vmatmul.mubr.bf16.gmra.mrb[0].mxu0 %v3068
          %v3124 = vpop.f32.mrb[0].mxu0
          %v3125 = vadd.f32 0.0, %v3124
          %v3126 = vpop.f32.mrb[0].mxu0
          %v3127 = vpop.f32.mrb[0].mxu0
          %v3128 = vadd.f32 0.0, %v3127
          %v3129 = vpop.f32.mrb[0].mxu0
          %3130 = vmatprep.mubr.bf16.mxu0 0
          %3131 = vmatmul.mubr.bf16.gmra.mrb[0].mxu0 %v3069
          %v3132 = vpop.f32.mrb[0].mxu0
          %v3133 = vadd.f32 0.0, %v3132
          %v3134 = vpop.f32.mrb[0].mxu0
          %v3135 = vpop.f32.mrb[0].mxu0
          %v3136 = vadd.f32 0.0, %v3135
          %v3137 = vpop.f32.mrb[0].mxu0
          %3138 = vmatprep.mubr.bf16.mxu0 0
          %3139 = vmatmul.mubr.bf16.gmra.mrb[0].mxu0 %v3070
          %v3140 = vpop.f32.mrb[0].mxu0
          %v3141 = vadd.f32 0.0, %v3140
          %v3142 = vpop.f32.mrb[0].mxu0
          %v3143 = vpop.f32.mrb[0].mxu0
          %v3144 = vadd.f32 0.0, %v3143
          %v3145 = vpop.f32.mrb[0].mxu0
          %3146 = vmatprep.mubr.bf16.mxu0 0
          %3147 = vmatmul.mubr.bf16.gmra.mrb[0].mxu0 %v3071
          %v3148 = vpop.f32.mrb[0].mxu0
          %v3149 = vadd.f32 0.0, %v3148
          %v3150 = vpop.f32.mrb[0].mxu0
          %v3151 = vpop.f32.mrb[0].mxu0
          %v3152 = vadd.f32 0.0, %v3151
          %v3153 = vpop.f32.mrb[0].mxu0
          %3154 = vmatprep.mubr.bf16.mxu0 0
          %3155 = vmatmul.mubr.bf16.gmra.mrb[0].mxu0 %v3072
          %v3156 = vpop.f32.mrb[0].mxu0
          %v3157 = vadd.f32 0.0, %v3156
          %v3158 = vpop.f32.mrb[0].mxu0
          %v3159 = vpop.f32.mrb[0].mxu0
          %v3160 = vadd.f32 0.0, %v3159
          %v3161 = vpop.f32.mrb[0].mxu0
          %3162 = vmatprep.mubr.bf16.mxu0 0
          %3163 = vmatmul.mubr.bf16.gmra.mrb[0].mxu0 %v3073
          %v3164 = vpop.f32.mrb[0].mxu0
          %v3165 = vadd.f32 0.0, %v3164
          %v3166 = vpop.f32.mrb[0].mxu0
          %v3167 = vpop.f32.mrb[0].mxu0
          %v3168 = vadd.f32 0.0, %v3167
          %v3169 = vpop.f32.mrb[0].mxu0
          %3170 = vdwg.mxu0
          %vm3171 = vcmask 31744
          %v3172 = vsel %vm3171, %v2327, -inf
          %v3173 = vsel %vm3171, %v2593, -inf
          %v3174 = vmax.f32 %v3172, %v3173
          %v3175 = vsel %vm3171, %v2851, -inf
          %v3176 = vmax.f32 %v3174, %v3175
          %v3177 = vsel %vm3171, %v3109, -inf
          %v3178 = vmax.f32 %v3176, %v3177
          %v3179 = vsel %vm3171, %v2330, -inf
          %v3180 = vsel %vm3171, %v2596, -inf
          %v3181 = vmax.f32 %v3179, %v3180
          %v3182 = vsel %vm3171, %v2854, -inf
          %v3183 = vmax.f32 %v3181, %v3182
          %v3184 = vsel %vm3171, %v3112, -inf
          %v3185 = vmax.f32 %v3183, %v3184
          %v3186 = vsel %vm3171, %v2335, -inf
          %v3187 = vsel %vm3171, %v2601, -inf
          %v3188 = vmax.f32 %v3186, %v3187
          %v3189 = vsel %vm3171, %v2859, -inf
          %v3190 = vmax.f32 %v3188, %v3189
          %v3191 = vsel %vm3171, %v3117, -inf
          %v3192 = vmax.f32 %v3190, %v3191
          %v3193 = vsel %vm3171, %v2338, -inf
          %v3194 = vsel %vm3171, %v2604, -inf
          %v3195 = vmax.f32 %v3193, %v3194
          %v3196 = vsel %vm3171, %v2862, -inf
          %v3197 = vmax.f32 %v3195, %v3196
          %v3198 = vsel %vm3171, %v3120, -inf
          %v3199 = vmax.f32 %v3197, %v3198
          %v3200 = vsel %vm3171, %v2343, -inf
          %v3201 = vsel %vm3171, %v2609, -inf
          %v3202 = vmax.f32 %v3200, %v3201
          %v3203 = vsel %vm3171, %v2867, -inf
          %v3204 = vmax.f32 %v3202, %v3203
          %v3205 = vsel %vm3171, %v3125, -inf
          %v3206 = vmax.f32 %v3204, %v3205
          %v3207 = vsel %vm3171, %v2346, -inf
          %v3208 = vsel %vm3171, %v2612, -inf
          %v3209 = vmax.f32 %v3207, %v3208
          %v3210 = vsel %vm3171, %v2870, -inf
          %v3211 = vmax.f32 %v3209, %v3210
          %v3212 = vsel %vm3171, %v3128, -inf
          %v3213 = vmax.f32 %v3211, %v3212
          %v3214 = vsel %vm3171, %v2351, -inf
          %v3215 = vsel %vm3171, %v2617, -inf
          %v3216 = vmax.f32 %v3214, %v3215
          %v3217 = vsel %vm3171, %v2875, -inf
          %v3218 = vmax.f32 %v3216, %v3217
          %v3219 = vsel %vm3171, %v3133, -inf
          %v3220 = vmax.f32 %v3218, %v3219
          %v3221 = vsel %vm3171, %v2354, -inf
          %v3222 = vsel %vm3171, %v2620, -inf
          %v3223 = vmax.f32 %v3221, %v3222
          %v3224 = vsel %vm3171, %v2878, -inf
          %v3225 = vmax.f32 %v3223, %v3224
          %v3226 = vsel %vm3171, %v3136, -inf
          %v3227 = vmax.f32 %v3225, %v3226
          %v3228 = vsel %vm3171, %v2359, -inf
          %v3229 = vsel %vm3171, %v2625, -inf
          %v3230 = vmax.f32 %v3228, %v3229
          %v3231 = vsel %vm3171, %v2883, -inf
          %v3232 = vmax.f32 %v3230, %v3231
          %v3233 = vsel %vm3171, %v3141, -inf
          %v3234 = vmax.f32 %v3232, %v3233
          %v3235 = vsel %vm3171, %v2362, -inf
          %v3236 = vsel %vm3171, %v2628, -inf
          %v3237 = vmax.f32 %v3235, %v3236
          %v3238 = vsel %vm3171, %v2886, -inf
          %v3239 = vmax.f32 %v3237, %v3238
          %v3240 = vsel %vm3171, %v3144, -inf
          %v3241 = vmax.f32 %v3239, %v3240
          %v3242 = vsel %vm3171, %v2367, -inf
          %v3243 = vsel %vm3171, %v2633, -inf
          %v3244 = vmax.f32 %v3242, %v3243
          %v3245 = vsel %vm3171, %v2891, -inf
          %v3246 = vmax.f32 %v3244, %v3245
          %v3247 = vsel %vm3171, %v3149, -inf
          %v3248 = vmax.f32 %v3246, %v3247
          %v3249 = vsel %vm3171, %v2370, -inf
          %v3250 = vsel %vm3171, %v2636, -inf
          %v3251 = vmax.f32 %v3249, %v3250
          %v3252 = vsel %vm3171, %v2894, -inf
          %v3253 = vmax.f32 %v3251, %v3252
          %v3254 = vsel %vm3171, %v3152, -inf
          %v3255 = vmax.f32 %v3253, %v3254
          %v3256 = vsel %vm3171, %v2375, -inf
          %v3257 = vsel %vm3171, %v2641, -inf
          %v3258 = vmax.f32 %v3256, %v3257
          %v3259 = vsel %vm3171, %v2899, -inf
          %v3260 = vmax.f32 %v3258, %v3259
          %v3261 = vsel %vm3171, %v3157, -inf
          %v3262 = vmax.f32 %v3260, %v3261
          %v3263 = vsel %vm3171, %v2378, -inf
          %v3264 = vsel %vm3171, %v2644, -inf
          %v3265 = vmax.f32 %v3263, %v3264
          %v3266 = vsel %vm3171, %v2902, -inf
          %v3267 = vmax.f32 %v3265, %v3266
          %v3268 = vsel %vm3171, %v3160, -inf
          %v3269 = vmax.f32 %v3267, %v3268
          %v3270 = vsel %vm3171, %v2383, -inf
          %v3271 = vsel %vm3171, %v2649, -inf
          %v3272 = vmax.f32 %v3270, %v3271
          %v3273 = vsel %vm3171, %v2907, -inf
          %v3274 = vmax.f32 %v3272, %v3273
          %v3275 = vsel %vm3171, %v3165, -inf
          %v3276 = vmax.f32 %v3274, %v3275
          %v3277 = vsel %vm3171, %v2386, -inf
          %v3278 = vsel %vm3171, %v2652, -inf
          %v3279 = vmax.f32 %v3277, %v3278
          %v3280 = vsel %vm3171, %v2910, -inf
          %v3281 = vmax.f32 %v3279, %v3280
          %v3282 = vsel %vm3171, %v3168, -inf
          %v3283 = vmax.f32 %v3281, %v3282
          %v3284 = vsub.f32 %v2327, %v3178
          %v3285 = vsub.f32 %v2330, %v3185
          %v3286 = vsub.f32 %v2335, %v3192
          %v3287 = vsub.f32 %v2338, %v3199
          %v3288 = vsub.f32 %v2343, %v3206
          %v3289 = vsub.f32 %v2346, %v3213
          %v3290 = vsub.f32 %v2351, %v3220
          %v3291 = vsub.f32 %v2354, %v3227
          %v3292 = vsub.f32 %v2359, %v3234
          %v3293 = vsub.f32 %v2362, %v3241
          %v3294 = vsub.f32 %v2367, %v3248
          %v3295 = vsub.f32 %v2370, %v3255
          %v3296 = vsub.f32 %v2375, %v3262
          %v3297 = vsub.f32 %v2378, %v3269
          %v3298 = vsub.f32 %v2383, %v3276
          %v3299 = vsub.f32 %v2386, %v3283
          %v3300 = vsub.f32 %v2593, %v3178
          %v3301 = vsub.f32 %v2596, %v3185
          %v3302 = vsub.f32 %v2601, %v3192
          %v3303 = vsub.f32 %v2604, %v3199
          %v3304 = vsub.f32 %v2609, %v3206
          %v3305 = vsub.f32 %v2612, %v3213
          %v3306 = vsub.f32 %v2617, %v3220
          %v3307 = vsub.f32 %v2620, %v3227
          %v3308 = vsub.f32 %v2625, %v3234
          %v3309 = vsub.f32 %v2628, %v3241
          %v3310 = vsub.f32 %v2633, %v3248
          %v3311 = vsub.f32 %v2636, %v3255
          %v3312 = vsub.f32 %v2641, %v3262
          %v3313 = vsub.f32 %v2644, %v3269
          %v3314 = vsub.f32 %v2649, %v3276
          %v3315 = vsub.f32 %v2652, %v3283
          %v3316 = vsub.f32 %v2851, %v3178
          %v3317 = vsub.f32 %v2854, %v3185
          %v3318 = vsub.f32 %v2859, %v3192
          %v3319 = vsub.f32 %v2862, %v3199
          %v3320 = vsub.f32 %v2867, %v3206
          %v3321 = vsub.f32 %v2870, %v3213
          %v3322 = vsub.f32 %v2875, %v3220
          %v3323 = vsub.f32 %v2878, %v3227
          %v3324 = vsub.f32 %v2883, %v3234
          %v3325 = vsub.f32 %v2886, %v3241
          %v3326 = vsub.f32 %v2891, %v3248
          %v3327 = vsub.f32 %v2894, %v3255
          %v3328 = vsub.f32 %v2899, %v3262
          %v3329 = vsub.f32 %v2902, %v3269
          %v3330 = vsub.f32 %v2907, %v3276
          %v3331 = vsub.f32 %v2910, %v3283
          %v3332 = vsub.f32 %v3109, %v3178
          %v3333 = vsub.f32 %v3112, %v3185
          %v3334 = vsub.f32 %v3117, %v3192
          %v3335 = vsub.f32 %v3120, %v3199
          %v3336 = vsub.f32 %v3125, %v3206
          %v3337 = vsub.f32 %v3128, %v3213
          %v3338 = vsub.f32 %v3133, %v3220
          %v3339 = vsub.f32 %v3136, %v3227
          %v3340 = vsub.f32 %v3141, %v3234
          %v3341 = vsub.f32 %v3144, %v3241
          %v3342 = vsub.f32 %v3149, %v3248
          %v3343 = vsub.f32 %v3152, %v3255
          %v3344 = vsub.f32 %v3157, %v3262
          %v3345 = vsub.f32 %v3160, %v3269
          %v3346 = vsub.f32 %v3165, %v3276
          %v3347 = vsub.f32 %v3168, %v3283
          %v3348 = vmul.f32 %v3284, 1.442695
          %v3349 = vpow.pop %v3348
          %v3350 = vmul.f32 %v3285, 1.442695
          %v3351 = vpow.pop %v3350
          %v3352 = vmul.f32 %v3286, 1.442695
          %v3353 = vpow.pop %v3352
          %v3354 = vmul.f32 %v3287, 1.442695
          %v3355 = vpow.pop %v3354
          %v3356 = vmul.f32 %v3288, 1.442695
          %v3357 = vpow.pop %v3356
          %v3358 = vmul.f32 %v3289, 1.442695
          %v3359 = vpow.pop %v3358
          %v3360 = vmul.f32 %v3290, 1.442695
          %v3361 = vpow.pop %v3360
          %v3362 = vmul.f32 %v3291, 1.442695
          %v3363 = vpow.pop %v3362
          %v3364 = vmul.f32 %v3292, 1.442695
          %v3365 = vpow.pop %v3364
          %v3366 = vmul.f32 %v3293, 1.442695
          %v3367 = vpow.pop %v3366
          %v3368 = vmul.f32 %v3294, 1.442695
          %v3369 = vpow.pop %v3368
          %v3370 = vmul.f32 %v3295, 1.442695
          %v3371 = vpow.pop %v3370
          %v3372 = vmul.f32 %v3296, 1.442695
          %v3373 = vpow.pop %v3372
          %v3374 = vmul.f32 %v3297, 1.442695
          %v3375 = vpow.pop %v3374
          %v3376 = vmul.f32 %v3298, 1.442695
          %v3377 = vpow.pop %v3376
          %v3378 = vmul.f32 %v3299, 1.442695
          %v3379 = vpow.pop %v3378
          %v3380 = vmul.f32 %v3300, 1.442695
          %v3381 = vpow.pop %v3380
          %v3382 = vmul.f32 %v3301, 1.442695
          %v3383 = vpow.pop %v3382
          %v3384 = vmul.f32 %v3302, 1.442695
          %v3385 = vpow.pop %v3384
          %v3386 = vmul.f32 %v3303, 1.442695
          %v3387 = vpow.pop %v3386
          %v3388 = vmul.f32 %v3304, 1.442695
          %v3389 = vpow.pop %v3388
          %v3390 = vmul.f32 %v3305, 1.442695
          %v3391 = vpow.pop %v3390
          %v3392 = vmul.f32 %v3306, 1.442695
          %v3393 = vpow.pop %v3392
          %v3394 = vmul.f32 %v3307, 1.442695
          %v3395 = vpow.pop %v3394
          %v3396 = vmul.f32 %v3308, 1.442695
          %v3397 = vpow.pop %v3396
          %v3398 = vmul.f32 %v3309, 1.442695
          %v3399 = vpow.pop %v3398
          %v3400 = vmul.f32 %v3310, 1.442695
          %v3401 = vpow.pop %v3400
          %v3402 = vmul.f32 %v3311, 1.442695
          %v3403 = vpow.pop %v3402
          %v3404 = vmul.f32 %v3312, 1.442695
          %v3405 = vpow.pop %v3404
          %v3406 = vmul.f32 %v3313, 1.442695
          %v3407 = vpow.pop %v3406
          %v3408 = vmul.f32 %v3314, 1.442695
          %v3409 = vpow.pop %v3408
          %v3410 = vmul.f32 %v3315, 1.442695
          %v3411 = vpow.pop %v3410
          %v3412 = vmul.f32 %v3316, 1.442695
          %v3413 = vpow.pop %v3412
          %v3414 = vmul.f32 %v3317, 1.442695
          %v3415 = vpow.pop %v3414
          %v3416 = vmul.f32 %v3318, 1.442695
          %v3417 = vpow.pop %v3416
          %v3418 = vmul.f32 %v3319, 1.442695
          %v3419 = vpow.pop %v3418
          %v3420 = vmul.f32 %v3320, 1.442695
          %v3421 = vpow.pop %v3420
          %v3422 = vmul.f32 %v3321, 1.442695
          %v3423 = vpow.pop %v3422
          %v3424 = vmul.f32 %v3322, 1.442695
          %v3425 = vpow.pop %v3424
          %v3426 = vmul.f32 %v3323, 1.442695
          %v3427 = vpow.pop %v3426
          %v3428 = vmul.f32 %v3324, 1.442695
          %v3429 = vpow.pop %v3428
          %v3430 = vmul.f32 %v3325, 1.442695
          %v3431 = vpow.pop %v3430
          %v3432 = vmul.f32 %v3326, 1.442695
          %v3433 = vpow.pop %v3432
          %v3434 = vmul.f32 %v3327, 1.442695
          %v3435 = vpow.pop %v3434
          %v3436 = vmul.f32 %v3328, 1.442695
          %v3437 = vpow.pop %v3436
          %v3438 = vmul.f32 %v3329, 1.442695
          %v3439 = vpow.pop %v3438
          %v3440 = vmul.f32 %v3330, 1.442695
          %v3441 = vpow.pop %v3440
          %v3442 = vmul.f32 %v3331, 1.442695
          %v3443 = vpow.pop %v3442
          %v3444 = vmul.f32 %v3332, 1.442695
          %v3445 = vpow.pop %v3444
          %v3446 = vmul.f32 %v3333, 1.442695
          %v3447 = vpow.pop %v3446
          %v3448 = vmul.f32 %v3334, 1.442695
          %v3449 = vpow.pop %v3448
          %v3450 = vmul.f32 %v3335, 1.442695
          %v3451 = vpow.pop %v3450
          %v3452 = vmul.f32 %v3336, 1.442695
          %v3453 = vpow.pop %v3452
          %v3454 = vmul.f32 %v3337, 1.442695
          %v3455 = vpow.pop %v3454
          %v3456 = vmul.f32 %v3338, 1.442695
          %v3457 = vpow.pop %v3456
          %v3458 = vmul.f32 %v3339, 1.442695
          %v3459 = vpow.pop %v3458
          %v3460 = vmul.f32 %v3340, 1.442695
          %v3461 = vpow.pop %v3460
          %v3462 = vmul.f32 %v3341, 1.442695
          %v3463 = vpow.pop %v3462
          %v3464 = vmul.f32 %v3342, 1.442695
          %v3465 = vpow.pop %v3464
          %v3466 = vmul.f32 %v3343, 1.442695
          %v3467 = vpow.pop %v3466
          %v3468 = vmul.f32 %v3344, 1.442695
          %v3469 = vpow.pop %v3468
          %v3470 = vmul.f32 %v3345, 1.442695
          %v3471 = vpow.pop %v3470
          %v3472 = vmul.f32 %v3346, 1.442695
          %v3473 = vpow.pop %v3472
          %v3474 = vmul.f32 %v3347, 1.442695
          %v3475 = vpow.pop %v3474
          %v3476 = vsel %vm3171, %v3349, 0.0
          %v3477 = vsel %vm3171, %v3381, 0.0
          %v3478 = vadd.f32 %v3476, %v3477
          %v3479 = vsel %vm3171, %v3413, 0.0
          %v3480 = vadd.f32 %v3478, %v3479
          %v3481 = vsel %vm3171, %v3445, 0.0
          %v3482 = vadd.f32 %v3480, %v3481
          %v3483 = vsel %vm3171, %v3351, 0.0
          %v3484 = vsel %vm3171, %v3383, 0.0
          %v3485 = vadd.f32 %v3483, %v3484
          %v3486 = vsel %vm3171, %v3415, 0.0
          %v3487 = vadd.f32 %v3485, %v3486
          %v3488 = vsel %vm3171, %v3447, 0.0
          %v3489 = vadd.f32 %v3487, %v3488
          %v3490 = vsel %vm3171, %v3353, 0.0
          %v3491 = vsel %vm3171, %v3385, 0.0
          %v3492 = vadd.f32 %v3490, %v3491
          %v3493 = vsel %vm3171, %v3417, 0.0
          %v3494 = vadd.f32 %v3492, %v3493
          %v3495 = vsel %vm3171, %v3449, 0.0
          %v3496 = vadd.f32 %v3494, %v3495
          %v3497 = vsel %vm3171, %v3355, 0.0
          %v3498 = vsel %vm3171, %v3387, 0.0
          %v3499 = vadd.f32 %v3497, %v3498
          %v3500 = vsel %vm3171, %v3419, 0.0
          %v3501 = vadd.f32 %v3499, %v3500
          %v3502 = vsel %vm3171, %v3451, 0.0
          %v3503 = vadd.f32 %v3501, %v3502
          %v3504 = vsel %vm3171, %v3357, 0.0
          %v3505 = vsel %vm3171, %v3389, 0.0
          %v3506 = vadd.f32 %v3504, %v3505
          %v3507 = vsel %vm3171, %v3421, 0.0
          %v3508 = vadd.f32 %v3506, %v3507
          %v3509 = vsel %vm3171, %v3453, 0.0
          %v3510 = vadd.f32 %v3508, %v3509
          %v3511 = vsel %vm3171, %v3359, 0.0
          %v3512 = vsel %vm3171, %v3391, 0.0
          %v3513 = vadd.f32 %v3511, %v3512
          %v3514 = vsel %vm3171, %v3423, 0.0
          %v3515 = vadd.f32 %v3513, %v3514
          %v3516 = vsel %vm3171, %v3455, 0.0
          %v3517 = vadd.f32 %v3515, %v3516
          %v3518 = vsel %vm3171, %v3361, 0.0
          %v3519 = vsel %vm3171, %v3393, 0.0
          %v3520 = vadd.f32 %v3518, %v3519
          %v3521 = vsel %vm3171, %v3425, 0.0
          %v3522 = vadd.f32 %v3520, %v3521
          %v3523 = vsel %vm3171, %v3457, 0.0
          %v3524 = vadd.f32 %v3522, %v3523
          %v3525 = vsel %vm3171, %v3363, 0.0
          %v3526 = vsel %vm3171, %v3395, 0.0
          %v3527 = vadd.f32 %v3525, %v3526
          %v3528 = vsel %vm3171, %v3427, 0.0
          %v3529 = vadd.f32 %v3527, %v3528
          %v3530 = vsel %vm3171, %v3459, 0.0
          %v3531 = vadd.f32 %v3529, %v3530
          %v3532 = vsel %vm3171, %v3365, 0.0
          %v3533 = vsel %vm3171, %v3397, 0.0
          %v3534 = vadd.f32 %v3532, %v3533
          %v3535 = vsel %vm3171, %v3429, 0.0
          %v3536 = vadd.f32 %v3534, %v3535
          %v3537 = vsel %vm3171, %v3461, 0.0
          %v3538 = vadd.f32 %v3536, %v3537
          %v3539 = vsel %vm3171, %v3367, 0.0
          %v3540 = vsel %vm3171, %v3399, 0.0
          %v3541 = vadd.f32 %v3539, %v3540
          %v3542 = vsel %vm3171, %v3431, 0.0
          %v3543 = vadd.f32 %v3541, %v3542
          %v3544 = vsel %vm3171, %v3463, 0.0
          %v3545 = vadd.f32 %v3543, %v3544
          %v3546 = vsel %vm3171, %v3369, 0.0
          %v3547 = vsel %vm3171, %v3401, 0.0
          %v3548 = vadd.f32 %v3546, %v3547
          %v3549 = vsel %vm3171, %v3433, 0.0
          %v3550 = vadd.f32 %v3548, %v3549
          %v3551 = vsel %vm3171, %v3465, 0.0
          %v3552 = vadd.f32 %v3550, %v3551
          %v3553 = vsel %vm3171, %v3371, 0.0
          %v3554 = vsel %vm3171, %v3403, 0.0
          %v3555 = vadd.f32 %v3553, %v3554
          %v3556 = vsel %vm3171, %v3435, 0.0
          %v3557 = vadd.f32 %v3555, %v3556
          %v3558 = vsel %vm3171, %v3467, 0.0
          %v3559 = vadd.f32 %v3557, %v3558
          %v3560 = vsel %vm3171, %v3373, 0.0
          %v3561 = vsel %vm3171, %v3405, 0.0
          %v3562 = vadd.f32 %v3560, %v3561
          %v3563 = vsel %vm3171, %v3437, 0.0
          %v3564 = vadd.f32 %v3562, %v3563
          %v3565 = vsel %vm3171, %v3469, 0.0
          %v3566 = vadd.f32 %v3564, %v3565
          %v3567 = vsel %vm3171, %v3375, 0.0
          %v3568 = vsel %vm3171, %v3407, 0.0
          %v3569 = vadd.f32 %v3567, %v3568
          %v3570 = vsel %vm3171, %v3439, 0.0
          %v3571 = vadd.f32 %v3569, %v3570
          %v3572 = vsel %vm3171, %v3471, 0.0
          %v3573 = vadd.f32 %v3571, %v3572
          %v3574 = vsel %vm3171, %v3377, 0.0
          %v3575 = vsel %vm3171, %v3409, 0.0
          %v3576 = vadd.f32 %v3574, %v3575
          %v3577 = vsel %vm3171, %v3441, 0.0
          %v3578 = vadd.f32 %v3576, %v3577
          %v3579 = vsel %vm3171, %v3473, 0.0
          %v3580 = vadd.f32 %v3578, %v3579
          %v3581 = vsel %vm3171, %v3379, 0.0
          %v3582 = vsel %vm3171, %v3411, 0.0
          %v3583 = vadd.f32 %v3581, %v3582
          %v3584 = vsel %vm3171, %v3443, 0.0
          %v3585 = vadd.f32 %v3583, %v3584
          %v3586 = vsel %vm3171, %v3475, 0.0
          %v3587 = vadd.f32 %v3585, %v3586
          %v3588 = vrcp.pop %v3482
          %v3589 = vmul.f32 %v3349, %v3588
          %v3590 = vrcp.pop %v3489
          %v3591 = vmul.f32 %v3351, %v3590
          %v3592 = vrcp.pop %v3496
          %v3593 = vmul.f32 %v3353, %v3592
          %v3594 = vrcp.pop %v3503
          %v3595 = vmul.f32 %v3355, %v3594
          %v3596 = vrcp.pop %v3510
          %v3597 = vmul.f32 %v3357, %v3596
          %v3598 = vrcp.pop %v3517
          %v3599 = vmul.f32 %v3359, %v3598
          %v3600 = vrcp.pop %v3524
          %v3601 = vmul.f32 %v3361, %v3600
          %v3602 = vrcp.pop %v3531
          %v3603 = vmul.f32 %v3363, %v3602
          %v3604 = vrcp.pop %v3538
          %v3605 = vmul.f32 %v3365, %v3604
          %v3606 = vrcp.pop %v3545
          %v3607 = vmul.f32 %v3367, %v3606
          %v3608 = vrcp.pop %v3552
          %v3609 = vmul.f32 %v3369, %v3608
          %v3610 = vrcp.pop %v3559
          %v3611 = vmul.f32 %v3371, %v3610
          %v3612 = vrcp.pop %v3566
          %v3613 = vmul.f32 %v3373, %v3612
          %v3614 = vrcp.pop %v3573
          %v3615 = vmul.f32 %v3375, %v3614
          %v3616 = vrcp.pop %v3580
          %v3617 = vmul.f32 %v3377, %v3616
          %v3618 = vrcp.pop %v3587
          %v3619 = vmul.f32 %v3379, %v3618
          %v3620 = vmul.f32 %v3381, %v3588
          %v3621 = vmul.f32 %v3383, %v3590
          %v3622 = vmul.f32 %v3385, %v3592
          %v3623 = vmul.f32 %v3387, %v3594
          %v3624 = vmul.f32 %v3389, %v3596
          %v3625 = vmul.f32 %v3391, %v3598
          %v3626 = vmul.f32 %v3393, %v3600
          %v3627 = vmul.f32 %v3395, %v3602
          %v3628 = vmul.f32 %v3397, %v3604
          %v3629 = vmul.f32 %v3399, %v3606
          %v3630 = vmul.f32 %v3401, %v3608
          %v3631 = vmul.f32 %v3403, %v3610
          %v3632 = vmul.f32 %v3405, %v3612
          %v3633 = vmul.f32 %v3407, %v3614
          %v3634 = vmul.f32 %v3409, %v3616
          %v3635 = vmul.f32 %v3411, %v3618
          %v3636 = vmul.f32 %v3413, %v3588
          %v3637 = vmul.f32 %v3415, %v3590
          %v3638 = vmul.f32 %v3417, %v3592
          %v3639 = vmul.f32 %v3419, %v3594
          %v3640 = vmul.f32 %v3421, %v3596
          %v3641 = vmul.f32 %v3423, %v3598
          %v3642 = vmul.f32 %v3425, %v3600
          %v3643 = vmul.f32 %v3427, %v3602
          %v3644 = vmul.f32 %v3429, %v3604
          %v3645 = vmul.f32 %v3431, %v3606
          %v3646 = vmul.f32 %v3433, %v3608
          %v3647 = vmul.f32 %v3435, %v3610
          %v3648 = vmul.f32 %v3437, %v3612
          %v3649 = vmul.f32 %v3439, %v3614
          %v3650 = vmul.f32 %v3441, %v3616
          %v3651 = vmul.f32 %v3443, %v3618
          %v3652 = vmul.f32 %v3445, %v3588
          %v3653 = vmul.f32 %v3447, %v3590
          %v3654 = vmul.f32 %v3449, %v3592
          %v3655 = vmul.f32 %v3451, %v3594
          %v3656 = vmul.f32 %v3453, %v3596
          %v3657 = vmul.f32 %v3455, %v3598
          %v3658 = vmul.f32 %v3457, %v3600
          %v3659 = vmul.f32 %v3459, %v3602
          %v3660 = vmul.f32 %v3461, %v3604
          %v3661 = vmul.f32 %v3463, %v3606
          %v3662 = vmul.f32 %v3465, %v3608
          %v3663 = vmul.f32 %v3467, %v3610
          %v3664 = vmul.f32 %v3469, %v3612
          %v3665 = vmul.f32 %v3471, %v3614
          %v3666 = vmul.f32 %v3473, %v3616
          %v3667 = vmul.f32 %v3475, %v3618
          %3669 = vset.pattern.permute.xlu0 0
          %3670 = vperm.xlu0 %3669, %v3589
          %v3671 = vpop.permute.xlu0 %3670
          %3674 = vset.pattern.permute.xlu0 0
          %3675 = vperm.xlu0 %3674, %v3591
          %v3676 = vpop.permute.xlu0 %3675
          %3679 = vset.pattern.permute.xlu0 0
          %3680 = vperm.xlu0 %3679, %v3593
          %v3681 = vpop.permute.xlu0 %3680
          %3684 = vset.pattern.permute.xlu0 0
          %3685 = vperm.xlu0 %3684, %v3595
          %v3686 = vpop.permute.xlu0 %3685
          %3689 = vset.pattern.permute.xlu0 0
          %3690 = vperm.xlu0 %3689, %v3597
          %v3691 = vpop.permute.xlu0 %3690
          %3694 = vset.pattern.permute.xlu0 0
          %3695 = vperm.xlu0 %3694, %v3599
          %v3696 = vpop.permute.xlu0 %3695
          %3699 = vset.pattern.permute.xlu0 0
          %3700 = vperm.xlu0 %3699, %v3601
          %v3701 = vpop.permute.xlu0 %3700
          %3704 = vset.pattern.permute.xlu0 0
          %3705 = vperm.xlu0 %3704, %v3603
          %v3706 = vpop.permute.xlu0 %3705
          %3709 = vset.pattern.permute.xlu0 0
          %3710 = vperm.xlu0 %3709, %v3605
          %v3711 = vpop.permute.xlu0 %3710
          %3714 = vset.pattern.permute.xlu0 0
          %3715 = vperm.xlu0 %3714, %v3607
          %v3716 = vpop.permute.xlu0 %3715
          %3719 = vset.pattern.permute.xlu0 0
          %3720 = vperm.xlu0 %3719, %v3609
          %v3721 = vpop.permute.xlu0 %3720
          %3724 = vset.pattern.permute.xlu0 0
          %3725 = vperm.xlu0 %3724, %v3611
          %v3726 = vpop.permute.xlu0 %3725
          %3729 = vset.pattern.permute.xlu0 0
          %3730 = vperm.xlu0 %3729, %v3613
          %v3731 = vpop.permute.xlu0 %3730
          %3734 = vset.pattern.permute.xlu0 0
          %3735 = vperm.xlu0 %3734, %v3615
          %v3736 = vpop.permute.xlu0 %3735
          %3739 = vset.pattern.permute.xlu0 0
          %3740 = vperm.xlu0 %3739, %v3617
          %v3741 = vpop.permute.xlu0 %3740
          %3744 = vset.pattern.permute.xlu0 0
          %3745 = vperm.xlu0 %3744, %v3619
          %v3746 = vpop.permute.xlu0 %3745
          %v3748 = vmul.f32 %v3671, %v2042
          %v3749 = vmul.f32 %v3676, %v2043
          %v3750 = vmul.f32 %v3681, %v2044
          %v3751 = vmul.f32 %v3686, %v2045
          %v3752 = vmul.f32 %v3691, %v2046
          %v3753 = vmul.f32 %v3696, %v2047
          %v3754 = vmul.f32 %v3701, %v2048
          %v3755 = vmul.f32 %v3706, %v2049
          %v3756 = vmul.f32 %v3711, %v2050
          %v3757 = vmul.f32 %v3716, %v2051
          %v3758 = vmul.f32 %v3721, %v2052
          %v3759 = vmul.f32 %v3726, %v2053
          %v3760 = vmul.f32 %v3731, %v2054
          %v3761 = vmul.f32 %v3736, %v2055
          %v3762 = vmul.f32 %v3741, %v2056
          %v3763 = vmul.f32 %v3746, %v2057
          %3765 = vset.pattern.permute.xlu0 0
          %3766 = vperm.xlu0 %3765, %v3620
          %v3767 = vpop.permute.xlu0 %3766
          %3770 = vset.pattern.permute.xlu0 0
          %3771 = vperm.xlu0 %3770, %v3621
          %v3772 = vpop.permute.xlu0 %3771
          %3775 = vset.pattern.permute.xlu0 0
          %3776 = vperm.xlu0 %3775, %v3622
          %v3777 = vpop.permute.xlu0 %3776
          %3780 = vset.pattern.permute.xlu0 0
          %3781 = vperm.xlu0 %3780, %v3623
          %v3782 = vpop.permute.xlu0 %3781
          %3785 = vset.pattern.permute.xlu0 0
          %3786 = vperm.xlu0 %3785, %v3624
          %v3787 = vpop.permute.xlu0 %3786
          %3790 = vset.pattern.permute.xlu0 0
          %3791 = vperm.xlu0 %3790, %v3625
          %v3792 = vpop.permute.xlu0 %3791
          %3795 = vset.pattern.permute.xlu0 0
          %3796 = vperm.xlu0 %3795, %v3626
          %v3797 = vpop.permute.xlu0 %3796
          %3800 = vset.pattern.permute.xlu0 0
          %3801 = vperm.xlu0 %3800, %v3627
          %v3802 = vpop.permute.xlu0 %3801
          %3805 = vset.pattern.permute.xlu0 0
          %3806 = vperm.xlu0 %3805, %v3628
          %v3807 = vpop.permute.xlu0 %3806
          %3810 = vset.pattern.permute.xlu0 0
          %3811 = vperm.xlu0 %3810, %v3629
          %v3812 = vpop.permute.xlu0 %3811
          %3815 = vset.pattern.permute.xlu0 0
          %3816 = vperm.xlu0 %3815, %v3630
          %v3817 = vpop.permute.xlu0 %3816
          %3820 = vset.pattern.permute.xlu0 0
          %3821 = vperm.xlu0 %3820, %v3631
          %v3822 = vpop.permute.xlu0 %3821
          %3825 = vset.pattern.permute.xlu0 0
          %3826 = vperm.xlu0 %3825, %v3632
          %v3827 = vpop.permute.xlu0 %3826
          %3830 = vset.pattern.permute.xlu0 0
          %3831 = vperm.xlu0 %3830, %v3633
          %v3832 = vpop.permute.xlu0 %3831
          %3835 = vset.pattern.permute.xlu0 0
          %3836 = vperm.xlu0 %3835, %v3634
          %v3837 = vpop.permute.xlu0 %3836
          %3840 = vset.pattern.permute.xlu0 0
          %3841 = vperm.xlu0 %3840, %v3635
          %v3842 = vpop.permute.xlu0 %3841
          %v3844 = vmul.f32 %v3767, %v2042
          %v3845 = vmul.f32 %v3772, %v2043
          %v3846 = vmul.f32 %v3777, %v2044
          %v3847 = vmul.f32 %v3782, %v2045
          %v3848 = vmul.f32 %v3787, %v2046
          %v3849 = vmul.f32 %v3792, %v2047
          %v3850 = vmul.f32 %v3797, %v2048
          %v3851 = vmul.f32 %v3802, %v2049
          %v3852 = vmul.f32 %v3807, %v2050
          %v3853 = vmul.f32 %v3812, %v2051
          %v3854 = vmul.f32 %v3817, %v2052
          %v3855 = vmul.f32 %v3822, %v2053
          %v3856 = vmul.f32 %v3827, %v2054
          %v3857 = vmul.f32 %v3832, %v2055
          %v3858 = vmul.f32 %v3837, %v2056
          %v3859 = vmul.f32 %v3842, %v2057
          %3876 = vrot.lane.b32.xlu0 %v3844, 96
          %v3877 = vpop.permute.xlu0 %3876
          %3878 = vrot.lane.b32.xlu0 %v3845, 96
          %v3879 = vpop.permute.xlu0 %3878
          %3880 = vrot.lane.b32.xlu0 %v3846, 96
          %v3881 = vpop.permute.xlu0 %3880
          %3882 = vrot.lane.b32.xlu0 %v3847, 96
          %v3883 = vpop.permute.xlu0 %3882
          %3884 = vrot.lane.b32.xlu0 %v3848, 96
          %v3885 = vpop.permute.xlu0 %3884
          %3886 = vrot.lane.b32.xlu0 %v3849, 96
          %v3887 = vpop.permute.xlu0 %3886
          %3888 = vrot.lane.b32.xlu0 %v3850, 96
          %v3889 = vpop.permute.xlu0 %3888
          %3890 = vrot.lane.b32.xlu0 %v3851, 96
          %v3891 = vpop.permute.xlu0 %3890
          %3892 = vrot.lane.b32.xlu0 %v3852, 96
          %v3893 = vpop.permute.xlu0 %3892
          %3894 = vrot.lane.b32.xlu0 %v3853, 96
          %v3895 = vpop.permute.xlu0 %3894
          %3896 = vrot.lane.b32.xlu0 %v3854, 96
          %v3897 = vpop.permute.xlu0 %3896
          %3898 = vrot.lane.b32.xlu0 %v3855, 96
          %v3899 = vpop.permute.xlu0 %3898
          %3900 = vrot.lane.b32.xlu0 %v3856, 96
          %v3901 = vpop.permute.xlu0 %3900
          %3902 = vrot.lane.b32.xlu0 %v3857, 96
          %v3903 = vpop.permute.xlu0 %3902
          %3904 = vrot.lane.b32.xlu0 %v3858, 96
          %v3905 = vpop.permute.xlu0 %3904
          %3906 = vrot.lane.b32.xlu0 %v3859, 96
          %v3907 = vpop.permute.xlu0 %3906
          %v3924 = vadd.f32 %v3748, %v3877
          %v3925 = vadd.f32 %v3749, %v3879
          %v3926 = vadd.f32 %v3750, %v3881
          %v3927 = vadd.f32 %v3751, %v3883
          %v3928 = vadd.f32 %v3752, %v3885
          %v3929 = vadd.f32 %v3753, %v3887
          %v3930 = vadd.f32 %v3754, %v3889
          %v3931 = vadd.f32 %v3755, %v3891
          %v3932 = vadd.f32 %v3756, %v3893
          %v3933 = vadd.f32 %v3757, %v3895
          %v3934 = vadd.f32 %v3758, %v3897
          %v3935 = vadd.f32 %v3759, %v3899
          %v3936 = vadd.f32 %v3760, %v3901
          %v3937 = vadd.f32 %v3761, %v3903
          %v3938 = vadd.f32 %v3762, %v3905
          %v3939 = vadd.f32 %v3763, %v3907
          %3941 = vset.pattern.permute.xlu0 0
          %3942 = vperm.xlu0 %3941, %v3636
          %v3943 = vpop.permute.xlu0 %3942
          %3946 = vset.pattern.permute.xlu0 0
          %3947 = vperm.xlu0 %3946, %v3637
          %v3948 = vpop.permute.xlu0 %3947
          %3951 = vset.pattern.permute.xlu0 0
          %3952 = vperm.xlu0 %3951, %v3638
          %v3953 = vpop.permute.xlu0 %3952
          %3956 = vset.pattern.permute.xlu0 0
          %3957 = vperm.xlu0 %3956, %v3639
          %v3958 = vpop.permute.xlu0 %3957
          %3961 = vset.pattern.permute.xlu0 0
          %3962 = vperm.xlu0 %3961, %v3640
          %v3963 = vpop.permute.xlu0 %3962
          %3966 = vset.pattern.permute.xlu0 0
          %3967 = vperm.xlu0 %3966, %v3641
          %v3968 = vpop.permute.xlu0 %3967
          %3971 = vset.pattern.permute.xlu0 0
          %3972 = vperm.xlu0 %3971, %v3642
          %v3973 = vpop.permute.xlu0 %3972
          %3976 = vset.pattern.permute.xlu0 0
          %3977 = vperm.xlu0 %3976, %v3643
          %v3978 = vpop.permute.xlu0 %3977
          %3981 = vset.pattern.permute.xlu0 0
          %3982 = vperm.xlu0 %3981, %v3644
          %v3983 = vpop.permute.xlu0 %3982
          %3986 = vset.pattern.permute.xlu0 0
          %3987 = vperm.xlu0 %3986, %v3645
          %v3988 = vpop.permute.xlu0 %3987
          %3991 = vset.pattern.permute.xlu0 0
          %3992 = vperm.xlu0 %3991, %v3646
          %v3993 = vpop.permute.xlu0 %3992
          %3996 = vset.pattern.permute.xlu0 0
          %3997 = vperm.xlu0 %3996, %v3647
          %v3998 = vpop.permute.xlu0 %3997
          %4001 = vset.pattern.permute.xlu0 0
          %4002 = vperm.xlu0 %4001, %v3648
          %v4003 = vpop.permute.xlu0 %4002
          %4006 = vset.pattern.permute.xlu0 0
          %4007 = vperm.xlu0 %4006, %v3649
          %v4008 = vpop.permute.xlu0 %4007
          %4011 = vset.pattern.permute.xlu0 0
          %4012 = vperm.xlu0 %4011, %v3650
          %v4013 = vpop.permute.xlu0 %4012
          %4016 = vset.pattern.permute.xlu0 0
          %4017 = vperm.xlu0 %4016, %v3651
          %v4018 = vpop.permute.xlu0 %4017
          %v4020 = vmul.f32 %v3943, %v2042
          %v4021 = vmul.f32 %v3948, %v2043
          %v4022 = vmul.f32 %v3953, %v2044
          %v4023 = vmul.f32 %v3958, %v2045
          %v4024 = vmul.f32 %v3963, %v2046
          %v4025 = vmul.f32 %v3968, %v2047
          %v4026 = vmul.f32 %v3973, %v2048
          %v4027 = vmul.f32 %v3978, %v2049
          %v4028 = vmul.f32 %v3983, %v2050
          %v4029 = vmul.f32 %v3988, %v2051
          %v4030 = vmul.f32 %v3993, %v2052
          %v4031 = vmul.f32 %v3998, %v2053
          %v4032 = vmul.f32 %v4003, %v2054
          %v4033 = vmul.f32 %v4008, %v2055
          %v4034 = vmul.f32 %v4013, %v2056
          %v4035 = vmul.f32 %v4018, %v2057
          %4052 = vrot.lane.b32.xlu0 %v4020, 64
          %v4053 = vpop.permute.xlu0 %4052
          %4054 = vrot.lane.b32.xlu0 %v4021, 64
          %v4055 = vpop.permute.xlu0 %4054
          %4056 = vrot.lane.b32.xlu0 %v4022, 64
          %v4057 = vpop.permute.xlu0 %4056
          %4058 = vrot.lane.b32.xlu0 %v4023, 64
          %v4059 = vpop.permute.xlu0 %4058
          %4060 = vrot.lane.b32.xlu0 %v4024, 64
          %v4061 = vpop.permute.xlu0 %4060
          %4062 = vrot.lane.b32.xlu0 %v4025, 64
          %v4063 = vpop.permute.xlu0 %4062
          %4064 = vrot.lane.b32.xlu0 %v4026, 64
          %v4065 = vpop.permute.xlu0 %4064
          %4066 = vrot.lane.b32.xlu0 %v4027, 64
          %v4067 = vpop.permute.xlu0 %4066
          %4068 = vrot.lane.b32.xlu0 %v4028, 64
          %v4069 = vpop.permute.xlu0 %4068
          %4070 = vrot.lane.b32.xlu0 %v4029, 64
          %v4071 = vpop.permute.xlu0 %4070
          %4072 = vrot.lane.b32.xlu0 %v4030, 64
          %v4073 = vpop.permute.xlu0 %4072
          %4074 = vrot.lane.b32.xlu0 %v4031, 64
          %v4075 = vpop.permute.xlu0 %4074
          %4076 = vrot.lane.b32.xlu0 %v4032, 64
          %v4077 = vpop.permute.xlu0 %4076
          %4078 = vrot.lane.b32.xlu0 %v4033, 64
          %v4079 = vpop.permute.xlu0 %4078
          %4080 = vrot.lane.b32.xlu0 %v4034, 64
          %v4081 = vpop.permute.xlu0 %4080
          %4082 = vrot.lane.b32.xlu0 %v4035, 64
          %v4083 = vpop.permute.xlu0 %4082
          %v4100 = vadd.f32 %v3924, %v4053
          %v4101 = vadd.f32 %v3925, %v4055
          %v4102 = vadd.f32 %v3926, %v4057
          %v4103 = vadd.f32 %v3927, %v4059
          %v4104 = vadd.f32 %v3928, %v4061
          %v4105 = vadd.f32 %v3929, %v4063
          %v4106 = vadd.f32 %v3930, %v4065
          %v4107 = vadd.f32 %v3931, %v4067
          %v4108 = vadd.f32 %v3932, %v4069
          %v4109 = vadd.f32 %v3933, %v4071
          %v4110 = vadd.f32 %v3934, %v4073
          %v4111 = vadd.f32 %v3935, %v4075
          %v4112 = vadd.f32 %v3936, %v4077
          %v4113 = vadd.f32 %v3937, %v4079
          %v4114 = vadd.f32 %v3938, %v4081
          %v4115 = vadd.f32 %v3939, %v4083
          %4117 = vset.pattern.permute.xlu0 0
          %4118 = vperm.xlu0 %4117, %v3652
          %v4119 = vpop.permute.xlu0 %4118
          %4122 = vset.pattern.permute.xlu0 0
          %4123 = vperm.xlu0 %4122, %v3653
          %v4124 = vpop.permute.xlu0 %4123
          %4127 = vset.pattern.permute.xlu0 0
          %4128 = vperm.xlu0 %4127, %v3654
          %v4129 = vpop.permute.xlu0 %4128
          %4132 = vset.pattern.permute.xlu0 0
          %4133 = vperm.xlu0 %4132, %v3655
          %v4134 = vpop.permute.xlu0 %4133
          %4137 = vset.pattern.permute.xlu0 0
          %4138 = vperm.xlu0 %4137, %v3656
          %v4139 = vpop.permute.xlu0 %4138
          %4142 = vset.pattern.permute.xlu0 0
          %4143 = vperm.xlu0 %4142, %v3657
          %v4144 = vpop.permute.xlu0 %4143
          %4147 = vset.pattern.permute.xlu0 0
          %4148 = vperm.xlu0 %4147, %v3658
          %v4149 = vpop.permute.xlu0 %4148
          %4152 = vset.pattern.permute.xlu0 0
          %4153 = vperm.xlu0 %4152, %v3659
          %v4154 = vpop.permute.xlu0 %4153
          %4157 = vset.pattern.permute.xlu0 0
          %4158 = vperm.xlu0 %4157, %v3660
          %v4159 = vpop.permute.xlu0 %4158
          %4162 = vset.pattern.permute.xlu0 0
          %4163 = vperm.xlu0 %4162, %v3661
          %v4164 = vpop.permute.xlu0 %4163
          %4167 = vset.pattern.permute.xlu0 0
          %4168 = vperm.xlu0 %4167, %v3662
          %v4169 = vpop.permute.xlu0 %4168
          %4172 = vset.pattern.permute.xlu0 0
          %4173 = vperm.xlu0 %4172, %v3663
          %v4174 = vpop.permute.xlu0 %4173
          %4177 = vset.pattern.permute.xlu0 0
          %4178 = vperm.xlu0 %4177, %v3664
          %v4179 = vpop.permute.xlu0 %4178
          %4182 = vset.pattern.permute.xlu0 0
          %4183 = vperm.xlu0 %4182, %v3665
          %v4184 = vpop.permute.xlu0 %4183
          %4187 = vset.pattern.permute.xlu0 0
          %4188 = vperm.xlu0 %4187, %v3666
          %v4189 = vpop.permute.xlu0 %4188
          %4192 = vset.pattern.permute.xlu0 0
          %4193 = vperm.xlu0 %4192, %v3667
          %v4194 = vpop.permute.xlu0 %4193
          %v4196 = vmul.f32 %v4119, %v2042
          %v4197 = vmul.f32 %v4124, %v2043
          %v4198 = vmul.f32 %v4129, %v2044
          %v4199 = vmul.f32 %v4134, %v2045
          %v4200 = vmul.f32 %v4139, %v2046
          %v4201 = vmul.f32 %v4144, %v2047
          %v4202 = vmul.f32 %v4149, %v2048
          %v4203 = vmul.f32 %v4154, %v2049
          %v4204 = vmul.f32 %v4159, %v2050
          %v4205 = vmul.f32 %v4164, %v2051
          %v4206 = vmul.f32 %v4169, %v2052
          %v4207 = vmul.f32 %v4174, %v2053
          %v4208 = vmul.f32 %v4179, %v2054
          %v4209 = vmul.f32 %v4184, %v2055
          %v4210 = vmul.f32 %v4189, %v2056
          %v4211 = vmul.f32 %v4194, %v2057
          %4228 = vrot.lane.b32.xlu0 %v4196, 32
          %v4229 = vpop.permute.xlu0 %4228
          %4230 = vrot.lane.b32.xlu0 %v4197, 32
          %v4231 = vpop.permute.xlu0 %4230
          %4232 = vrot.lane.b32.xlu0 %v4198, 32
          %v4233 = vpop.permute.xlu0 %4232
          %4234 = vrot.lane.b32.xlu0 %v4199, 32
          %v4235 = vpop.permute.xlu0 %4234
          %4236 = vrot.lane.b32.xlu0 %v4200, 32
          %v4237 = vpop.permute.xlu0 %4236
          %4238 = vrot.lane.b32.xlu0 %v4201, 32
          %v4239 = vpop.permute.xlu0 %4238
          %4240 = vrot.lane.b32.xlu0 %v4202, 32
          %v4241 = vpop.permute.xlu0 %4240
          %4242 = vrot.lane.b32.xlu0 %v4203, 32
          %v4243 = vpop.permute.xlu0 %4242
          %4244 = vrot.lane.b32.xlu0 %v4204, 32
          %v4245 = vpop.permute.xlu0 %4244
          %4246 = vrot.lane.b32.xlu0 %v4205, 32
          %v4247 = vpop.permute.xlu0 %4246
          %4248 = vrot.lane.b32.xlu0 %v4206, 32
          %v4249 = vpop.permute.xlu0 %4248
          %4250 = vrot.lane.b32.xlu0 %v4207, 32
          %v4251 = vpop.permute.xlu0 %4250
          %4252 = vrot.lane.b32.xlu0 %v4208, 32
          %v4253 = vpop.permute.xlu0 %4252
          %4254 = vrot.lane.b32.xlu0 %v4209, 32
          %v4255 = vpop.permute.xlu0 %4254
          %4256 = vrot.lane.b32.xlu0 %v4210, 32
          %v4257 = vpop.permute.xlu0 %4256
          %4258 = vrot.lane.b32.xlu0 %v4211, 32
          %v4259 = vpop.permute.xlu0 %4258
          %v4276 = vadd.f32 %v4100, %v4229
          %v4277 = vadd.f32 %v4101, %v4231
          %v4278 = vadd.f32 %v4102, %v4233
          %v4279 = vadd.f32 %v4103, %v4235
          %v4280 = vadd.f32 %v4104, %v4237
          %v4281 = vadd.f32 %v4105, %v4239
          %v4282 = vadd.f32 %v4106, %v4241
          %v4283 = vadd.f32 %v4107, %v4243
          %v4284 = vadd.f32 %v4108, %v4245
          %v4285 = vadd.f32 %v4109, %v4247
          %v4286 = vadd.f32 %v4110, %v4249
          %v4287 = vadd.f32 %v4111, %v4251
          %v4288 = vadd.f32 %v4112, %v4253
          %v4289 = vadd.f32 %v4113, %v4255
          %v4290 = vadd.f32 %v4114, %v4257
          %v4291 = vadd.f32 %v4115, %v4259
          %4292 = vset.pattern.permute.xlu0 1
          %4293 = vperm.xlu0 %4292, %v3589
          %v4294 = vpop.permute.xlu0 %4293
          %4296 = vset.pattern.permute.xlu0 1
          %4297 = vperm.xlu0 %4296, %v3591
          %v4298 = vpop.permute.xlu0 %4297
          %4300 = vset.pattern.permute.xlu0 1
          %4301 = vperm.xlu0 %4300, %v3593
          %v4302 = vpop.permute.xlu0 %4301
          %4304 = vset.pattern.permute.xlu0 1
          %4305 = vperm.xlu0 %4304, %v3595
          %v4306 = vpop.permute.xlu0 %4305
          %4308 = vset.pattern.permute.xlu0 1
          %4309 = vperm.xlu0 %4308, %v3597
          %v4310 = vpop.permute.xlu0 %4309
          %4312 = vset.pattern.permute.xlu0 1
          %4313 = vperm.xlu0 %4312, %v3599
          %v4314 = vpop.permute.xlu0 %4313
          %4316 = vset.pattern.permute.xlu0 1
          %4317 = vperm.xlu0 %4316, %v3601
          %v4318 = vpop.permute.xlu0 %4317
          %4320 = vset.pattern.permute.xlu0 1
          %4321 = vperm.xlu0 %4320, %v3603
          %v4322 = vpop.permute.xlu0 %4321
          %4324 = vset.pattern.permute.xlu0 1
          %4325 = vperm.xlu0 %4324, %v3605
          %v4326 = vpop.permute.xlu0 %4325
          %4328 = vset.pattern.permute.xlu0 1
          %4329 = vperm.xlu0 %4328, %v3607
          %v4330 = vpop.permute.xlu0 %4329
          %4332 = vset.pattern.permute.xlu0 1
          %4333 = vperm.xlu0 %4332, %v3609
          %v4334 = vpop.permute.xlu0 %4333
          %4336 = vset.pattern.permute.xlu0 1
          %4337 = vperm.xlu0 %4336, %v3611
          %v4338 = vpop.permute.xlu0 %4337
          %4340 = vset.pattern.permute.xlu0 1
          %4341 = vperm.xlu0 %4340, %v3613
          %v4342 = vpop.permute.xlu0 %4341
          %4344 = vset.pattern.permute.xlu0 1
          %4345 = vperm.xlu0 %4344, %v3615
          %v4346 = vpop.permute.xlu0 %4345
          %4348 = vset.pattern.permute.xlu0 1
          %4349 = vperm.xlu0 %4348, %v3617
          %v4350 = vpop.permute.xlu0 %4349
          %4352 = vset.pattern.permute.xlu0 1
          %4353 = vperm.xlu0 %4352, %v3619
          %v4354 = vpop.permute.xlu0 %4353
          %v4356 = vmul.f32 %v4294, %v2042
          %v4357 = vmul.f32 %v4298, %v2043
          %v4358 = vmul.f32 %v4302, %v2044
          %v4359 = vmul.f32 %v4306, %v2045
          %v4360 = vmul.f32 %v4310, %v2046
          %v4361 = vmul.f32 %v4314, %v2047
          %v4362 = vmul.f32 %v4318, %v2048
          %v4363 = vmul.f32 %v4322, %v2049
          %v4364 = vmul.f32 %v4326, %v2050
          %v4365 = vmul.f32 %v4330, %v2051
          %v4366 = vmul.f32 %v4334, %v2052
          %v4367 = vmul.f32 %v4338, %v2053
          %v4368 = vmul.f32 %v4342, %v2054
          %v4369 = vmul.f32 %v4346, %v2055
          %v4370 = vmul.f32 %v4350, %v2056
          %v4371 = vmul.f32 %v4354, %v2057
          %4372 = vset.pattern.permute.xlu0 1
          %4373 = vperm.xlu0 %4372, %v3620
          %v4374 = vpop.permute.xlu0 %4373
          %4376 = vset.pattern.permute.xlu0 1
          %4377 = vperm.xlu0 %4376, %v3621
          %v4378 = vpop.permute.xlu0 %4377
          %4380 = vset.pattern.permute.xlu0 1
          %4381 = vperm.xlu0 %4380, %v3622
          %v4382 = vpop.permute.xlu0 %4381
          %4384 = vset.pattern.permute.xlu0 1
          %4385 = vperm.xlu0 %4384, %v3623
          %v4386 = vpop.permute.xlu0 %4385
          %4388 = vset.pattern.permute.xlu0 1
          %4389 = vperm.xlu0 %4388, %v3624
          %v4390 = vpop.permute.xlu0 %4389
          %4392 = vset.pattern.permute.xlu0 1
          %4393 = vperm.xlu0 %4392, %v3625
          %v4394 = vpop.permute.xlu0 %4393
          %4396 = vset.pattern.permute.xlu0 1
          %4397 = vperm.xlu0 %4396, %v3626
          %v4398 = vpop.permute.xlu0 %4397
          %4400 = vset.pattern.permute.xlu0 1
          %4401 = vperm.xlu0 %4400, %v3627
          %v4402 = vpop.permute.xlu0 %4401
          %4404 = vset.pattern.permute.xlu0 1
          %4405 = vperm.xlu0 %4404, %v3628
          %v4406 = vpop.permute.xlu0 %4405
          %4408 = vset.pattern.permute.xlu0 1
          %4409 = vperm.xlu0 %4408, %v3629
          %v4410 = vpop.permute.xlu0 %4409
          %4412 = vset.pattern.permute.xlu0 1
          %4413 = vperm.xlu0 %4412, %v3630
          %v4414 = vpop.permute.xlu0 %4413
          %4416 = vset.pattern.permute.xlu0 1
          %4417 = vperm.xlu0 %4416, %v3631
          %v4418 = vpop.permute.xlu0 %4417
          %4420 = vset.pattern.permute.xlu0 1
          %4421 = vperm.xlu0 %4420, %v3632
          %v4422 = vpop.permute.xlu0 %4421
          %4424 = vset.pattern.permute.xlu0 1
          %4425 = vperm.xlu0 %4424, %v3633
          %v4426 = vpop.permute.xlu0 %4425
          %4428 = vset.pattern.permute.xlu0 1
          %4429 = vperm.xlu0 %4428, %v3634
          %v4430 = vpop.permute.xlu0 %4429
          %4432 = vset.pattern.permute.xlu0 1
          %4433 = vperm.xlu0 %4432, %v3635
          %v4434 = vpop.permute.xlu0 %4433
          %v4436 = vmul.f32 %v4374, %v2042
          %v4437 = vmul.f32 %v4378, %v2043
          %v4438 = vmul.f32 %v4382, %v2044
          %v4439 = vmul.f32 %v4386, %v2045
          %v4440 = vmul.f32 %v4390, %v2046
          %v4441 = vmul.f32 %v4394, %v2047
          %v4442 = vmul.f32 %v4398, %v2048
          %v4443 = vmul.f32 %v4402, %v2049
          %v4444 = vmul.f32 %v4406, %v2050
          %v4445 = vmul.f32 %v4410, %v2051
          %v4446 = vmul.f32 %v4414, %v2052
          %v4447 = vmul.f32 %v4418, %v2053
          %v4448 = vmul.f32 %v4422, %v2054
          %v4449 = vmul.f32 %v4426, %v2055
          %v4450 = vmul.f32 %v4430, %v2056
          %v4451 = vmul.f32 %v4434, %v2057
          %4468 = vrot.lane.b32.xlu0 %v4436, 96
          %v4469 = vpop.permute.xlu0 %4468
          %4470 = vrot.lane.b32.xlu0 %v4437, 96
          %v4471 = vpop.permute.xlu0 %4470
          %4472 = vrot.lane.b32.xlu0 %v4438, 96
          %v4473 = vpop.permute.xlu0 %4472
          %4474 = vrot.lane.b32.xlu0 %v4439, 96
          %v4475 = vpop.permute.xlu0 %4474
          %4476 = vrot.lane.b32.xlu0 %v4440, 96
          %v4477 = vpop.permute.xlu0 %4476
          %4478 = vrot.lane.b32.xlu0 %v4441, 96
          %v4479 = vpop.permute.xlu0 %4478
          %4480 = vrot.lane.b32.xlu0 %v4442, 96
          %v4481 = vpop.permute.xlu0 %4480
          %4482 = vrot.lane.b32.xlu0 %v4443, 96
          %v4483 = vpop.permute.xlu0 %4482
          %4484 = vrot.lane.b32.xlu0 %v4444, 96
          %v4485 = vpop.permute.xlu0 %4484
          %4486 = vrot.lane.b32.xlu0 %v4445, 96
          %v4487 = vpop.permute.xlu0 %4486
          %4488 = vrot.lane.b32.xlu0 %v4446, 96
          %v4489 = vpop.permute.xlu0 %4488
          %4490 = vrot.lane.b32.xlu0 %v4447, 96
          %v4491 = vpop.permute.xlu0 %4490
          %4492 = vrot.lane.b32.xlu0 %v4448, 96
          %v4493 = vpop.permute.xlu0 %4492
          %4494 = vrot.lane.b32.xlu0 %v4449, 96
          %v4495 = vpop.permute.xlu0 %4494
          %4496 = vrot.lane.b32.xlu0 %v4450, 96
          %v4497 = vpop.permute.xlu0 %4496
          %4498 = vrot.lane.b32.xlu0 %v4451, 96
          %v4499 = vpop.permute.xlu0 %4498
          %v4516 = vadd.f32 %v4356, %v4469
          %v4517 = vadd.f32 %v4357, %v4471
          %v4518 = vadd.f32 %v4358, %v4473
          %v4519 = vadd.f32 %v4359, %v4475
          %v4520 = vadd.f32 %v4360, %v4477
          %v4521 = vadd.f32 %v4361, %v4479
          %v4522 = vadd.f32 %v4362, %v4481
          %v4523 = vadd.f32 %v4363, %v4483
          %v4524 = vadd.f32 %v4364, %v4485
          %v4525 = vadd.f32 %v4365, %v4487
          %v4526 = vadd.f32 %v4366, %v4489
          %v4527 = vadd.f32 %v4367, %v4491
          %v4528 = vadd.f32 %v4368, %v4493
          %v4529 = vadd.f32 %v4369, %v4495
          %v4530 = vadd.f32 %v4370, %v4497
          %v4531 = vadd.f32 %v4371, %v4499
          %4532 = vset.pattern.permute.xlu0 1
          %4533 = vperm.xlu0 %4532, %v3636
          %v4534 = vpop.permute.xlu0 %4533
          %4536 = vset.pattern.permute.xlu0 1
          %4537 = vperm.xlu0 %4536, %v3637
          %v4538 = vpop.permute.xlu0 %4537
          %4540 = vset.pattern.permute.xlu0 1
          %4541 = vperm.xlu0 %4540, %v3638
          %v4542 = vpop.permute.xlu0 %4541
          %4544 = vset.pattern.permute.xlu0 1
          %4545 = vperm.xlu0 %4544, %v3639
          %v4546 = vpop.permute.xlu0 %4545
          %4548 = vset.pattern.permute.xlu0 1
          %4549 = vperm.xlu0 %4548, %v3640
          %v4550 = vpop.permute.xlu0 %4549
          %4552 = vset.pattern.permute.xlu0 1
          %4553 = vperm.xlu0 %4552, %v3641
          %v4554 = vpop.permute.xlu0 %4553
          %4556 = vset.pattern.permute.xlu0 1
          %4557 = vperm.xlu0 %4556, %v3642
          %v4558 = vpop.permute.xlu0 %4557
          %4560 = vset.pattern.permute.xlu0 1
          %4561 = vperm.xlu0 %4560, %v3643
          %v4562 = vpop.permute.xlu0 %4561
          %4564 = vset.pattern.permute.xlu0 1
          %4565 = vperm.xlu0 %4564, %v3644
          %v4566 = vpop.permute.xlu0 %4565
          %4568 = vset.pattern.permute.xlu0 1
          %4569 = vperm.xlu0 %4568, %v3645
          %v4570 = vpop.permute.xlu0 %4569
          %4572 = vset.pattern.permute.xlu0 1
          %4573 = vperm.xlu0 %4572, %v3646
          %v4574 = vpop.permute.xlu0 %4573
          %4576 = vset.pattern.permute.xlu0 1
          %4577 = vperm.xlu0 %4576, %v3647
          %v4578 = vpop.permute.xlu0 %4577
          %4580 = vset.pattern.permute.xlu0 1
          %4581 = vperm.xlu0 %4580, %v3648
          %v4582 = vpop.permute.xlu0 %4581
          %4584 = vset.pattern.permute.xlu0 1
          %4585 = vperm.xlu0 %4584, %v3649
          %v4586 = vpop.permute.xlu0 %4585
          %4588 = vset.pattern.permute.xlu0 1
          %4589 = vperm.xlu0 %4588, %v3650
          %v4590 = vpop.permute.xlu0 %4589
          %4592 = vset.pattern.permute.xlu0 1
          %4593 = vperm.xlu0 %4592, %v3651
          %v4594 = vpop.permute.xlu0 %4593
          %v4596 = vmul.f32 %v4534, %v2042
          %v4597 = vmul.f32 %v4538, %v2043
          %v4598 = vmul.f32 %v4542, %v2044
          %v4599 = vmul.f32 %v4546, %v2045
          %v4600 = vmul.f32 %v4550, %v2046
          %v4601 = vmul.f32 %v4554, %v2047
          %v4602 = vmul.f32 %v4558, %v2048
          %v4603 = vmul.f32 %v4562, %v2049
          %v4604 = vmul.f32 %v4566, %v2050
          %v4605 = vmul.f32 %v4570, %v2051
          %v4606 = vmul.f32 %v4574, %v2052
          %v4607 = vmul.f32 %v4578, %v2053
          %v4608 = vmul.f32 %v4582, %v2054
          %v4609 = vmul.f32 %v4586, %v2055
          %v4610 = vmul.f32 %v4590, %v2056
          %v4611 = vmul.f32 %v4594, %v2057
          %4628 = vrot.lane.b32.xlu0 %v4596, 64
          %v4629 = vpop.permute.xlu0 %4628
          %4630 = vrot.lane.b32.xlu0 %v4597, 64
          %v4631 = vpop.permute.xlu0 %4630
          %4632 = vrot.lane.b32.xlu0 %v4598, 64
          %v4633 = vpop.permute.xlu0 %4632
          %4634 = vrot.lane.b32.xlu0 %v4599, 64
          %v4635 = vpop.permute.xlu0 %4634
          %4636 = vrot.lane.b32.xlu0 %v4600, 64
          %v4637 = vpop.permute.xlu0 %4636
          %4638 = vrot.lane.b32.xlu0 %v4601, 64
          %v4639 = vpop.permute.xlu0 %4638
          %4640 = vrot.lane.b32.xlu0 %v4602, 64
          %v4641 = vpop.permute.xlu0 %4640
          %4642 = vrot.lane.b32.xlu0 %v4603, 64
          %v4643 = vpop.permute.xlu0 %4642
          %4644 = vrot.lane.b32.xlu0 %v4604, 64
          %v4645 = vpop.permute.xlu0 %4644
          %4646 = vrot.lane.b32.xlu0 %v4605, 64
          %v4647 = vpop.permute.xlu0 %4646
          %4648 = vrot.lane.b32.xlu0 %v4606, 64
          %v4649 = vpop.permute.xlu0 %4648
          %4650 = vrot.lane.b32.xlu0 %v4607, 64
          %v4651 = vpop.permute.xlu0 %4650
          %4652 = vrot.lane.b32.xlu0 %v4608, 64
          %v4653 = vpop.permute.xlu0 %4652
          %4654 = vrot.lane.b32.xlu0 %v4609, 64
          %v4655 = vpop.permute.xlu0 %4654
          %4656 = vrot.lane.b32.xlu0 %v4610, 64
          %v4657 = vpop.permute.xlu0 %4656
          %4658 = vrot.lane.b32.xlu0 %v4611, 64
          %v4659 = vpop.permute.xlu0 %4658
          %v4676 = vadd.f32 %v4516, %v4629
          %v4677 = vadd.f32 %v4517, %v4631
          %v4678 = vadd.f32 %v4518, %v4633
          %v4679 = vadd.f32 %v4519, %v4635
          %v4680 = vadd.f32 %v4520, %v4637
          %v4681 = vadd.f32 %v4521, %v4639
          %v4682 = vadd.f32 %v4522, %v4641
          %v4683 = vadd.f32 %v4523, %v4643
          %v4684 = vadd.f32 %v4524, %v4645
          %v4685 = vadd.f32 %v4525, %v4647
          %v4686 = vadd.f32 %v4526, %v4649
          %v4687 = vadd.f32 %v4527, %v4651
          %v4688 = vadd.f32 %v4528, %v4653
          %v4689 = vadd.f32 %v4529, %v4655
          %v4690 = vadd.f32 %v4530, %v4657
          %v4691 = vadd.f32 %v4531, %v4659
          %4692 = vset.pattern.permute.xlu0 1
          %4693 = vperm.xlu0 %4692, %v3652
          %v4694 = vpop.permute.xlu0 %4693
          %4696 = vset.pattern.permute.xlu0 1
          %4697 = vperm.xlu0 %4696, %v3653
          %v4698 = vpop.permute.xlu0 %4697
          %4700 = vset.pattern.permute.xlu0 1
          %4701 = vperm.xlu0 %4700, %v3654
          %v4702 = vpop.permute.xlu0 %4701
          %4704 = vset.pattern.permute.xlu0 1
          %4705 = vperm.xlu0 %4704, %v3655
          %v4706 = vpop.permute.xlu0 %4705
          %4708 = vset.pattern.permute.xlu0 1
          %4709 = vperm.xlu0 %4708, %v3656
          %v4710 = vpop.permute.xlu0 %4709
          %4712 = vset.pattern.permute.xlu0 1
          %4713 = vperm.xlu0 %4712, %v3657
          %v4714 = vpop.permute.xlu0 %4713
          %4716 = vset.pattern.permute.xlu0 1
          %4717 = vperm.xlu0 %4716, %v3658
          %v4718 = vpop.permute.xlu0 %4717
          %4720 = vset.pattern.permute.xlu0 1
          %4721 = vperm.xlu0 %4720, %v3659
          %v4722 = vpop.permute.xlu0 %4721
          %4724 = vset.pattern.permute.xlu0 1
          %4725 = vperm.xlu0 %4724, %v3660
          %v4726 = vpop.permute.xlu0 %4725
          %4728 = vset.pattern.permute.xlu0 1
          %4729 = vperm.xlu0 %4728, %v3661
          %v4730 = vpop.permute.xlu0 %4729
          %4732 = vset.pattern.permute.xlu0 1
          %4733 = vperm.xlu0 %4732, %v3662
          %v4734 = vpop.permute.xlu0 %4733
          %4736 = vset.pattern.permute.xlu0 1
          %4737 = vperm.xlu0 %4736, %v3663
          %v4738 = vpop.permute.xlu0 %4737
          %4740 = vset.pattern.permute.xlu0 1
          %4741 = vperm.xlu0 %4740, %v3664
          %v4742 = vpop.permute.xlu0 %4741
          %4744 = vset.pattern.permute.xlu0 1
          %4745 = vperm.xlu0 %4744, %v3665
          %v4746 = vpop.permute.xlu0 %4745
          %4748 = vset.pattern.permute.xlu0 1
          %4749 = vperm.xlu0 %4748, %v3666
          %v4750 = vpop.permute.xlu0 %4749
          %4752 = vset.pattern.permute.xlu0 1
          %4753 = vperm.xlu0 %4752, %v3667
          %v4754 = vpop.permute.xlu0 %4753
          %v4756 = vmul.f32 %v4694, %v2042
          %v4757 = vmul.f32 %v4698, %v2043
          %v4758 = vmul.f32 %v4702, %v2044
          %v4759 = vmul.f32 %v4706, %v2045
          %v4760 = vmul.f32 %v4710, %v2046
          %v4761 = vmul.f32 %v4714, %v2047
          %v4762 = vmul.f32 %v4718, %v2048
          %v4763 = vmul.f32 %v4722, %v2049
          %v4764 = vmul.f32 %v4726, %v2050
          %v4765 = vmul.f32 %v4730, %v2051
          %v4766 = vmul.f32 %v4734, %v2052
          %v4767 = vmul.f32 %v4738, %v2053
          %v4768 = vmul.f32 %v4742, %v2054
          %v4769 = vmul.f32 %v4746, %v2055
          %v4770 = vmul.f32 %v4750, %v2056
          %v4771 = vmul.f32 %v4754, %v2057
          %4788 = vrot.lane.b32.xlu0 %v4756, 32
          %v4789 = vpop.permute.xlu0 %4788
          %4790 = vrot.lane.b32.xlu0 %v4757, 32
          %v4791 = vpop.permute.xlu0 %4790
          %4792 = vrot.lane.b32.xlu0 %v4758, 32
          %v4793 = vpop.permute.xlu0 %4792
          %4794 = vrot.lane.b32.xlu0 %v4759, 32
          %v4795 = vpop.permute.xlu0 %4794
          %4796 = vrot.lane.b32.xlu0 %v4760, 32
          %v4797 = vpop.permute.xlu0 %4796
          %4798 = vrot.lane.b32.xlu0 %v4761, 32
          %v4799 = vpop.permute.xlu0 %4798
          %4800 = vrot.lane.b32.xlu0 %v4762, 32
          %v4801 = vpop.permute.xlu0 %4800
          %4802 = vrot.lane.b32.xlu0 %v4763, 32
          %v4803 = vpop.permute.xlu0 %4802
          %4804 = vrot.lane.b32.xlu0 %v4764, 32
          %v4805 = vpop.permute.xlu0 %4804
          %4806 = vrot.lane.b32.xlu0 %v4765, 32
          %v4807 = vpop.permute.xlu0 %4806
          %4808 = vrot.lane.b32.xlu0 %v4766, 32
          %v4809 = vpop.permute.xlu0 %4808
          %4810 = vrot.lane.b32.xlu0 %v4767, 32
          %v4811 = vpop.permute.xlu0 %4810
          %4812 = vrot.lane.b32.xlu0 %v4768, 32
          %v4813 = vpop.permute.xlu0 %4812
          %4814 = vrot.lane.b32.xlu0 %v4769, 32
          %v4815 = vpop.permute.xlu0 %4814
          %4816 = vrot.lane.b32.xlu0 %v4770, 32
          %v4817 = vpop.permute.xlu0 %4816
          %4818 = vrot.lane.b32.xlu0 %v4771, 32
          %v4819 = vpop.permute.xlu0 %4818
          %v4836 = vadd.f32 %v4676, %v4789
          %v4837 = vadd.f32 %v4677, %v4791
          %v4838 = vadd.f32 %v4678, %v4793
          %v4839 = vadd.f32 %v4679, %v4795
          %v4840 = vadd.f32 %v4680, %v4797
          %v4841 = vadd.f32 %v4681, %v4799
          %v4842 = vadd.f32 %v4682, %v4801
          %v4843 = vadd.f32 %v4683, %v4803
          %v4844 = vadd.f32 %v4684, %v4805
          %v4845 = vadd.f32 %v4685, %v4807
          %v4846 = vadd.f32 %v4686, %v4809
          %v4847 = vadd.f32 %v4687, %v4811
          %v4848 = vadd.f32 %v4688, %v4813
          %v4849 = vadd.f32 %v4689, %v4815
          %v4850 = vadd.f32 %v4690, %v4817
          %v4851 = vadd.f32 %v4691, %v4819
          %4852 = vset.pattern.permute.xlu0 2
          %4853 = vperm.xlu0 %4852, %v3589
          %v4854 = vpop.permute.xlu0 %4853
          %4856 = vset.pattern.permute.xlu0 2
          %4857 = vperm.xlu0 %4856, %v3591
          %v4858 = vpop.permute.xlu0 %4857
          %4860 = vset.pattern.permute.xlu0 2
          %4861 = vperm.xlu0 %4860, %v3593
          %v4862 = vpop.permute.xlu0 %4861
          %4864 = vset.pattern.permute.xlu0 2
          %4865 = vperm.xlu0 %4864, %v3595
          %v4866 = vpop.permute.xlu0 %4865
          %4868 = vset.pattern.permute.xlu0 2
          %4869 = vperm.xlu0 %4868, %v3597
          %v4870 = vpop.permute.xlu0 %4869
          %4872 = vset.pattern.permute.xlu0 2
          %4873 = vperm.xlu0 %4872, %v3599
          %v4874 = vpop.permute.xlu0 %4873
          %4876 = vset.pattern.permute.xlu0 2
          %4877 = vperm.xlu0 %4876, %v3601
          %v4878 = vpop.permute.xlu0 %4877
          %4880 = vset.pattern.permute.xlu0 2
          %4881 = vperm.xlu0 %4880, %v3603
          %v4882 = vpop.permute.xlu0 %4881
          %4884 = vset.pattern.permute.xlu0 2
          %4885 = vperm.xlu0 %4884, %v3605
          %v4886 = vpop.permute.xlu0 %4885
          %4888 = vset.pattern.permute.xlu0 2
          %4889 = vperm.xlu0 %4888, %v3607
          %v4890 = vpop.permute.xlu0 %4889
          %4892 = vset.pattern.permute.xlu0 2
          %4893 = vperm.xlu0 %4892, %v3609
          %v4894 = vpop.permute.xlu0 %4893
          %4896 = vset.pattern.permute.xlu0 2
          %4897 = vperm.xlu0 %4896, %v3611
          %v4898 = vpop.permute.xlu0 %4897
          %4900 = vset.pattern.permute.xlu0 2
          %4901 = vperm.xlu0 %4900, %v3613
          %v4902 = vpop.permute.xlu0 %4901
          %4904 = vset.pattern.permute.xlu0 2
          %4905 = vperm.xlu0 %4904, %v3615
          %v4906 = vpop.permute.xlu0 %4905
          %4908 = vset.pattern.permute.xlu0 2
          %4909 = vperm.xlu0 %4908, %v3617
          %v4910 = vpop.permute.xlu0 %4909
          %4912 = vset.pattern.permute.xlu0 2
          %4913 = vperm.xlu0 %4912, %v3619
          %v4914 = vpop.permute.xlu0 %4913
          %v4916 = vmul.f32 %v4854, %v2042
          %v4917 = vmul.f32 %v4858, %v2043
          %v4918 = vmul.f32 %v4862, %v2044
          %v4919 = vmul.f32 %v4866, %v2045
          %v4920 = vmul.f32 %v4870, %v2046
          %v4921 = vmul.f32 %v4874, %v2047
          %v4922 = vmul.f32 %v4878, %v2048
          %v4923 = vmul.f32 %v4882, %v2049
          %v4924 = vmul.f32 %v4886, %v2050
          %v4925 = vmul.f32 %v4890, %v2051
          %v4926 = vmul.f32 %v4894, %v2052
          %v4927 = vmul.f32 %v4898, %v2053
          %v4928 = vmul.f32 %v4902, %v2054
          %v4929 = vmul.f32 %v4906, %v2055
          %v4930 = vmul.f32 %v4910, %v2056
          %v4931 = vmul.f32 %v4914, %v2057
          %4932 = vset.pattern.permute.xlu0 2
          %4933 = vperm.xlu0 %4932, %v3620
          %v4934 = vpop.permute.xlu0 %4933
          %4936 = vset.pattern.permute.xlu0 2
          %4937 = vperm.xlu0 %4936, %v3621
          %v4938 = vpop.permute.xlu0 %4937
          %4940 = vset.pattern.permute.xlu0 2
          %4941 = vperm.xlu0 %4940, %v3622
          %v4942 = vpop.permute.xlu0 %4941
          %4944 = vset.pattern.permute.xlu0 2
          %4945 = vperm.xlu0 %4944, %v3623
          %v4946 = vpop.permute.xlu0 %4945
          %4948 = vset.pattern.permute.xlu0 2
          %4949 = vperm.xlu0 %4948, %v3624
          %v4950 = vpop.permute.xlu0 %4949
          %4952 = vset.pattern.permute.xlu0 2
          %4953 = vperm.xlu0 %4952, %v3625
          %v4954 = vpop.permute.xlu0 %4953
          %4956 = vset.pattern.permute.xlu0 2
          %4957 = vperm.xlu0 %4956, %v3626
          %v4958 = vpop.permute.xlu0 %4957
          %4960 = vset.pattern.permute.xlu0 2
          %4961 = vperm.xlu0 %4960, %v3627
          %v4962 = vpop.permute.xlu0 %4961
          %4964 = vset.pattern.permute.xlu0 2
          %4965 = vperm.xlu0 %4964, %v3628
          %v4966 = vpop.permute.xlu0 %4965
          %4968 = vset.pattern.permute.xlu0 2
          %4969 = vperm.xlu0 %4968, %v3629
          %v4970 = vpop.permute.xlu0 %4969
          %4972 = vset.pattern.permute.xlu0 2
          %4973 = vperm.xlu0 %4972, %v3630
          %v4974 = vpop.permute.xlu0 %4973
          %4976 = vset.pattern.permute.xlu0 2
          %4977 = vperm.xlu0 %4976, %v3631
          %v4978 = vpop.permute.xlu0 %4977
          %4980 = vset.pattern.permute.xlu0 2
          %4981 = vperm.xlu0 %4980, %v3632
          %v4982 = vpop.permute.xlu0 %4981
          %4984 = vset.pattern.permute.xlu0 2
          %4985 = vperm.xlu0 %4984, %v3633
          %v4986 = vpop.permute.xlu0 %4985
          %4988 = vset.pattern.permute.xlu0 2
          %4989 = vperm.xlu0 %4988, %v3634
          %v4990 = vpop.permute.xlu0 %4989
          %4992 = vset.pattern.permute.xlu0 2
          %4993 = vperm.xlu0 %4992, %v3635
          %v4994 = vpop.permute.xlu0 %4993
          %v4996 = vmul.f32 %v4934, %v2042
          %v4997 = vmul.f32 %v4938, %v2043
          %v4998 = vmul.f32 %v4942, %v2044
          %v4999 = vmul.f32 %v4946, %v2045
          %v5000 = vmul.f32 %v4950, %v2046
          %v5001 = vmul.f32 %v4954, %v2047
          %v5002 = vmul.f32 %v4958, %v2048
          %v5003 = vmul.f32 %v4962, %v2049
          %v5004 = vmul.f32 %v4966, %v2050
          %v5005 = vmul.f32 %v4970, %v2051
          %v5006 = vmul.f32 %v4974, %v2052
          %v5007 = vmul.f32 %v4978, %v2053
          %v5008 = vmul.f32 %v4982, %v2054
          %v5009 = vmul.f32 %v4986, %v2055
          %v5010 = vmul.f32 %v4990, %v2056
          %v5011 = vmul.f32 %v4994, %v2057
          %5028 = vrot.lane.b32.xlu0 %v4996, 96
          %v5029 = vpop.permute.xlu0 %5028
          %5030 = vrot.lane.b32.xlu0 %v4997, 96
          %v5031 = vpop.permute.xlu0 %5030
          %5032 = vrot.lane.b32.xlu0 %v4998, 96
          %v5033 = vpop.permute.xlu0 %5032
          %5034 = vrot.lane.b32.xlu0 %v4999, 96
          %v5035 = vpop.permute.xlu0 %5034
          %5036 = vrot.lane.b32.xlu0 %v5000, 96
          %v5037 = vpop.permute.xlu0 %5036
          %5038 = vrot.lane.b32.xlu0 %v5001, 96
          %v5039 = vpop.permute.xlu0 %5038
          %5040 = vrot.lane.b32.xlu0 %v5002, 96
          %v5041 = vpop.permute.xlu0 %5040
          %5042 = vrot.lane.b32.xlu0 %v5003, 96
          %v5043 = vpop.permute.xlu0 %5042
          %5044 = vrot.lane.b32.xlu0 %v5004, 96
          %v5045 = vpop.permute.xlu0 %5044
          %5046 = vrot.lane.b32.xlu0 %v5005, 96
          %v5047 = vpop.permute.xlu0 %5046
          %5048 = vrot.lane.b32.xlu0 %v5006, 96
          %v5049 = vpop.permute.xlu0 %5048
          %5050 = vrot.lane.b32.xlu0 %v5007, 96
          %v5051 = vpop.permute.xlu0 %5050
          %5052 = vrot.lane.b32.xlu0 %v5008, 96
          %v5053 = vpop.permute.xlu0 %5052
          %5054 = vrot.lane.b32.xlu0 %v5009, 96
          %v5055 = vpop.permute.xlu0 %5054
          %5056 = vrot.lane.b32.xlu0 %v5010, 96
          %v5057 = vpop.permute.xlu0 %5056
          %5058 = vrot.lane.b32.xlu0 %v5011, 96
          %v5059 = vpop.permute.xlu0 %5058
          %v5076 = vadd.f32 %v4916, %v5029
          %v5077 = vadd.f32 %v4917, %v5031
          %v5078 = vadd.f32 %v4918, %v5033
          %v5079 = vadd.f32 %v4919, %v5035
          %v5080 = vadd.f32 %v4920, %v5037
          %v5081 = vadd.f32 %v4921, %v5039
          %v5082 = vadd.f32 %v4922, %v5041
          %v5083 = vadd.f32 %v4923, %v5043
          %v5084 = vadd.f32 %v4924, %v5045
          %v5085 = vadd.f32 %v4925, %v5047
          %v5086 = vadd.f32 %v4926, %v5049
          %v5087 = vadd.f32 %v4927, %v5051
          %v5088 = vadd.f32 %v4928, %v5053
          %v5089 = vadd.f32 %v4929, %v5055
          %v5090 = vadd.f32 %v4930, %v5057
          %v5091 = vadd.f32 %v4931, %v5059
          %5092 = vset.pattern.permute.xlu0 2
          %5093 = vperm.xlu0 %5092, %v3636
          %v5094 = vpop.permute.xlu0 %5093
          %5096 = vset.pattern.permute.xlu0 2
          %5097 = vperm.xlu0 %5096, %v3637
          %v5098 = vpop.permute.xlu0 %5097
          %5100 = vset.pattern.permute.xlu0 2
          %5101 = vperm.xlu0 %5100, %v3638
          %v5102 = vpop.permute.xlu0 %5101
          %5104 = vset.pattern.permute.xlu0 2
          %5105 = vperm.xlu0 %5104, %v3639
          %v5106 = vpop.permute.xlu0 %5105
          %5108 = vset.pattern.permute.xlu0 2
          %5109 = vperm.xlu0 %5108, %v3640
          %v5110 = vpop.permute.xlu0 %5109
          %5112 = vset.pattern.permute.xlu0 2
          %5113 = vperm.xlu0 %5112, %v3641
          %v5114 = vpop.permute.xlu0 %5113
          %5116 = vset.pattern.permute.xlu0 2
          %5117 = vperm.xlu0 %5116, %v3642
          %v5118 = vpop.permute.xlu0 %5117
          %5120 = vset.pattern.permute.xlu0 2
          %5121 = vperm.xlu0 %5120, %v3643
          %v5122 = vpop.permute.xlu0 %5121
          %5124 = vset.pattern.permute.xlu0 2
          %5125 = vperm.xlu0 %5124, %v3644
          %v5126 = vpop.permute.xlu0 %5125
          %5128 = vset.pattern.permute.xlu0 2
          %5129 = vperm.xlu0 %5128, %v3645
          %v5130 = vpop.permute.xlu0 %5129
          %5132 = vset.pattern.permute.xlu0 2
          %5133 = vperm.xlu0 %5132, %v3646
          %v5134 = vpop.permute.xlu0 %5133
          %5136 = vset.pattern.permute.xlu0 2
          %5137 = vperm.xlu0 %5136, %v3647
          %v5138 = vpop.permute.xlu0 %5137
          %5140 = vset.pattern.permute.xlu0 2
          %5141 = vperm.xlu0 %5140, %v3648
          %v5142 = vpop.permute.xlu0 %5141
          %5144 = vset.pattern.permute.xlu0 2
          %5145 = vperm.xlu0 %5144, %v3649
          %v5146 = vpop.permute.xlu0 %5145
          %5148 = vset.pattern.permute.xlu0 2
          %5149 = vperm.xlu0 %5148, %v3650
          %v5150 = vpop.permute.xlu0 %5149
          %5152 = vset.pattern.permute.xlu0 2
          %5153 = vperm.xlu0 %5152, %v3651
          %v5154 = vpop.permute.xlu0 %5153
          %v5156 = vmul.f32 %v5094, %v2042
          %v5157 = vmul.f32 %v5098, %v2043
          %v5158 = vmul.f32 %v5102, %v2044
          %v5159 = vmul.f32 %v5106, %v2045
          %v5160 = vmul.f32 %v5110, %v2046
          %v5161 = vmul.f32 %v5114, %v2047
          %v5162 = vmul.f32 %v5118, %v2048
          %v5163 = vmul.f32 %v5122, %v2049
          %v5164 = vmul.f32 %v5126, %v2050
          %v5165 = vmul.f32 %v5130, %v2051
          %v5166 = vmul.f32 %v5134, %v2052
          %v5167 = vmul.f32 %v5138, %v2053
          %v5168 = vmul.f32 %v5142, %v2054
          %v5169 = vmul.f32 %v5146, %v2055
          %v5170 = vmul.f32 %v5150, %v2056
          %v5171 = vmul.f32 %v5154, %v2057
          %5188 = vrot.lane.b32.xlu0 %v5156, 64
          %v5189 = vpop.permute.xlu0 %5188
          %5190 = vrot.lane.b32.xlu0 %v5157, 64
          %v5191 = vpop.permute.xlu0 %5190
          %5192 = vrot.lane.b32.xlu0 %v5158, 64
          %v5193 = vpop.permute.xlu0 %5192
          %5194 = vrot.lane.b32.xlu0 %v5159, 64
          %v5195 = vpop.permute.xlu0 %5194
          %5196 = vrot.lane.b32.xlu0 %v5160, 64
          %v5197 = vpop.permute.xlu0 %5196
          %5198 = vrot.lane.b32.xlu0 %v5161, 64
          %v5199 = vpop.permute.xlu0 %5198
          %5200 = vrot.lane.b32.xlu0 %v5162, 64
          %v5201 = vpop.permute.xlu0 %5200
          %5202 = vrot.lane.b32.xlu0 %v5163, 64
          %v5203 = vpop.permute.xlu0 %5202
          %5204 = vrot.lane.b32.xlu0 %v5164, 64
          %v5205 = vpop.permute.xlu0 %5204
          %5206 = vrot.lane.b32.xlu0 %v5165, 64
          %v5207 = vpop.permute.xlu0 %5206
          %5208 = vrot.lane.b32.xlu0 %v5166, 64
          %v5209 = vpop.permute.xlu0 %5208
          %5210 = vrot.lane.b32.xlu0 %v5167, 64
          %v5211 = vpop.permute.xlu0 %5210
          %5212 = vrot.lane.b32.xlu0 %v5168, 64
          %v5213 = vpop.permute.xlu0 %5212
          %5214 = vrot.lane.b32.xlu0 %v5169, 64
          %v5215 = vpop.permute.xlu0 %5214
          %5216 = vrot.lane.b32.xlu0 %v5170, 64
          %v5217 = vpop.permute.xlu0 %5216
          %5218 = vrot.lane.b32.xlu0 %v5171, 64
          %v5219 = vpop.permute.xlu0 %5218
          %v5236 = vadd.f32 %v5076, %v5189
          %v5237 = vadd.f32 %v5077, %v5191
          %v5238 = vadd.f32 %v5078, %v5193
          %v5239 = vadd.f32 %v5079, %v5195
          %v5240 = vadd.f32 %v5080, %v5197
          %v5241 = vadd.f32 %v5081, %v5199
          %v5242 = vadd.f32 %v5082, %v5201
          %v5243 = vadd.f32 %v5083, %v5203
          %v5244 = vadd.f32 %v5084, %v5205
          %v5245 = vadd.f32 %v5085, %v5207
          %v5246 = vadd.f32 %v5086, %v5209
          %v5247 = vadd.f32 %v5087, %v5211
          %v5248 = vadd.f32 %v5088, %v5213
          %v5249 = vadd.f32 %v5089, %v5215
          %v5250 = vadd.f32 %v5090, %v5217
          %v5251 = vadd.f32 %v5091, %v5219
          %5252 = vset.pattern.permute.xlu0 2
          %5253 = vperm.xlu0 %5252, %v3652
          %v5254 = vpop.permute.xlu0 %5253
          %5256 = vset.pattern.permute.xlu0 2
          %5257 = vperm.xlu0 %5256, %v3653
          %v5258 = vpop.permute.xlu0 %5257
          %5260 = vset.pattern.permute.xlu0 2
          %5261 = vperm.xlu0 %5260, %v3654
          %v5262 = vpop.permute.xlu0 %5261
          %5264 = vset.pattern.permute.xlu0 2
          %5265 = vperm.xlu0 %5264, %v3655
          %v5266 = vpop.permute.xlu0 %5265
          %5268 = vset.pattern.permute.xlu0 2
          %5269 = vperm.xlu0 %5268, %v3656
          %v5270 = vpop.permute.xlu0 %5269
          %5272 = vset.pattern.permute.xlu0 2
          %5273 = vperm.xlu0 %5272, %v3657
          %v5274 = vpop.permute.xlu0 %5273
          %5276 = vset.pattern.permute.xlu0 2
          %5277 = vperm.xlu0 %5276, %v3658
          %v5278 = vpop.permute.xlu0 %5277
          %5280 = vset.pattern.permute.xlu0 2
          %5281 = vperm.xlu0 %5280, %v3659
          %v5282 = vpop.permute.xlu0 %5281
          %5284 = vset.pattern.permute.xlu0 2
          %5285 = vperm.xlu0 %5284, %v3660
          %v5286 = vpop.permute.xlu0 %5285
          %5288 = vset.pattern.permute.xlu0 2
          %5289 = vperm.xlu0 %5288, %v3661
          %v5290 = vpop.permute.xlu0 %5289
          %5292 = vset.pattern.permute.xlu0 2
          %5293 = vperm.xlu0 %5292, %v3662
          %v5294 = vpop.permute.xlu0 %5293
          %5296 = vset.pattern.permute.xlu0 2
          %5297 = vperm.xlu0 %5296, %v3663
          %v5298 = vpop.permute.xlu0 %5297
          %5300 = vset.pattern.permute.xlu0 2
          %5301 = vperm.xlu0 %5300, %v3664
          %v5302 = vpop.permute.xlu0 %5301
          %5304 = vset.pattern.permute.xlu0 2
          %5305 = vperm.xlu0 %5304, %v3665
          %v5306 = vpop.permute.xlu0 %5305
          %5308 = vset.pattern.permute.xlu0 2
          %5309 = vperm.xlu0 %5308, %v3666
          %v5310 = vpop.permute.xlu0 %5309
          %5312 = vset.pattern.permute.xlu0 2
          %5313 = vperm.xlu0 %5312, %v3667
          %v5314 = vpop.permute.xlu0 %5313
          %v5316 = vmul.f32 %v5254, %v2042
          %v5317 = vmul.f32 %v5258, %v2043
          %v5318 = vmul.f32 %v5262, %v2044
          %v5319 = vmul.f32 %v5266, %v2045
          %v5320 = vmul.f32 %v5270, %v2046
          %v5321 = vmul.f32 %v5274, %v2047
          %v5322 = vmul.f32 %v5278, %v2048
          %v5323 = vmul.f32 %v5282, %v2049
          %v5324 = vmul.f32 %v5286, %v2050
          %v5325 = vmul.f32 %v5290, %v2051
          %v5326 = vmul.f32 %v5294, %v2052
          %v5327 = vmul.f32 %v5298, %v2053
          %v5328 = vmul.f32 %v5302, %v2054
          %v5329 = vmul.f32 %v5306, %v2055
          %v5330 = vmul.f32 %v5310, %v2056
          %v5331 = vmul.f32 %v5314, %v2057
          %5348 = vrot.lane.b32.xlu0 %v5316, 32
          %v5349 = vpop.permute.xlu0 %5348
          %5350 = vrot.lane.b32.xlu0 %v5317, 32
          %v5351 = vpop.permute.xlu0 %5350
          %5352 = vrot.lane.b32.xlu0 %v5318, 32
          %v5353 = vpop.permute.xlu0 %5352
          %5354 = vrot.lane.b32.xlu0 %v5319, 32
          %v5355 = vpop.permute.xlu0 %5354
          %5356 = vrot.lane.b32.xlu0 %v5320, 32
          %v5357 = vpop.permute.xlu0 %5356
          %5358 = vrot.lane.b32.xlu0 %v5321, 32
          %v5359 = vpop.permute.xlu0 %5358
          %5360 = vrot.lane.b32.xlu0 %v5322, 32
          %v5361 = vpop.permute.xlu0 %5360
          %5362 = vrot.lane.b32.xlu0 %v5323, 32
          %v5363 = vpop.permute.xlu0 %5362
          %5364 = vrot.lane.b32.xlu0 %v5324, 32
          %v5365 = vpop.permute.xlu0 %5364
          %5366 = vrot.lane.b32.xlu0 %v5325, 32
          %v5367 = vpop.permute.xlu0 %5366
          %5368 = vrot.lane.b32.xlu0 %v5326, 32
          %v5369 = vpop.permute.xlu0 %5368
          %5370 = vrot.lane.b32.xlu0 %v5327, 32
          %v5371 = vpop.permute.xlu0 %5370
          %5372 = vrot.lane.b32.xlu0 %v5328, 32
          %v5373 = vpop.permute.xlu0 %5372
          %5374 = vrot.lane.b32.xlu0 %v5329, 32
          %v5375 = vpop.permute.xlu0 %5374
          %5376 = vrot.lane.b32.xlu0 %v5330, 32
          %v5377 = vpop.permute.xlu0 %5376
          %5378 = vrot.lane.b32.xlu0 %v5331, 32
          %v5379 = vpop.permute.xlu0 %5378
          %v5396 = vadd.f32 %v5236, %v5349
          %v5397 = vadd.f32 %v5237, %v5351
          %v5398 = vadd.f32 %v5238, %v5353
          %v5399 = vadd.f32 %v5239, %v5355
          %v5400 = vadd.f32 %v5240, %v5357
          %v5401 = vadd.f32 %v5241, %v5359
          %v5402 = vadd.f32 %v5242, %v5361
          %v5403 = vadd.f32 %v5243, %v5363
          %v5404 = vadd.f32 %v5244, %v5365
          %v5405 = vadd.f32 %v5245, %v5367
          %v5406 = vadd.f32 %v5246, %v5369
          %v5407 = vadd.f32 %v5247, %v5371
          %v5408 = vadd.f32 %v5248, %v5373
          %v5409 = vadd.f32 %v5249, %v5375
          %v5410 = vadd.f32 %v5250, %v5377
          %v5411 = vadd.f32 %v5251, %v5379
          %5412 = vset.pattern.permute.xlu0 3
          %5413 = vperm.xlu0 %5412, %v3589
          %v5414 = vpop.permute.xlu0 %5413
          %5416 = vset.pattern.permute.xlu0 3
          %5417 = vperm.xlu0 %5416, %v3591
          %v5418 = vpop.permute.xlu0 %5417
          %5420 = vset.pattern.permute.xlu0 3
          %5421 = vperm.xlu0 %5420, %v3593
          %v5422 = vpop.permute.xlu0 %5421
          %5424 = vset.pattern.permute.xlu0 3
          %5425 = vperm.xlu0 %5424, %v3595
          %v5426 = vpop.permute.xlu0 %5425
          %5428 = vset.pattern.permute.xlu0 3
          %5429 = vperm.xlu0 %5428, %v3597
          %v5430 = vpop.permute.xlu0 %5429
          %5432 = vset.pattern.permute.xlu0 3
          %5433 = vperm.xlu0 %5432, %v3599
          %v5434 = vpop.permute.xlu0 %5433
          %5436 = vset.pattern.permute.xlu0 3
          %5437 = vperm.xlu0 %5436, %v3601
          %v5438 = vpop.permute.xlu0 %5437
          %5440 = vset.pattern.permute.xlu0 3
          %5441 = vperm.xlu0 %5440, %v3603
          %v5442 = vpop.permute.xlu0 %5441
          %5444 = vset.pattern.permute.xlu0 3
          %5445 = vperm.xlu0 %5444, %v3605
          %v5446 = vpop.permute.xlu0 %5445
          %5448 = vset.pattern.permute.xlu0 3
          %5449 = vperm.xlu0 %5448, %v3607
          %v5450 = vpop.permute.xlu0 %5449
          %5452 = vset.pattern.permute.xlu0 3
          %5453 = vperm.xlu0 %5452, %v3609
          %v5454 = vpop.permute.xlu0 %5453
          %5456 = vset.pattern.permute.xlu0 3
          %5457 = vperm.xlu0 %5456, %v3611
          %v5458 = vpop.permute.xlu0 %5457
          %5460 = vset.pattern.permute.xlu0 3
          %5461 = vperm.xlu0 %5460, %v3613
          %v5462 = vpop.permute.xlu0 %5461
          %5464 = vset.pattern.permute.xlu0 3
          %5465 = vperm.xlu0 %5464, %v3615
          %v5466 = vpop.permute.xlu0 %5465
          %5468 = vset.pattern.permute.xlu0 3
          %5469 = vperm.xlu0 %5468, %v3617
          %v5470 = vpop.permute.xlu0 %5469
          %5472 = vset.pattern.permute.xlu0 3
          %5473 = vperm.xlu0 %5472, %v3619
          %v5474 = vpop.permute.xlu0 %5473
          %v5476 = vmul.f32 %v5414, %v2042
          %v5477 = vmul.f32 %v5418, %v2043
          %v5478 = vmul.f32 %v5422, %v2044
          %v5479 = vmul.f32 %v5426, %v2045
          %v5480 = vmul.f32 %v5430, %v2046
          %v5481 = vmul.f32 %v5434, %v2047
          %v5482 = vmul.f32 %v5438, %v2048
          %v5483 = vmul.f32 %v5442, %v2049
          %v5484 = vmul.f32 %v5446, %v2050
          %v5485 = vmul.f32 %v5450, %v2051
          %v5486 = vmul.f32 %v5454, %v2052
          %v5487 = vmul.f32 %v5458, %v2053
          %v5488 = vmul.f32 %v5462, %v2054
          %v5489 = vmul.f32 %v5466, %v2055
          %v5490 = vmul.f32 %v5470, %v2056
          %v5491 = vmul.f32 %v5474, %v2057
          %5492 = vset.pattern.permute.xlu0 3
          %5493 = vperm.xlu0 %5492, %v3620
          %v5494 = vpop.permute.xlu0 %5493
          %5496 = vset.pattern.permute.xlu0 3
          %5497 = vperm.xlu0 %5496, %v3621
          %v5498 = vpop.permute.xlu0 %5497
          %5500 = vset.pattern.permute.xlu0 3
          %5501 = vperm.xlu0 %5500, %v3622
          %v5502 = vpop.permute.xlu0 %5501
          %5504 = vset.pattern.permute.xlu0 3
          %5505 = vperm.xlu0 %5504, %v3623
          %v5506 = vpop.permute.xlu0 %5505
          %5508 = vset.pattern.permute.xlu0 3
          %5509 = vperm.xlu0 %5508, %v3624
          %v5510 = vpop.permute.xlu0 %5509
          %5512 = vset.pattern.permute.xlu0 3
          %5513 = vperm.xlu0 %5512, %v3625
          %v5514 = vpop.permute.xlu0 %5513
          %5516 = vset.pattern.permute.xlu0 3
          %5517 = vperm.xlu0 %5516, %v3626
          %v5518 = vpop.permute.xlu0 %5517
          %5520 = vset.pattern.permute.xlu0 3
          %5521 = vperm.xlu0 %5520, %v3627
          %v5522 = vpop.permute.xlu0 %5521
          %5524 = vset.pattern.permute.xlu0 3
          %5525 = vperm.xlu0 %5524, %v3628
          %v5526 = vpop.permute.xlu0 %5525
          %5528 = vset.pattern.permute.xlu0 3
          %5529 = vperm.xlu0 %5528, %v3629
          %v5530 = vpop.permute.xlu0 %5529
          %5532 = vset.pattern.permute.xlu0 3
          %5533 = vperm.xlu0 %5532, %v3630
          %v5534 = vpop.permute.xlu0 %5533
          %5536 = vset.pattern.permute.xlu0 3
          %5537 = vperm.xlu0 %5536, %v3631
          %v5538 = vpop.permute.xlu0 %5537
          %5540 = vset.pattern.permute.xlu0 3
          %5541 = vperm.xlu0 %5540, %v3632
          %v5542 = vpop.permute.xlu0 %5541
          %5544 = vset.pattern.permute.xlu0 3
          %5545 = vperm.xlu0 %5544, %v3633
          %v5546 = vpop.permute.xlu0 %5545
          %5548 = vset.pattern.permute.xlu0 3
          %5549 = vperm.xlu0 %5548, %v3634
          %v5550 = vpop.permute.xlu0 %5549
          %5552 = vset.pattern.permute.xlu0 3
          %5553 = vperm.xlu0 %5552, %v3635
          %v5554 = vpop.permute.xlu0 %5553
          %v5556 = vmul.f32 %v5494, %v2042
          %v5557 = vmul.f32 %v5498, %v2043
          %v5558 = vmul.f32 %v5502, %v2044
          %v5559 = vmul.f32 %v5506, %v2045
          %v5560 = vmul.f32 %v5510, %v2046
          %v5561 = vmul.f32 %v5514, %v2047
          %v5562 = vmul.f32 %v5518, %v2048
          %v5563 = vmul.f32 %v5522, %v2049
          %v5564 = vmul.f32 %v5526, %v2050
          %v5565 = vmul.f32 %v5530, %v2051
          %v5566 = vmul.f32 %v5534, %v2052
          %v5567 = vmul.f32 %v5538, %v2053
          %v5568 = vmul.f32 %v5542, %v2054
          %v5569 = vmul.f32 %v5546, %v2055
          %v5570 = vmul.f32 %v5550, %v2056
          %v5571 = vmul.f32 %v5554, %v2057
          %5588 = vrot.lane.b32.xlu0 %v5556, 96
          %v5589 = vpop.permute.xlu0 %5588
          %5590 = vrot.lane.b32.xlu0 %v5557, 96
          %v5591 = vpop.permute.xlu0 %5590
          %5592 = vrot.lane.b32.xlu0 %v5558, 96
          %v5593 = vpop.permute.xlu0 %5592
          %5594 = vrot.lane.b32.xlu0 %v5559, 96
          %v5595 = vpop.permute.xlu0 %5594
          %5596 = vrot.lane.b32.xlu0 %v5560, 96
          %v5597 = vpop.permute.xlu0 %5596
          %5598 = vrot.lane.b32.xlu0 %v5561, 96
          %v5599 = vpop.permute.xlu0 %5598
          %5600 = vrot.lane.b32.xlu0 %v5562, 96
          %v5601 = vpop.permute.xlu0 %5600
          %5602 = vrot.lane.b32.xlu0 %v5563, 96
          %v5603 = vpop.permute.xlu0 %5602
          %5604 = vrot.lane.b32.xlu0 %v5564, 96
          %v5605 = vpop.permute.xlu0 %5604
          %5606 = vrot.lane.b32.xlu0 %v5565, 96
          %v5607 = vpop.permute.xlu0 %5606
          %5608 = vrot.lane.b32.xlu0 %v5566, 96
          %v5609 = vpop.permute.xlu0 %5608
          %5610 = vrot.lane.b32.xlu0 %v5567, 96
          %v5611 = vpop.permute.xlu0 %5610
          %5612 = vrot.lane.b32.xlu0 %v5568, 96
          %v5613 = vpop.permute.xlu0 %5612
          %5614 = vrot.lane.b32.xlu0 %v5569, 96
          %v5615 = vpop.permute.xlu0 %5614
          %5616 = vrot.lane.b32.xlu0 %v5570, 96
          %v5617 = vpop.permute.xlu0 %5616
          %5618 = vrot.lane.b32.xlu0 %v5571, 96
          %v5619 = vpop.permute.xlu0 %5618
          %v5636 = vadd.f32 %v5476, %v5589
          %v5637 = vadd.f32 %v5477, %v5591
          %v5638 = vadd.f32 %v5478, %v5593
          %v5639 = vadd.f32 %v5479, %v5595
          %v5640 = vadd.f32 %v5480, %v5597
          %v5641 = vadd.f32 %v5481, %v5599
          %v5642 = vadd.f32 %v5482, %v5601
          %v5643 = vadd.f32 %v5483, %v5603
          %v5644 = vadd.f32 %v5484, %v5605
          %v5645 = vadd.f32 %v5485, %v5607
          %v5646 = vadd.f32 %v5486, %v5609
          %v5647 = vadd.f32 %v5487, %v5611
          %v5648 = vadd.f32 %v5488, %v5613
          %v5649 = vadd.f32 %v5489, %v5615
          %v5650 = vadd.f32 %v5490, %v5617
          %v5651 = vadd.f32 %v5491, %v5619
          %5652 = vset.pattern.permute.xlu0 3
          %5653 = vperm.xlu0 %5652, %v3636
          %v5654 = vpop.permute.xlu0 %5653
          %5656 = vset.pattern.permute.xlu0 3
          %5657 = vperm.xlu0 %5656, %v3637
          %v5658 = vpop.permute.xlu0 %5657
          %5660 = vset.pattern.permute.xlu0 3
          %5661 = vperm.xlu0 %5660, %v3638
          %v5662 = vpop.permute.xlu0 %5661
          %5664 = vset.pattern.permute.xlu0 3
          %5665 = vperm.xlu0 %5664, %v3639
          %v5666 = vpop.permute.xlu0 %5665
          %5668 = vset.pattern.permute.xlu0 3
          %5669 = vperm.xlu0 %5668, %v3640
          %v5670 = vpop.permute.xlu0 %5669
          %5672 = vset.pattern.permute.xlu0 3
          %5673 = vperm.xlu0 %5672, %v3641
          %v5674 = vpop.permute.xlu0 %5673
          %5676 = vset.pattern.permute.xlu0 3
          %5677 = vperm.xlu0 %5676, %v3642
          %v5678 = vpop.permute.xlu0 %5677
          %5680 = vset.pattern.permute.xlu0 3
          %5681 = vperm.xlu0 %5680, %v3643
          %v5682 = vpop.permute.xlu0 %5681
          %5684 = vset.pattern.permute.xlu0 3
          %5685 = vperm.xlu0 %5684, %v3644
          %v5686 = vpop.permute.xlu0 %5685
          %5688 = vset.pattern.permute.xlu0 3
          %5689 = vperm.xlu0 %5688, %v3645
          %v5690 = vpop.permute.xlu0 %5689
          %5692 = vset.pattern.permute.xlu0 3
          %5693 = vperm.xlu0 %5692, %v3646
          %v5694 = vpop.permute.xlu0 %5693
          %5696 = vset.pattern.permute.xlu0 3
          %5697 = vperm.xlu0 %5696, %v3647
          %v5698 = vpop.permute.xlu0 %5697
          %5700 = vset.pattern.permute.xlu0 3
          %5701 = vperm.xlu0 %5700, %v3648
          %v5702 = vpop.permute.xlu0 %5701
          %5704 = vset.pattern.permute.xlu0 3
          %5705 = vperm.xlu0 %5704, %v3649
          %v5706 = vpop.permute.xlu0 %5705
          %5708 = vset.pattern.permute.xlu0 3
          %5709 = vperm.xlu0 %5708, %v3650
          %v5710 = vpop.permute.xlu0 %5709
          %5712 = vset.pattern.permute.xlu0 3
          %5713 = vperm.xlu0 %5712, %v3651
          %v5714 = vpop.permute.xlu0 %5713
          %v5716 = vmul.f32 %v5654, %v2042
          %v5717 = vmul.f32 %v5658, %v2043
          %v5718 = vmul.f32 %v5662, %v2044
          %v5719 = vmul.f32 %v5666, %v2045
          %v5720 = vmul.f32 %v5670, %v2046
          %v5721 = vmul.f32 %v5674, %v2047
          %v5722 = vmul.f32 %v5678, %v2048
          %v5723 = vmul.f32 %v5682, %v2049
          %v5724 = vmul.f32 %v5686, %v2050
          %v5725 = vmul.f32 %v5690, %v2051
          %v5726 = vmul.f32 %v5694, %v2052
          %v5727 = vmul.f32 %v5698, %v2053
          %v5728 = vmul.f32 %v5702, %v2054
          %v5729 = vmul.f32 %v5706, %v2055
          %v5730 = vmul.f32 %v5710, %v2056
          %v5731 = vmul.f32 %v5714, %v2057
          %5748 = vrot.lane.b32.xlu0 %v5716, 64
          %v5749 = vpop.permute.xlu0 %5748
          %5750 = vrot.lane.b32.xlu0 %v5717, 64
          %v5751 = vpop.permute.xlu0 %5750
          %5752 = vrot.lane.b32.xlu0 %v5718, 64
          %v5753 = vpop.permute.xlu0 %5752
          %5754 = vrot.lane.b32.xlu0 %v5719, 64
          %v5755 = vpop.permute.xlu0 %5754
          %5756 = vrot.lane.b32.xlu0 %v5720, 64
          %v5757 = vpop.permute.xlu0 %5756
          %5758 = vrot.lane.b32.xlu0 %v5721, 64
          %v5759 = vpop.permute.xlu0 %5758
          %5760 = vrot.lane.b32.xlu0 %v5722, 64
          %v5761 = vpop.permute.xlu0 %5760
          %5762 = vrot.lane.b32.xlu0 %v5723, 64
          %v5763 = vpop.permute.xlu0 %5762
          %5764 = vrot.lane.b32.xlu0 %v5724, 64
          %v5765 = vpop.permute.xlu0 %5764
          %5766 = vrot.lane.b32.xlu0 %v5725, 64
          %v5767 = vpop.permute.xlu0 %5766
          %5768 = vrot.lane.b32.xlu0 %v5726, 64
          %v5769 = vpop.permute.xlu0 %5768
          %5770 = vrot.lane.b32.xlu0 %v5727, 64
          %v5771 = vpop.permute.xlu0 %5770
          %5772 = vrot.lane.b32.xlu0 %v5728, 64
          %v5773 = vpop.permute.xlu0 %5772
          %5774 = vrot.lane.b32.xlu0 %v5729, 64
          %v5775 = vpop.permute.xlu0 %5774
          %5776 = vrot.lane.b32.xlu0 %v5730, 64
          %v5777 = vpop.permute.xlu0 %5776
          %5778 = vrot.lane.b32.xlu0 %v5731, 64
          %v5779 = vpop.permute.xlu0 %5778
          %v5796 = vadd.f32 %v5636, %v5749
          %v5797 = vadd.f32 %v5637, %v5751
          %v5798 = vadd.f32 %v5638, %v5753
          %v5799 = vadd.f32 %v5639, %v5755
          %v5800 = vadd.f32 %v5640, %v5757
          %v5801 = vadd.f32 %v5641, %v5759
          %v5802 = vadd.f32 %v5642, %v5761
          %v5803 = vadd.f32 %v5643, %v5763
          %v5804 = vadd.f32 %v5644, %v5765
          %v5805 = vadd.f32 %v5645, %v5767
          %v5806 = vadd.f32 %v5646, %v5769
          %v5807 = vadd.f32 %v5647, %v5771
          %v5808 = vadd.f32 %v5648, %v5773
          %v5809 = vadd.f32 %v5649, %v5775
          %v5810 = vadd.f32 %v5650, %v5777
          %v5811 = vadd.f32 %v5651, %v5779
          %5812 = vset.pattern.permute.xlu0 3
          %5813 = vperm.xlu0 %5812, %v3652
          %v5814 = vpop.permute.xlu0 %5813
          %5816 = vset.pattern.permute.xlu0 3
          %5817 = vperm.xlu0 %5816, %v3653
          %v5818 = vpop.permute.xlu0 %5817
          %5820 = vset.pattern.permute.xlu0 3
          %5821 = vperm.xlu0 %5820, %v3654
          %v5822 = vpop.permute.xlu0 %5821
          %5824 = vset.pattern.permute.xlu0 3
          %5825 = vperm.xlu0 %5824, %v3655
          %v5826 = vpop.permute.xlu0 %5825
          %5828 = vset.pattern.permute.xlu0 3
          %5829 = vperm.xlu0 %5828, %v3656
          %v5830 = vpop.permute.xlu0 %5829
          %5832 = vset.pattern.permute.xlu0 3
          %5833 = vperm.xlu0 %5832, %v3657
          %v5834 = vpop.permute.xlu0 %5833
          %5836 = vset.pattern.permute.xlu0 3
          %5837 = vperm.xlu0 %5836, %v3658
          %v5838 = vpop.permute.xlu0 %5837
          %5840 = vset.pattern.permute.xlu0 3
          %5841 = vperm.xlu0 %5840, %v3659
          %v5842 = vpop.permute.xlu0 %5841
          %5844 = vset.pattern.permute.xlu0 3
          %5845 = vperm.xlu0 %5844, %v3660
          %v5846 = vpop.permute.xlu0 %5845
          %5848 = vset.pattern.permute.xlu0 3
          %5849 = vperm.xlu0 %5848, %v3661
          %v5850 = vpop.permute.xlu0 %5849
          %5852 = vset.pattern.permute.xlu0 3
          %5853 = vperm.xlu0 %5852, %v3662
          %v5854 = vpop.permute.xlu0 %5853
          %5856 = vset.pattern.permute.xlu0 3
          %5857 = vperm.xlu0 %5856, %v3663
          %v5858 = vpop.permute.xlu0 %5857
          %5860 = vset.pattern.permute.xlu0 3
          %5861 = vperm.xlu0 %5860, %v3664
          %v5862 = vpop.permute.xlu0 %5861
          %5864 = vset.pattern.permute.xlu0 3
          %5865 = vperm.xlu0 %5864, %v3665
          %v5866 = vpop.permute.xlu0 %5865
          %5868 = vset.pattern.permute.xlu0 3
          %5869 = vperm.xlu0 %5868, %v3666
          %v5870 = vpop.permute.xlu0 %5869
          %5872 = vset.pattern.permute.xlu0 3
          %5873 = vperm.xlu0 %5872, %v3667
          %v5874 = vpop.permute.xlu0 %5873
          %v5876 = vmul.f32 %v5814, %v2042
          %v5877 = vmul.f32 %v5818, %v2043
          %v5878 = vmul.f32 %v5822, %v2044
          %v5879 = vmul.f32 %v5826, %v2045
          %v5880 = vmul.f32 %v5830, %v2046
          %v5881 = vmul.f32 %v5834, %v2047
          %v5882 = vmul.f32 %v5838, %v2048
          %v5883 = vmul.f32 %v5842, %v2049
          %v5884 = vmul.f32 %v5846, %v2050
          %v5885 = vmul.f32 %v5850, %v2051
          %v5886 = vmul.f32 %v5854, %v2052
          %v5887 = vmul.f32 %v5858, %v2053
          %v5888 = vmul.f32 %v5862, %v2054
          %v5889 = vmul.f32 %v5866, %v2055
          %v5890 = vmul.f32 %v5870, %v2056
          %v5891 = vmul.f32 %v5874, %v2057
          %5908 = vrot.lane.b32.xlu0 %v5876, 32
          %v5909 = vpop.permute.xlu0 %5908
          %5910 = vrot.lane.b32.xlu0 %v5877, 32
          %v5911 = vpop.permute.xlu0 %5910
          %5912 = vrot.lane.b32.xlu0 %v5878, 32
          %v5913 = vpop.permute.xlu0 %5912
          %5914 = vrot.lane.b32.xlu0 %v5879, 32
          %v5915 = vpop.permute.xlu0 %5914
          %5916 = vrot.lane.b32.xlu0 %v5880, 32
          %v5917 = vpop.permute.xlu0 %5916
          %5918 = vrot.lane.b32.xlu0 %v5881, 32
          %v5919 = vpop.permute.xlu0 %5918
          %5920 = vrot.lane.b32.xlu0 %v5882, 32
          %v5921 = vpop.permute.xlu0 %5920
          %5922 = vrot.lane.b32.xlu0 %v5883, 32
          %v5923 = vpop.permute.xlu0 %5922
          %5924 = vrot.lane.b32.xlu0 %v5884, 32
          %v5925 = vpop.permute.xlu0 %5924
          %5926 = vrot.lane.b32.xlu0 %v5885, 32
          %v5927 = vpop.permute.xlu0 %5926
          %5928 = vrot.lane.b32.xlu0 %v5886, 32
          %v5929 = vpop.permute.xlu0 %5928
          %5930 = vrot.lane.b32.xlu0 %v5887, 32
          %v5931 = vpop.permute.xlu0 %5930
          %5932 = vrot.lane.b32.xlu0 %v5888, 32
          %v5933 = vpop.permute.xlu0 %5932
          %5934 = vrot.lane.b32.xlu0 %v5889, 32
          %v5935 = vpop.permute.xlu0 %5934
          %5936 = vrot.lane.b32.xlu0 %v5890, 32
          %v5937 = vpop.permute.xlu0 %5936
          %5938 = vrot.lane.b32.xlu0 %v5891, 32
          %v5939 = vpop.permute.xlu0 %5938
          %v5956 = vadd.f32 %v5796, %v5909
          %v5957 = vadd.f32 %v5797, %v5911
          %v5958 = vadd.f32 %v5798, %v5913
          %v5959 = vadd.f32 %v5799, %v5915
          %v5960 = vadd.f32 %v5800, %v5917
          %v5961 = vadd.f32 %v5801, %v5919
          %v5962 = vadd.f32 %v5802, %v5921
          %v5963 = vadd.f32 %v5803, %v5923
          %v5964 = vadd.f32 %v5804, %v5925
          %v5965 = vadd.f32 %v5805, %v5927
          %v5966 = vadd.f32 %v5806, %v5929
          %v5967 = vadd.f32 %v5807, %v5931
          %v5968 = vadd.f32 %v5808, %v5933
          %v5969 = vadd.f32 %v5809, %v5935
          %v5970 = vadd.f32 %v5810, %v5937
          %v5971 = vadd.f32 %v5811, %v5939
          %5988 = vrot.lane.b32.xlu0 %v4836, 32
          %v5989 = vpop.permute.xlu0 %5988
          %5990 = vrot.lane.b32.xlu0 %v4837, 32
          %v5991 = vpop.permute.xlu0 %5990
          %5992 = vrot.lane.b32.xlu0 %v4838, 32
          %v5993 = vpop.permute.xlu0 %5992
          %5994 = vrot.lane.b32.xlu0 %v4839, 32
          %v5995 = vpop.permute.xlu0 %5994
          %5996 = vrot.lane.b32.xlu0 %v4840, 32
          %v5997 = vpop.permute.xlu0 %5996
          %5998 = vrot.lane.b32.xlu0 %v4841, 32
          %v5999 = vpop.permute.xlu0 %5998
          %6000 = vrot.lane.b32.xlu0 %v4842, 32
          %v6001 = vpop.permute.xlu0 %6000
          %6002 = vrot.lane.b32.xlu0 %v4843, 32
          %v6003 = vpop.permute.xlu0 %6002
          %6004 = vrot.lane.b32.xlu0 %v4844, 32
          %v6005 = vpop.permute.xlu0 %6004
          %6006 = vrot.lane.b32.xlu0 %v4845, 32
          %v6007 = vpop.permute.xlu0 %6006
          %6008 = vrot.lane.b32.xlu0 %v4846, 32
          %v6009 = vpop.permute.xlu0 %6008
          %6010 = vrot.lane.b32.xlu0 %v4847, 32
          %v6011 = vpop.permute.xlu0 %6010
          %6012 = vrot.lane.b32.xlu0 %v4848, 32
          %v6013 = vpop.permute.xlu0 %6012
          %6014 = vrot.lane.b32.xlu0 %v4849, 32
          %v6015 = vpop.permute.xlu0 %6014
          %6016 = vrot.lane.b32.xlu0 %v4850, 32
          %v6017 = vpop.permute.xlu0 %6016
          %6018 = vrot.lane.b32.xlu0 %v4851, 32
          %v6019 = vpop.permute.xlu0 %6018
          %6052 = vrot.lane.b32.xlu0 %v5396, 64
          %v6053 = vpop.permute.xlu0 %6052
          %6054 = vrot.lane.b32.xlu0 %v5397, 64
          %v6055 = vpop.permute.xlu0 %6054
          %6056 = vrot.lane.b32.xlu0 %v5398, 64
          %v6057 = vpop.permute.xlu0 %6056
          %6058 = vrot.lane.b32.xlu0 %v5399, 64
          %v6059 = vpop.permute.xlu0 %6058
          %6060 = vrot.lane.b32.xlu0 %v5400, 64
          %v6061 = vpop.permute.xlu0 %6060
          %6062 = vrot.lane.b32.xlu0 %v5401, 64
          %v6063 = vpop.permute.xlu0 %6062
          %6064 = vrot.lane.b32.xlu0 %v5402, 64
          %v6065 = vpop.permute.xlu0 %6064
          %6066 = vrot.lane.b32.xlu0 %v5403, 64
          %v6067 = vpop.permute.xlu0 %6066
          %6068 = vrot.lane.b32.xlu0 %v5404, 64
          %v6069 = vpop.permute.xlu0 %6068
          %6070 = vrot.lane.b32.xlu0 %v5405, 64
          %v6071 = vpop.permute.xlu0 %6070
          %6072 = vrot.lane.b32.xlu0 %v5406, 64
          %v6073 = vpop.permute.xlu0 %6072
          %6074 = vrot.lane.b32.xlu0 %v5407, 64
          %v6075 = vpop.permute.xlu0 %6074
          %6076 = vrot.lane.b32.xlu0 %v5408, 64
          %v6077 = vpop.permute.xlu0 %6076
          %6078 = vrot.lane.b32.xlu0 %v5409, 64
          %v6079 = vpop.permute.xlu0 %6078
          %6080 = vrot.lane.b32.xlu0 %v5410, 64
          %v6081 = vpop.permute.xlu0 %6080
          %6082 = vrot.lane.b32.xlu0 %v5411, 64
          %v6083 = vpop.permute.xlu0 %6082
          %6116 = vrot.lane.b32.xlu0 %v5956, 96
          %v6117 = vpop.permute.xlu0 %6116
          %6118 = vrot.lane.b32.xlu0 %v5957, 96
          %v6119 = vpop.permute.xlu0 %6118
          %6120 = vrot.lane.b32.xlu0 %v5958, 96
          %v6121 = vpop.permute.xlu0 %6120
          %6122 = vrot.lane.b32.xlu0 %v5959, 96
          %v6123 = vpop.permute.xlu0 %6122
          %6124 = vrot.lane.b32.xlu0 %v5960, 96
          %v6125 = vpop.permute.xlu0 %6124
          %6126 = vrot.lane.b32.xlu0 %v5961, 96
          %v6127 = vpop.permute.xlu0 %6126
          %6128 = vrot.lane.b32.xlu0 %v5962, 96
          %v6129 = vpop.permute.xlu0 %6128
          %6130 = vrot.lane.b32.xlu0 %v5963, 96
          %v6131 = vpop.permute.xlu0 %6130
          %6132 = vrot.lane.b32.xlu0 %v5964, 96
          %v6133 = vpop.permute.xlu0 %6132
          %6134 = vrot.lane.b32.xlu0 %v5965, 96
          %v6135 = vpop.permute.xlu0 %6134
          %6136 = vrot.lane.b32.xlu0 %v5966, 96
          %v6137 = vpop.permute.xlu0 %6136
          %6138 = vrot.lane.b32.xlu0 %v5967, 96
          %v6139 = vpop.permute.xlu0 %6138
          %6140 = vrot.lane.b32.xlu0 %v5968, 96
          %v6141 = vpop.permute.xlu0 %6140
          %6142 = vrot.lane.b32.xlu0 %v5969, 96
          %v6143 = vpop.permute.xlu0 %6142
          %6144 = vrot.lane.b32.xlu0 %v5970, 96
          %v6145 = vpop.permute.xlu0 %6144
          %6146 = vrot.lane.b32.xlu0 %v5971, 96
          %v6147 = vpop.permute.xlu0 %6146
          %v6164 = vsel %vm2082, %v4276, %v5989
          %v6165 = vsel %vm2082, %v4277, %v5991
          %v6166 = vsel %vm2082, %v4278, %v5993
          %v6167 = vsel %vm2082, %v4279, %v5995
          %v6168 = vsel %vm2082, %v4280, %v5997
          %v6169 = vsel %vm2082, %v4281, %v5999
          %v6170 = vsel %vm2082, %v4282, %v6001
          %v6171 = vsel %vm2082, %v4283, %v6003
          %v6172 = vsel %vm2082, %v4284, %v6005
          %v6173 = vsel %vm2082, %v4285, %v6007
          %v6174 = vsel %vm2082, %v4286, %v6009
          %v6175 = vsel %vm2082, %v4287, %v6011
          %v6176 = vsel %vm2082, %v4288, %v6013
          %v6177 = vsel %vm2082, %v4289, %v6015
          %v6178 = vsel %vm2082, %v4290, %v6017
          %v6179 = vsel %vm2082, %v4291, %v6019
          %vm6180 = vcmask 523264
          %v6181 = vsel %vm6180, %v6164, %v6053
          %v6182 = vsel %vm6180, %v6165, %v6055
          %v6183 = vsel %vm6180, %v6166, %v6057
          %v6184 = vsel %vm6180, %v6167, %v6059
          %v6185 = vsel %vm6180, %v6168, %v6061
          %v6186 = vsel %vm6180, %v6169, %v6063
          %v6187 = vsel %vm6180, %v6170, %v6065
          %v6188 = vsel %vm6180, %v6171, %v6067
          %v6189 = vsel %vm6180, %v6172, %v6069
          %v6190 = vsel %vm6180, %v6173, %v6071
          %v6191 = vsel %vm6180, %v6174, %v6073
          %v6192 = vsel %vm6180, %v6175, %v6075
          %v6193 = vsel %vm6180, %v6176, %v6077
          %v6194 = vsel %vm6180, %v6177, %v6079
          %v6195 = vsel %vm6180, %v6178, %v6081
          %v6196 = vsel %vm6180, %v6179, %v6083
          %vm6197 = vcmask 785408
          %v6198 = vsel %vm6197, %v6181, %v6117
          %v6199 = vsel %vm6197, %v6182, %v6119
          %v6200 = vsel %vm6197, %v6183, %v6121
          %v6201 = vsel %vm6197, %v6184, %v6123
          %v6202 = vsel %vm6197, %v6185, %v6125
          %v6203 = vsel %vm6197, %v6186, %v6127
          %v6204 = vsel %vm6197, %v6187, %v6129
          %v6205 = vsel %vm6197, %v6188, %v6131
          %v6206 = vsel %vm6197, %v6189, %v6133
          %v6207 = vsel %vm6197, %v6190, %v6135
          %v6208 = vsel %vm6197, %v6191, %v6137
          %v6209 = vsel %vm6197, %v6192, %v6139
          %v6210 = vsel %vm6197, %v6193, %v6141
          %v6211 = vsel %vm6197, %v6194, %v6143
          %v6212 = vsel %vm6197, %v6195, %v6145
          %v6213 = vsel %vm6197, %v6196, %v6147
          %6214 = vst [vmem:[%s625] sm:$0xff] %v6198
          %6215 = vst [vmem:[%s625 + $0x8] sm:$0xff] %v6199
          %6216 = vst [vmem:[%s625 + $0x10] sm:$0xff] %v6200
          %6217 = vst [vmem:[%s625 + $0x18] sm:$0xff] %v6201
          %6218 = vst [vmem:[%s625 + $0x20] sm:$0xff] %v6202
          %6219 = vst [vmem:[%s625 + $0x28] sm:$0xff] %v6203
          %6220 = vst [vmem:[%s625 + $0x30] sm:$0xff] %v6204
          %6221 = vst [vmem:[%s625 + $0x38] sm:$0xff] %v6205
          %6222 = vst [vmem:[%s625 + $0x40] sm:$0xff] %v6206
          %6223 = vst [vmem:[%s625 + $0x48] sm:$0xff] %v6207
          %6224 = vst [vmem:[%s625 + $0x50] sm:$0xff] %v6208
          %6225 = vst [vmem:[%s625 + $0x58] sm:$0xff] %v6209
          %6226 = vst [vmem:[%s625 + $0x60] sm:$0xff] %v6210
          %6227 = vst [vmem:[%s625 + $0x68] sm:$0xff] %v6211
          %6228 = vst [vmem:[%s625 + $0x70] sm:$0xff] %v6212
          %6229 = vst [vmem:[%s625 + $0x78] sm:$0xff] %v6213
        $region86: #{dmcr_forward.2} parent=69 // pred_fallthru
          _
        %s6230 = smul.u32 16, %s31
        %p6231 = scmp.lt.s32.totalorder %s6230, 31
        %s6232 = scalar_select %p6231, %s6230, 31
        %s6233 = smul.addr %s6232, 8
        %s6234 = scalar_lea.vmem %s6, %s6233
        // Predicated region
        $region87: #{dmcr_forward.2} parent=69 // pred_check
          %p6235 = pneg %p185
        $region88: #{dmcr_forward.2} parent=69 // pred_check_branch
          %6237 = sbr.rel (%p6235) target = $region90
        $region89: #{dmcr_forward.2} parent=69 // pred_region
          %s6238 = smul.u32 16, %s31
        $region90: #{dmcr_forward.2} parent=69 // pred_fallthru
          _
      $region70: #{dmcr_forward.2} parent=5 // pred_fallthru
        _
      %p6239 = scmp.le.s32.totalorder 2, %s22
      // Predicated region
      $region91: #{dmcr_forward.2} parent=5 // pred_check
        %p6240 = pneg %p6239
      $region92: #{dmcr_forward.2} parent=5 // pred_check_branch
        %6242 = sbr.rel (%p6240) target = $region94
      $region93: #{dmcr_forward.2} parent=5 // pred_region
        %s6243 = ssub.s32 %s22, 2
        // Predicated region
        $region95: #{dmcr_forward.2} parent=93 // pred_check
          %p6244 = pneg %p191
        $region96: #{dmcr_forward.2} parent=93 // pred_check_branch
          %6246 = sbr.rel (%p6244) target = $region98
        $region97: #{dmcr_forward.2} parent=93 // pred_region
          %s6247 = smul.u32 16, %s33
          %p6248 = scmp.lt.s32.totalorder %s6247, 31
          %s6249 = scalar_select %p6248, %s6247, 31
          %s6250 = smul.addr %s6249, 8
          %s6251 = scalar_lea.vmem %s6, %s6250
        $region98: #{dmcr_forward.2} parent=93 // pred_fallthru
          _
      $region94: #{dmcr_forward.2} parent=5 // pred_fallthru
        _
    $region6: #{dmcr_forward.2} parent=1 // loop_footer
      %s26 = sadd.s32 1, %s22
    $region7: #{dmcr_forward.2} parent=1 // loop_footer_branch
      %21 = sbr.rel target = $region3
    $region8: #{dmcr_forward.2} parent=1 // loop_exit
      _

</llo_original>
